<compile_context>
chip_gen: v6e
topology: v6e:2x2x1
jax: 0.10.0
libtpu: 0.0.40
codegen_flags: <defaults>
</compile_context>

<pallas_src>
import math

import jax
import jax.numpy as jnp
from jax.experimental import pallas as pl
from jax.experimental.pallas import tpu as pltpu


def _make_kernel(NB, L, E, H, F):
    D = E // H
    eps = 1e-5
    NBL = NB * L
    f32, bf16 = jnp.float32, jnp.bfloat16
    inv_H = 1.0 / H

    def layernorm(z, g, b):
        mu = jnp.mean(z, axis=-1, keepdims=True)
        var = jnp.mean((z - mu) ** 2, axis=-1, keepdims=True)
        return (z - mu) * jax.lax.rsqrt(var + eps) * g + b

    def kernel(x_ref, wqkv_ref, bqkv_ref, wo_ref, bo_ref,
               w1_ref, b1_ref, w2_ref, b2_ref,
               g1_ref, be1_ref, g2_ref, be2_ref,
               out_ref, aw_ref):
        # (NB, L, E) batch-first tile -> (NB*L, E) rows.  Row-wise ops are
        # order independent; attention below re-views the rows per batch.
        x = x_ref[...].reshape(NBL, E)

        # ---- QKV in-projection (1/sqrt(D) pre-folded into the q columns) ----
        qkv = jnp.dot(x.astype(bf16), wqkv_ref[...],
                      preferred_element_type=f32) + bqkv_ref[...]
        q = qkv[:, 0:E].reshape(NB, L, E)
        k = qkv[:, E:2 * E].reshape(NB, L, E)
        v = qkv[:, 2 * E:3 * E].reshape(NB, L, E)

        # ---- attention: batched over NB, short unrolled loop over heads.
        # Out-projection is fused into the head loop (no lane-axis concat);
        # the head-averaged attention weights accumulate straight into aw_ref.
        wo = wo_ref[...]                                    # staged once
        attn_out = jnp.zeros((NBL, E), f32)
        for h in range(H):
            sl = slice(h * D, (h + 1) * D)
            qh = q[:, :, sl].astype(bf16)                   # (NB, L, D)
            kh = k[:, :, sl].astype(bf16)
            vh = v[:, :, sl].astype(bf16)
            s = jnp.einsum("nqd,nkd->nqk", qh, kh,
                           preferred_element_type=f32)      # (NB, L, L)
            s = s - jnp.max(s, axis=-1, keepdims=True)
            p = jnp.exp(s)
            p = p * pl.reciprocal(jnp.sum(p, axis=-1, keepdims=True))  # exact
            if h == 0:
                aw_ref[...] = p * inv_H
            else:
                aw_ref[...] = aw_ref[...] + p * inv_H
            oh = jnp.einsum("nqk,nkd->nqd", p.astype(bf16), vh,
                            preferred_element_type=f32).reshape(NBL, D)
            attn_out = attn_out + jnp.dot(oh.astype(bf16), wo[sl, :],
                                          preferred_element_type=f32)
        attn_out = attn_out + bo_ref[...]

        # ---- residual + LayerNorm 1 (f32) ----
        h1 = layernorm(x + attn_out, g1_ref[...], be1_ref[...])

        # ---- FFN: Linear -> ReLU -> Linear (bf16 operands, f32 accum) ----
        ff = jnp.dot(h1.astype(bf16), w1_ref[...],
                     preferred_element_type=f32) + b1_ref[...]
        ff = jnp.maximum(ff, 0.0).astype(bf16)              # hidden kept bf16
        ff = jnp.dot(ff, w2_ref[...], preferred_element_type=f32) + b2_ref[...]

        # ---- residual + LayerNorm 2 ----
        out = layernorm(h1 + ff, g2_ref[...], be2_ref[...])
        out_ref[...] = out.reshape(NB, L, E)

    return kernel


def weight_transformer_block(x_lne, params, num_heads, *, max_rows_per_tile=None):
    """x_lne: (L, N, E) seq-first, like torch.
    Returns (out (L, N, E), attn_weights (N, L, L), head-averaged)."""
    L, N, E = x_lne.shape
    F = params["w1_t"].shape[1]

    # Batch-first so attention is local to a row tile of whole sequences.
    # TODO(synk): fold this transpose into the BlockSpec index_map (needs an
    # in-kernel (L,NB,E)->(NB,L,E) relayout) to save the HBM round trip.
    x_nle = jnp.transpose(x_lne, (1, 0, 2)).astype(jnp.float32)    # (N, L, E)

    # ---- per-generation row-tile size (v7x: 64 MiB VMEM, v5e/v6e: 128) ----
    try:
        vmem_cap = pltpu.get_tpu_info().vmem_capacity_bytes
    except Exception:
        vmem_cap = 64 * 1024 * 1024                # conservative (v7x)
    if max_rows_per_tile is None:
        per_row_bytes = (7 * E + F) * 4            # live f32 intermediates/row
        max_rows_per_tile = max(L, (vmem_cap // 8) // per_row_bytes)
    nb = max(1, min(N, max_rows_per_tile // L))
    while N % nb:                                  # keep tiles uniform
        nb -= 1
    grid = (N // nb,)

    kernel = _make_kernel(nb, L, E, num_heads, F)

    def _full(shape):                              # weights staged once
        nd = len(shape)
        return pl.BlockSpec(shape, lambda i: (0,) * nd)

    weight_keys = ("wqkv_t", "bqkv", "wo_t", "bo", "w1_t", "b1", "w2_t", "b2",
                   "g1", "be1", "g2", "be2")
    in_specs = [pl.BlockSpec((nb, L, E), lambda i: (i, 0, 0))]
    in_specs += [_full(params[k].shape) for k in weight_keys]
    out_specs = (pl.BlockSpec((nb, L, E), lambda i: (i, 0, 0)),
                 pl.BlockSpec((nb, L, L), lambda i: (i, 0, 0)))

    # ---- explicit scoped-VMEM budget + cost estimate ----
    w_bytes = (3 * E * E + E * E + E * F + F * E) * 2 \
        + (3 * E + E + F + E + 4 * E) * 4
    tile_bytes = nb * L * (2 * 2 * E * 4 + 2 * L * 4 + (7 * E + F) * 4)
    vmem_limit = int(min(64 * 1024 * 1024,
                         max(32 * 1024 * 1024, 2 * (w_bytes + tile_bytes))))
    flops = (2 * N * L * E * 3 * E          # qkv in-projection
             + 4 * N * L * L * E            # scores + PV over all heads
             + 2 * N * L * E * E            # out-projection
             + 4 * N * L * E * F)           # FFN
    bytes_accessed = 2 * N * L * E * 4 + N * L * L * 4 + w_bytes
    cost = pl.CostEstimate(flops=flops,
                           transcendentals=N * num_heads * L * L + 2 * N * L,
                           bytes_accessed=bytes_accessed)

    out_nle, aw = pl.pallas_call(
        kernel,
        out_shape=(jax.ShapeDtypeStruct((N, L, E), jnp.float32),
                   jax.ShapeDtypeStruct((N, L, L), jnp.float32)),
        grid=grid,
        in_specs=in_specs,
        out_specs=out_specs,
        compiler_params=pltpu.CompilerParams(
            dimension_semantics=("parallel",),   # shard row tiles across TCs
            vmem_limit_bytes=vmem_limit),
        cost_estimate=cost,
    )(x_nle, *[params[k] for k in weight_keys])

    return jnp.transpose(out_nle, (1, 0, 2)), aw


def reference_block(x_lne, params, num_heads):
    """Pure-JAX reference matching torch nn.MultiheadAttention semantics with
    the kernel's mixed precision (bf16 matmul operands, f32 accumulation).
    The 1/sqrt(D) scale is already folded into params['wqkv_t']/['bqkv']."""
    L, N, E = x_lne.shape
    H = num_heads
    D = E // H
    f32, bf16 = jnp.float32, jnp.bfloat16

    def mm(a, w):
        return jnp.einsum("...e,ef->...f", a.astype(bf16), w,
                          preferred_element_type=f32)

    x = jnp.transpose(x_lne, (1, 0, 2)).astype(f32)           # (N, L, E)
    qkv = mm(x, params["wqkv_t"]) + params["bqkv"]
    q = qkv[..., :E].reshape(N, L, H, D).transpose(0, 2, 1, 3)
    k = qkv[..., E:2 * E].reshape(N, L, H, D).transpose(0, 2, 1, 3)
    v = qkv[..., 2 * E:].reshape(N, L, H, D).transpose(0, 2, 1, 3)
    s = jnp.einsum("nhqd,nhkd->nhqk", q.astype(bf16), k.astype(bf16),
                   preferred_element_type=f32)
    p = jax.nn.softmax(s, axis=-1)
    aw = jnp.mean(p, axis=1)                                  # (N, L, L)
    a = jnp.einsum("nhqk,nhkd->nhqd", p.astype(bf16), v.astype(bf16),
                   preferred_element_type=f32)
    a = a.transpose(0, 2, 1, 3).reshape(N, L, E)
    attn_out = mm(a, params["wo_t"]) + params["bo"]

    def ln(z, g, b):
        mu = jnp.mean(z, -1, keepdims=True)
        var = jnp.mean((z - mu) ** 2, -1, keepdims=True)
        return (z - mu) * jax.lax.rsqrt(var + 1e-5) * g + b

    h1 = ln(x + attn_out, params["g1"], params["be1"])
    ff = jax.nn.relu(mm(h1, params["w1_t"]) + params["b1"])
    ff = mm(ff, params["w2_t"]) + params["b2"]
    out = ln(h1 + ff, params["g2"], params["be2"])
    return jnp.transpose(out, (1, 0, 2)), aw


def init_params(key, embed_dim, num_heads, ff_dim):
    """Kernel-ready params: weights pre-transposed (x @ W), bf16 for the MXU,
    with the 1/sqrt(head_dim) softmax scale folded into the q projection."""
    E, H, F = embed_dim, num_heads, ff_dim
    scale = 1.0 / math.sqrt(E // H)
    ks = jax.random.split(key, 8)
    s = 0.1
    f32, bf16 = jnp.float32, jnp.bfloat16
    wqkv = s * jax.random.normal(ks[0], (E, 3 * E), f32)
    bqkv = s * jax.random.normal(ks[1], (1, 3 * E), f32)
    wqkv = wqkv.at[:, :E].multiply(scale)      # one-time constant fold
    bqkv = bqkv.at[:, :E].multiply(scale)
    return {
        "wqkv_t": wqkv.astype(bf16), "bqkv": bqkv,
        "wo_t": (s * jax.random.normal(ks[2], (E, E), f32)).astype(bf16),
        "bo": s * jax.random.normal(ks[3], (1, E), f32),
        "w1_t": (s * jax.random.normal(ks[4], (E, F), f32)).astype(bf16),
        "b1": s * jax.random.normal(ks[5], (1, F), f32),
        "w2_t": (s * jax.random.normal(ks[6], (F, E), f32)).astype(bf16),
        "b2": s * jax.random.normal(ks[7], (1, E), f32),
        "g1": jnp.ones((1, E), f32), "be1": jnp.zeros((1, E), f32),
        "g2": jnp.ones((1, E), f32), "be2": jnp.zeros((1, E), f32),
    }


if __name__ == "__main__":
    # Small shapes implied by the module: seq=8, batch=8, embed_dim=32,
    # heads=4, ff_dim=64.
    L, N, E, H, F = 8, 8, 32, 4, 64
    key = jax.random.PRNGKey(0)
    kx, kp = jax.random.split(key)
    x = jax.random.normal(kx, (L, N, E), jnp.float32)   # torch layout (L,N,E)
    params = init_params(kp, E, H, F)

    # max_rows_per_tile=32 forces 2 grid steps even at these toy shapes so the
    # row-tiled pipeline / index_maps are exercised; real shapes use the
    # per-generation default derived from VMEM capacity.
    out, attn_w = weight_transformer_block(x, params, num_heads=H,
                                           max_rows_per_tile=32)
    out = jax.block_until_ready(out)
    attn_w = jax.block_until_ready(attn_w)

    ref_out, ref_aw = reference_block(x, params, num_heads=H)
    assert out.shape == (L, N, E)
    assert attn_w.shape == (N, L, L)
    # matmul numerics (bf16 operands, f32 accumulation) match the reference;
    # tolerances cover accumulation-order and exp implementation differences.
    assert jnp.allclose(out, ref_out, atol=1e-2, rtol=1e-2)
    assert jnp.allclose(attn_w, ref_aw, atol=5e-3, rtol=1e-2)

    print("KERNEL_OK")
</pallas_src>

<mosaic_0001>
module attributes {stable_mosaic.version = 11 : i64} {
  func.func @kernel(%arg0: i32, %arg1: memref<4x8x32xf32, #tpu.memory_space<vmem>>, %arg2: memref<32x96xbf16, #tpu.memory_space<vmem>>, %arg3: memref<1x96xf32, #tpu.memory_space<vmem>>, %arg4: memref<32x32xbf16, #tpu.memory_space<vmem>>, %arg5: memref<1x32xf32, #tpu.memory_space<vmem>>, %arg6: memref<32x64xbf16, #tpu.memory_space<vmem>>, %arg7: memref<1x64xf32, #tpu.memory_space<vmem>>, %arg8: memref<64x32xbf16, #tpu.memory_space<vmem>>, %arg9: memref<1x32xf32, #tpu.memory_space<vmem>>, %arg10: memref<1x32xf32, #tpu.memory_space<vmem>>, %arg11: memref<1x32xf32, #tpu.memory_space<vmem>>, %arg12: memref<1x32xf32, #tpu.memory_space<vmem>>, %arg13: memref<1x32xf32, #tpu.memory_space<vmem>>, %arg14: memref<4x8x32xf32, #tpu.memory_space<vmem>>, %arg15: memref<4x8x8xf32, #tpu.memory_space<vmem>>) attributes {dimension_semantics = [#tpu.dimension_semantics<parallel>], iteration_bounds = array<i64: 2>, scalar_prefetch = 0 : i64, scratch_operands = 0 : i64, tpu.core_type = #tpu.core_type<tc>, window_params = [{transform_indices = @transform_0, window_bounds = array<i64: 4, 8, 32>}, {pipeline_mode = #tpu.pipeline_mode<synchronous>, transform_indices = @transform_1, window_bounds = array<i64: 32, 96>}, {pipeline_mode = #tpu.pipeline_mode<synchronous>, transform_indices = @transform_2, window_bounds = array<i64: 1, 96>}, {pipeline_mode = #tpu.pipeline_mode<synchronous>, transform_indices = @transform_3, window_bounds = array<i64: 32, 32>}, {pipeline_mode = #tpu.pipeline_mode<synchronous>, transform_indices = @transform_4, window_bounds = array<i64: 1, 32>}, {pipeline_mode = #tpu.pipeline_mode<synchronous>, transform_indices = @transform_5, window_bounds = array<i64: 32, 64>}, {pipeline_mode = #tpu.pipeline_mode<synchronous>, transform_indices = @transform_6, window_bounds = array<i64: 1, 64>}, {pipeline_mode = #tpu.pipeline_mode<synchronous>, transform_indices = @transform_7, window_bounds = array<i64: 64, 32>}, {pipeline_mode = #tpu.pipeline_mode<synchronous>, transform_indices = @transform_8, window_bounds = array<i64: 1, 32>}, {pipeline_mode = #tpu.pipeline_mode<synchronous>, transform_indices = @transform_9, window_bounds = array<i64: 1, 32>}, {pipeline_mode = #tpu.pipeline_mode<synchronous>, transform_indices = @transform_10, window_bounds = array<i64: 1, 32>}, {pipeline_mode = #tpu.pipeline_mode<synchronous>, transform_indices = @transform_11, window_bounds = array<i64: 1, 32>}, {pipeline_mode = #tpu.pipeline_mode<synchronous>, transform_indices = @transform_12, window_bounds = array<i64: 1, 32>}, {transform_indices = @transform_13, window_bounds = array<i64: 4, 8, 32>}, {transform_indices = @transform_14, window_bounds = array<i64: 4, 8, 8>}]} {
    %c0 = arith.constant 0 : index
    %c0_0 = arith.constant 0 : index
    %c0_1 = arith.constant 0 : index
    %0 = vector.load %arg1[%c0, %c0_0, %c0_1] : memref<4x8x32xf32, #tpu.memory_space<vmem>>, vector<4x8x32xf32>
    %1 = vector.shape_cast %0 : vector<4x8x32xf32> to vector<32x32xf32>
    %2 = arith.truncf %1 : vector<32x32xf32> to vector<32x32xbf16>
    %c0_2 = arith.constant 0 : index
    %c0_3 = arith.constant 0 : index
    %3 = vector.load %arg2[%c0_2, %c0_3] : memref<32x96xbf16, #tpu.memory_space<vmem>>, vector<32x96xbf16>
    %cst = arith.constant dense<0.000000e+00> : vector<32x96xf32>
    %4 = tpu.matmul %2, %3, %cst {dimension_numbers = #tpu.dot_dimension_numbers<[1], [0], [0], [1], [0, 0, 1, 1], [], []>} : vector<32x32xbf16>, vector<32x96xbf16>, vector<32x96xf32> -> vector<32x96xf32>
    %c0_4 = arith.constant 0 : index
    %c0_5 = arith.constant 0 : index
    %5 = vector.load %arg3[%c0_4, %c0_5] : memref<1x96xf32, #tpu.memory_space<vmem>>, vector<1x96xf32>
    %6 = vector.broadcast %5 : vector<1x96xf32> to vector<32x96xf32>
    %7 = arith.addf %4, %6 : vector<32x96xf32>
    %8 = vector.extract_strided_slice %7 {offsets = [0, 0], sizes = [32, 32], strides = [1, 1]} : vector<32x96xf32> to vector<32x32xf32>
    %9 = vector.shape_cast %8 : vector<32x32xf32> to vector<4x8x32xf32>
    %10 = vector.extract_strided_slice %7 {offsets = [0, 32], sizes = [32, 32], strides = [1, 1]} : vector<32x96xf32> to vector<32x32xf32>
    %11 = vector.shape_cast %10 : vector<32x32xf32> to vector<4x8x32xf32>
    %12 = vector.extract_strided_slice %7 {offsets = [0, 64], sizes = [32, 32], strides = [1, 1]} : vector<32x96xf32> to vector<32x32xf32>
    %13 = vector.shape_cast %12 : vector<32x32xf32> to vector<4x8x32xf32>
    %c0_6 = arith.constant 0 : index
    %c0_7 = arith.constant 0 : index
    %14 = vector.load %arg4[%c0_6, %c0_7] : memref<32x32xbf16, #tpu.memory_space<vmem>>, vector<32x32xbf16>
    %cst_8 = arith.constant 0.000000e+00 : f32
    %15 = vector.broadcast %cst_8 : f32 to vector<32x32xf32>
    %16 = vector.extract_strided_slice %9 {offsets = [0, 0, 0], sizes = [4, 8, 8], strides = [1, 1, 1]} : vector<4x8x32xf32> to vector<4x8x8xf32>
    %17 = arith.truncf %16 : vector<4x8x8xf32> to vector<4x8x8xbf16>
    %18 = vector.extract_strided_slice %11 {offsets = [0, 0, 0], sizes = [4, 8, 8], strides = [1, 1, 1]} : vector<4x8x32xf32> to vector<4x8x8xf32>
    %19 = arith.truncf %18 : vector<4x8x8xf32> to vector<4x8x8xbf16>
    %20 = vector.extract_strided_slice %13 {offsets = [0, 0, 0], sizes = [4, 8, 8], strides = [1, 1, 1]} : vector<4x8x32xf32> to vector<4x8x8xf32>
    %21 = arith.truncf %20 : vector<4x8x8xf32> to vector<4x8x8xbf16>
    "tpu.trace_start"() <{level = 10 : i32, message = "nqd,nkd->nqk"}> : () -> ()
    %cst_9 = arith.constant dense<0.000000e+00> : vector<4x8x8xf32>
    %22 = tpu.matmul %17, %19, %cst_9 {dimension_numbers = #tpu.dot_dimension_numbers<[2], [2], [1], [1], [0, 0, 0, 1, 1, 1], [0], [0]>} : vector<4x8x8xbf16>, vector<4x8x8xbf16>, vector<4x8x8xf32> -> vector<4x8x8xf32>
    "tpu.trace_stop"() : () -> ()
    %cst_10 = arith.constant dense<0xFF800000> : vector<4x8xf32>
    %23 = vector.multi_reduction <maximumf>, %22, %cst_10 [2] : vector<4x8x8xf32> to vector<4x8xf32>
    %24 = vector.shape_cast %23 : vector<4x8xf32> to vector<4x8x1xf32>
    %25 = vector.broadcast %24 : vector<4x8x1xf32> to vector<4x8x8xf32>
    %26 = arith.subf %22, %25 : vector<4x8x8xf32>
    %27 = math.exp %26 : vector<4x8x8xf32>
    %cst_11 = arith.constant dense<0.000000e+00> : vector<4x8xf32>
    %28 = vector.multi_reduction <add>, %27, %cst_11 [2] : vector<4x8x8xf32> to vector<4x8xf32>
    %29 = vector.shape_cast %28 : vector<4x8xf32> to vector<4x8x1xf32>
    %30 = tpu.reciprocal %29 : vector<4x8x1xf32> -> vector<4x8x1xf32>
    %31 = vector.broadcast %30 : vector<4x8x1xf32> to vector<4x8x8xf32>
    %32 = arith.mulf %27, %31 : vector<4x8x8xf32>
    %cst_12 = arith.constant 2.500000e-01 : f32
    %33 = vector.broadcast %cst_12 : f32 to vector<4x8x8xf32>
    %34 = arith.mulf %32, %33 : vector<4x8x8xf32>
    %c0_13 = arith.constant 0 : index
    %c0_14 = arith.constant 0 : index
    %c0_15 = arith.constant 0 : index
    %35 = vector.load %arg15[%c0_13, %c0_14, %c0_15] : memref<4x8x8xf32, #tpu.memory_space<vmem>>, vector<4x8x8xf32>
    tpu.vector_store %arg15[%c0_13, %c0_14, %c0_15], %34 {strides = array<i32>} : memref<4x8x8xf32, #tpu.memory_space<vmem>>, vector<4x8x8xf32>,
    %36 = arith.truncf %32 : vector<4x8x8xf32> to vector<4x8x8xbf16>
    "tpu.trace_start"() <{level = 10 : i32, message = "nqk,nkd->nqd"}> : () -> ()
    %cst_16 = arith.constant dense<0.000000e+00> : vector<4x8x8xf32>
    %37 = tpu.matmul %36, %21, %cst_16 {dimension_numbers = #tpu.dot_dimension_numbers<[2], [1], [1], [2], [0, 0, 0, 1, 1, 2], [0], [0]>} : vector<4x8x8xbf16>, vector<4x8x8xbf16>, vector<4x8x8xf32> -> vector<4x8x8xf32>
    "tpu.trace_stop"() : () -> ()
    %38 = vector.shape_cast %37 : vector<4x8x8xf32> to vector<32x8xf32>
    %39 = arith.truncf %38 : vector<32x8xf32> to vector<32x8xbf16>
    %40 = vector.extract_strided_slice %14 {offsets = [0, 0], sizes = [8, 32], strides = [1, 1]} : vector<32x32xbf16> to vector<8x32xbf16>
    %cst_17 = arith.constant dense<0.000000e+00> : vector<32x32xf32>
    %41 = tpu.matmul %39, %40, %cst_17 {dimension_numbers = #tpu.dot_dimension_numbers<[1], [0], [0], [1], [0, 0, 1, 1], [], []>} : vector<32x8xbf16>, vector<8x32xbf16>, vector<32x32xf32> -> vector<32x32xf32>
    %42 = arith.addf %15, %41 : vector<32x32xf32>
    %43 = vector.extract_strided_slice %9 {offsets = [0, 0, 8], sizes = [4, 8, 8], strides = [1, 1, 1]} : vector<4x8x32xf32> to vector<4x8x8xf32>
    %44 = arith.truncf %43 : vector<4x8x8xf32> to vector<4x8x8xbf16>
    %45 = vector.extract_strided_slice %11 {offsets = [0, 0, 8], sizes = [4, 8, 8], strides = [1, 1, 1]} : vector<4x8x32xf32> to vector<4x8x8xf32>
    %46 = arith.truncf %45 : vector<4x8x8xf32> to vector<4x8x8xbf16>
    %47 = vector.extract_strided_slice %13 {offsets = [0, 0, 8], sizes = [4, 8, 8], strides = [1, 1, 1]} : vector<4x8x32xf32> to vector<4x8x8xf32>
    %48 = arith.truncf %47 : vector<4x8x8xf32> to vector<4x8x8xbf16>
    "tpu.trace_start"() <{level = 10 : i32, message = "nqd,nkd->nqk"}> : () -> ()
    %cst_18 = arith.constant dense<0.000000e+00> : vector<4x8x8xf32>
    %49 = tpu.matmul %44, %46, %cst_18 {dimension_numbers = #tpu.dot_dimension_numbers<[2], [2], [1], [1], [0, 0, 0, 1, 1, 1], [0], [0]>} : vector<4x8x8xbf16>, vector<4x8x8xbf16>, vector<4x8x8xf32> -> vector<4x8x8xf32>
    "tpu.trace_stop"() : () -> ()
    %cst_19 = arith.constant dense<0xFF800000> : vector<4x8xf32>
    %50 = vector.multi_reduction <maximumf>, %49, %cst_19 [2] : vector<4x8x8xf32> to vector<4x8xf32>
    %51 = vector.shape_cast %50 : vector<4x8xf32> to vector<4x8x1xf32>
    %52 = vector.broadcast %51 : vector<4x8x1xf32> to vector<4x8x8xf32>
    %53 = arith.subf %49, %52 : vector<4x8x8xf32>
    %54 = math.exp %53 : vector<4x8x8xf32>
    %cst_20 = arith.constant dense<0.000000e+00> : vector<4x8xf32>
    %55 = vector.multi_reduction <add>, %54, %cst_20 [2] : vector<4x8x8xf32> to vector<4x8xf32>
    %56 = vector.shape_cast %55 : vector<4x8xf32> to vector<4x8x1xf32>
    %57 = tpu.reciprocal %56 : vector<4x8x1xf32> -> vector<4x8x1xf32>
    %58 = vector.broadcast %57 : vector<4x8x1xf32> to vector<4x8x8xf32>
    %59 = arith.mulf %54, %58 : vector<4x8x8xf32>
    %c0_21 = arith.constant 0 : index
    %c0_22 = arith.constant 0 : index
    %c0_23 = arith.constant 0 : index
    %60 = vector.load %arg15[%c0_21, %c0_22, %c0_23] : memref<4x8x8xf32, #tpu.memory_space<vmem>>, vector<4x8x8xf32>
    %cst_24 = arith.constant 2.500000e-01 : f32
    %61 = vector.broadcast %cst_24 : f32 to vector<4x8x8xf32>
    %62 = arith.mulf %59, %61 : vector<4x8x8xf32>
    %63 = arith.addf %60, %62 : vector<4x8x8xf32>
    %c0_25 = arith.constant 0 : index
    %c0_26 = arith.constant 0 : index
    %c0_27 = arith.constant 0 : index
    %64 = vector.load %arg15[%c0_25, %c0_26, %c0_27] : memref<4x8x8xf32, #tpu.memory_space<vmem>>, vector<4x8x8xf32>
    tpu.vector_store %arg15[%c0_25, %c0_26, %c0_27], %63 {strides = array<i32>} : memref<4x8x8xf32, #tpu.memory_space<vmem>>, vector<4x8x8xf32>,
    %65 = arith.truncf %59 : vector<4x8x8xf32> to vector<4x8x8xbf16>
    "tpu.trace_start"() <{level = 10 : i32, message = "nqk,nkd->nqd"}> : () -> ()
    %cst_28 = arith.constant dense<0.000000e+00> : vector<4x8x8xf32>
    %66 = tpu.matmul %65, %48, %cst_28 {dimension_numbers = #tpu.dot_dimension_numbers<[2], [1], [1], [2], [0, 0, 0, 1, 1, 2], [0], [0]>} : vector<4x8x8xbf16>, vector<4x8x8xbf16>, vector<4x8x8xf32> -> vector<4x8x8xf32>
    "tpu.trace_stop"() : () -> ()
    %67 = vector.shape_cast %66 : vector<4x8x8xf32> to vector<32x8xf32>
    %68 = arith.truncf %67 : vector<32x8xf32> to vector<32x8xbf16>
    %69 = vector.extract_strided_slice %14 {offsets = [8, 0], sizes = [8, 32], strides = [1, 1]} : vector<32x32xbf16> to vector<8x32xbf16>
    %cst_29 = arith.constant dense<0.000000e+00> : vector<32x32xf32>
    %70 = tpu.matmul %68, %69, %cst_29 {dimension_numbers = #tpu.dot_dimension_numbers<[1], [0], [0], [1], [0, 0, 1, 1], [], []>} : vector<32x8xbf16>, vector<8x32xbf16>, vector<32x32xf32> -> vector<32x32xf32>
    %71 = arith.addf %42, %70 : vector<32x32xf32>
    %72 = vector.extract_strided_slice %9 {offsets = [0, 0, 16], sizes = [4, 8, 8], strides = [1, 1, 1]} : vector<4x8x32xf32> to vector<4x8x8xf32>
    %73 = arith.truncf %72 : vector<4x8x8xf32> to vector<4x8x8xbf16>
    %74 = vector.extract_strided_slice %11 {offsets = [0, 0, 16], sizes = [4, 8, 8], strides = [1, 1, 1]} : vector<4x8x32xf32> to vector<4x8x8xf32>
    %75 = arith.truncf %74 : vector<4x8x8xf32> to vector<4x8x8xbf16>
    %76 = vector.extract_strided_slice %13 {offsets = [0, 0, 16], sizes = [4, 8, 8], strides = [1, 1, 1]} : vector<4x8x32xf32> to vector<4x8x8xf32>
    %77 = arith.truncf %76 : vector<4x8x8xf32> to vector<4x8x8xbf16>
    "tpu.trace_start"() <{level = 10 : i32, message = "nqd,nkd->nqk"}> : () -> ()
    %cst_30 = arith.constant dense<0.000000e+00> : vector<4x8x8xf32>
    %78 = tpu.matmul %73, %75, %cst_30 {dimension_numbers = #tpu.dot_dimension_numbers<[2], [2], [1], [1], [0, 0, 0, 1, 1, 1], [0], [0]>} : vector<4x8x8xbf16>, vector<4x8x8xbf16>, vector<4x8x8xf32> -> vector<4x8x8xf32>
    "tpu.trace_stop"() : () -> ()
    %cst_31 = arith.constant dense<0xFF800000> : vector<4x8xf32>
    %79 = vector.multi_reduction <maximumf>, %78, %cst_31 [2] : vector<4x8x8xf32> to vector<4x8xf32>
    %80 = vector.shape_cast %79 : vector<4x8xf32> to vector<4x8x1xf32>
    %81 = vector.broadcast %80 : vector<4x8x1xf32> to vector<4x8x8xf32>
    %82 = arith.subf %78, %81 : vector<4x8x8xf32>
    %83 = math.exp %82 : vector<4x8x8xf32>
    %cst_32 = arith.constant dense<0.000000e+00> : vector<4x8xf32>
    %84 = vector.multi_reduction <add>, %83, %cst_32 [2] : vector<4x8x8xf32> to vector<4x8xf32>
    %85 = vector.shape_cast %84 : vector<4x8xf32> to vector<4x8x1xf32>
    %86 = tpu.reciprocal %85 : vector<4x8x1xf32> -> vector<4x8x1xf32>
    %87 = vector.broadcast %86 : vector<4x8x1xf32> to vector<4x8x8xf32>
    %88 = arith.mulf %83, %87 : vector<4x8x8xf32>
    %c0_33 = arith.constant 0 : index
    %c0_34 = arith.constant 0 : index
    %c0_35 = arith.constant 0 : index
    %89 = vector.load %arg15[%c0_33, %c0_34, %c0_35] : memref<4x8x8xf32, #tpu.memory_space<vmem>>, vector<4x8x8xf32>
    %cst_36 = arith.constant 2.500000e-01 : f32
    %90 = vector.broadcast %cst_36 : f32 to vector<4x8x8xf32>
    %91 = arith.mulf %88, %90 : vector<4x8x8xf32>
    %92 = arith.addf %89, %91 : vector<4x8x8xf32>
    %c0_37 = arith.constant 0 : index
    %c0_38 = arith.constant 0 : index
    %c0_39 = arith.constant 0 : index
    %93 = vector.load %arg15[%c0_37, %c0_38, %c0_39] : memref<4x8x8xf32, #tpu.memory_space<vmem>>, vector<4x8x8xf32>
    tpu.vector_store %arg15[%c0_37, %c0_38, %c0_39], %92 {strides = array<i32>} : memref<4x8x8xf32, #tpu.memory_space<vmem>>, vector<4x8x8xf32>,
    %94 = arith.truncf %88 : vector<4x8x8xf32> to vector<4x8x8xbf16>
    "tpu.trace_start"() <{level = 10 : i32, message = "nqk,nkd->nqd"}> : () -> ()
    %cst_40 = arith.constant dense<0.000000e+00> : vector<4x8x8xf32>
    %95 = tpu.matmul %94, %77, %cst_40 {dimension_numbers = #tpu.dot_dimension_numbers<[2], [1], [1], [2], [0, 0, 0, 1, 1, 2], [0], [0]>} : vector<4x8x8xbf16>, vector<4x8x8xbf16>, vector<4x8x8xf32> -> vector<4x8x8xf32>
    "tpu.trace_stop"() : () -> ()
    %96 = vector.shape_cast %95 : vector<4x8x8xf32> to vector<32x8xf32>
    %97 = arith.truncf %96 : vector<32x8xf32> to vector<32x8xbf16>
    %98 = vector.extract_strided_slice %14 {offsets = [16, 0], sizes = [8, 32], strides = [1, 1]} : vector<32x32xbf16> to vector<8x32xbf16>
    %cst_41 = arith.constant dense<0.000000e+00> : vector<32x32xf32>
    %99 = tpu.matmul %97, %98, %cst_41 {dimension_numbers = #tpu.dot_dimension_numbers<[1], [0], [0], [1], [0, 0, 1, 1], [], []>} : vector<32x8xbf16>, vector<8x32xbf16>, vector<32x32xf32> -> vector<32x32xf32>
    %100 = arith.addf %71, %99 : vector<32x32xf32>
    %101 = vector.extract_strided_slice %9 {offsets = [0, 0, 24], sizes = [4, 8, 8], strides = [1, 1, 1]} : vector<4x8x32xf32> to vector<4x8x8xf32>
    %102 = arith.truncf %101 : vector<4x8x8xf32> to vector<4x8x8xbf16>
    %103 = vector.extract_strided_slice %11 {offsets = [0, 0, 24], sizes = [4, 8, 8], strides = [1, 1, 1]} : vector<4x8x32xf32> to vector<4x8x8xf32>
    %104 = arith.truncf %103 : vector<4x8x8xf32> to vector<4x8x8xbf16>
    %105 = vector.extract_strided_slice %13 {offsets = [0, 0, 24], sizes = [4, 8, 8], strides = [1, 1, 1]} : vector<4x8x32xf32> to vector<4x8x8xf32>
    %106 = arith.truncf %105 : vector<4x8x8xf32> to vector<4x8x8xbf16>
    "tpu.trace_start"() <{level = 10 : i32, message = "nqd,nkd->nqk"}> : () -> ()
    %cst_42 = arith.constant dense<0.000000e+00> : vector<4x8x8xf32>
    %107 = tpu.matmul %102, %104, %cst_42 {dimension_numbers = #tpu.dot_dimension_numbers<[2], [2], [1], [1], [0, 0, 0, 1, 1, 1], [0], [0]>} : vector<4x8x8xbf16>, vector<4x8x8xbf16>, vector<4x8x8xf32> -> vector<4x8x8xf32>
    "tpu.trace_stop"() : () -> ()
    %cst_43 = arith.constant dense<0xFF800000> : vector<4x8xf32>
    %108 = vector.multi_reduction <maximumf>, %107, %cst_43 [2] : vector<4x8x8xf32> to vector<4x8xf32>
    %109 = vector.shape_cast %108 : vector<4x8xf32> to vector<4x8x1xf32>
    %110 = vector.broadcast %109 : vector<4x8x1xf32> to vector<4x8x8xf32>
    %111 = arith.subf %107, %110 : vector<4x8x8xf32>
    %112 = math.exp %111 : vector<4x8x8xf32>
    %cst_44 = arith.constant dense<0.000000e+00> : vector<4x8xf32>
    %113 = vector.multi_reduction <add>, %112, %cst_44 [2] : vector<4x8x8xf32> to vector<4x8xf32>
    %114 = vector.shape_cast %113 : vector<4x8xf32> to vector<4x8x1xf32>
    %115 = tpu.reciprocal %114 : vector<4x8x1xf32> -> vector<4x8x1xf32>
    %116 = vector.broadcast %115 : vector<4x8x1xf32> to vector<4x8x8xf32>
    %117 = arith.mulf %112, %116 : vector<4x8x8xf32>
    %c0_45 = arith.constant 0 : index
    %c0_46 = arith.constant 0 : index
    %c0_47 = arith.constant 0 : index
    %118 = vector.load %arg15[%c0_45, %c0_46, %c0_47] : memref<4x8x8xf32, #tpu.memory_space<vmem>>, vector<4x8x8xf32>
    %cst_48 = arith.constant 2.500000e-01 : f32
    %119 = vector.broadcast %cst_48 : f32 to vector<4x8x8xf32>
    %120 = arith.mulf %117, %119 : vector<4x8x8xf32>
    %121 = arith.addf %118, %120 : vector<4x8x8xf32>
    %c0_49 = arith.constant 0 : index
    %c0_50 = arith.constant 0 : index
    %c0_51 = arith.constant 0 : index
    %122 = vector.load %arg15[%c0_49, %c0_50, %c0_51] : memref<4x8x8xf32, #tpu.memory_space<vmem>>, vector<4x8x8xf32>
    tpu.vector_store %arg15[%c0_49, %c0_50, %c0_51], %121 {strides = array<i32>} : memref<4x8x8xf32, #tpu.memory_space<vmem>>, vector<4x8x8xf32>,
    %123 = arith.truncf %117 : vector<4x8x8xf32> to vector<4x8x8xbf16>
    "tpu.trace_start"() <{level = 10 : i32, message = "nqk,nkd->nqd"}> : () -> ()
    %cst_52 = arith.constant dense<0.000000e+00> : vector<4x8x8xf32>
    %124 = tpu.matmul %123, %106, %cst_52 {dimension_numbers = #tpu.dot_dimension_numbers<[2], [1], [1], [2], [0, 0, 0, 1, 1, 2], [0], [0]>} : vector<4x8x8xbf16>, vector<4x8x8xbf16>, vector<4x8x8xf32> -> vector<4x8x8xf32>
    "tpu.trace_stop"() : () -> ()
    %125 = vector.shape_cast %124 : vector<4x8x8xf32> to vector<32x8xf32>
    %126 = arith.truncf %125 : vector<32x8xf32> to vector<32x8xbf16>
    %127 = vector.extract_strided_slice %14 {offsets = [24, 0], sizes = [8, 32], strides = [1, 1]} : vector<32x32xbf16> to vector<8x32xbf16>
    %cst_53 = arith.constant dense<0.000000e+00> : vector<32x32xf32>
    %128 = tpu.matmul %126, %127, %cst_53 {dimension_numbers = #tpu.dot_dimension_numbers<[1], [0], [0], [1], [0, 0, 1, 1], [], []>} : vector<32x8xbf16>, vector<8x32xbf16>, vector<32x32xf32> -> vector<32x32xf32>
    %129 = arith.addf %100, %128 : vector<32x32xf32>
    %c0_54 = arith.constant 0 : index
    %c0_55 = arith.constant 0 : index
    %130 = vector.load %arg5[%c0_54, %c0_55] : memref<1x32xf32, #tpu.memory_space<vmem>>, vector<1x32xf32>
    %131 = vector.broadcast %130 : vector<1x32xf32> to vector<32x32xf32>
    %132 = arith.addf %129, %131 : vector<32x32xf32>
    %133 = arith.addf %1, %132 : vector<32x32xf32>
    %c0_56 = arith.constant 0 : index
    %c0_57 = arith.constant 0 : index
    %134 = vector.load %arg10[%c0_56, %c0_57] : memref<1x32xf32, #tpu.memory_space<vmem>>, vector<1x32xf32>
    %c0_58 = arith.constant 0 : index
    %c0_59 = arith.constant 0 : index
    %135 = vector.load %arg11[%c0_58, %c0_59] : memref<1x32xf32, #tpu.memory_space<vmem>>, vector<1x32xf32>
    %cst_60 = arith.constant dense<0.000000e+00> : vector<32xf32>
    %136 = vector.multi_reduction <add>, %133, %cst_60 [1] : vector<32x32xf32> to vector<32xf32>
    %137 = vector.shape_cast %136 : vector<32xf32> to vector<32x1xf32>
    %cst_61 = arith.constant 3.200000e+01 : f32
    %138 = vector.broadcast %cst_61 : f32 to vector<32x1xf32>
    %139 = arith.divf %137, %138 : vector<32x1xf32>
    %140 = vector.broadcast %139 : vector<32x1xf32> to vector<32x32xf32>
    %141 = arith.subf %133, %140 : vector<32x32xf32>
    %142 = arith.mulf %141, %141 : vector<32x32xf32>
    %cst_62 = arith.constant dense<0.000000e+00> : vector<32xf32>
    %143 = vector.multi_reduction <add>, %142, %cst_62 [1] : vector<32x32xf32> to vector<32xf32>
    %144 = vector.shape_cast %143 : vector<32xf32> to vector<32x1xf32>
    %cst_63 = arith.constant 3.200000e+01 : f32
    %145 = vector.broadcast %cst_63 : f32 to vector<32x1xf32>
    %146 = arith.divf %144, %145 : vector<32x1xf32>
    %147 = vector.broadcast %139 : vector<32x1xf32> to vector<32x32xf32>
    %148 = arith.subf %133, %147 : vector<32x32xf32>
    %cst_64 = arith.constant 9.99999974E-6 : f32
    %149 = vector.broadcast %cst_64 : f32 to vector<32x1xf32>
    %150 = arith.addf %146, %149 : vector<32x1xf32>
    %151 = math.rsqrt %150 : vector<32x1xf32>
    %152 = vector.broadcast %151 : vector<32x1xf32> to vector<32x32xf32>
    %153 = arith.mulf %148, %152 : vector<32x32xf32>
    %154 = vector.broadcast %134 : vector<1x32xf32> to vector<32x32xf32>
    %155 = arith.mulf %153, %154 : vector<32x32xf32>
    %156 = vector.broadcast %135 : vector<1x32xf32> to vector<32x32xf32>
    %157 = arith.addf %155, %156 : vector<32x32xf32>
    %158 = arith.truncf %157 : vector<32x32xf32> to vector<32x32xbf16>
    %c0_65 = arith.constant 0 : index
    %c0_66 = arith.constant 0 : index
    %159 = vector.load %arg6[%c0_65, %c0_66] : memref<32x64xbf16, #tpu.memory_space<vmem>>, vector<32x64xbf16>
    %cst_67 = arith.constant dense<0.000000e+00> : vector<32x64xf32>
    %160 = tpu.matmul %158, %159, %cst_67 {dimension_numbers = #tpu.dot_dimension_numbers<[1], [0], [0], [1], [0, 0, 1, 1], [], []>} : vector<32x32xbf16>, vector<32x64xbf16>, vector<32x64xf32> -> vector<32x64xf32>
    %c0_68 = arith.constant 0 : index
    %c0_69 = arith.constant 0 : index
    %161 = vector.load %arg7[%c0_68, %c0_69] : memref<1x64xf32, #tpu.memory_space<vmem>>, vector<1x64xf32>
    %162 = vector.broadcast %161 : vector<1x64xf32> to vector<32x64xf32>
    %163 = arith.addf %160, %162 : vector<32x64xf32>
    %cst_70 = arith.constant 0.000000e+00 : f32
    %164 = vector.broadcast %cst_70 : f32 to vector<32x64xf32>
    %165 = arith.maximumf %163, %164 : vector<32x64xf32>
    %166 = arith.truncf %165 : vector<32x64xf32> to vector<32x64xbf16>
    %c0_71 = arith.constant 0 : index
    %c0_72 = arith.constant 0 : index
    %167 = vector.load %arg8[%c0_71, %c0_72] : memref<64x32xbf16, #tpu.memory_space<vmem>>, vector<64x32xbf16>
    %cst_73 = arith.constant dense<0.000000e+00> : vector<32x32xf32>
    %168 = tpu.matmul %166, %167, %cst_73 {dimension_numbers = #tpu.dot_dimension_numbers<[1], [0], [0], [1], [0, 0, 1, 1], [], []>} : vector<32x64xbf16>, vector<64x32xbf16>, vector<32x32xf32> -> vector<32x32xf32>
    %c0_74 = arith.constant 0 : index
    %c0_75 = arith.constant 0 : index
    %169 = vector.load %arg9[%c0_74, %c0_75] : memref<1x32xf32, #tpu.memory_space<vmem>>, vector<1x32xf32>
    %170 = vector.broadcast %169 : vector<1x32xf32> to vector<32x32xf32>
    %171 = arith.addf %168, %170 : vector<32x32xf32>
    %172 = arith.addf %157, %171 : vector<32x32xf32>
    %c0_76 = arith.constant 0 : index
    %c0_77 = arith.constant 0 : index
    %173 = vector.load %arg12[%c0_76, %c0_77] : memref<1x32xf32, #tpu.memory_space<vmem>>, vector<1x32xf32>
    %c0_78 = arith.constant 0 : index
    %c0_79 = arith.constant 0 : index
    %174 = vector.load %arg13[%c0_78, %c0_79] : memref<1x32xf32, #tpu.memory_space<vmem>>, vector<1x32xf32>
    %cst_80 = arith.constant dense<0.000000e+00> : vector<32xf32>
    %175 = vector.multi_reduction <add>, %172, %cst_80 [1] : vector<32x32xf32> to vector<32xf32>
    %176 = vector.shape_cast %175 : vector<32xf32> to vector<32x1xf32>
    %cst_81 = arith.constant 3.200000e+01 : f32
    %177 = vector.broadcast %cst_81 : f32 to vector<32x1xf32>
    %178 = arith.divf %176, %177 : vector<32x1xf32>
    %179 = vector.broadcast %178 : vector<32x1xf32> to vector<32x32xf32>
    %180 = arith.subf %172, %179 : vector<32x32xf32>
    %181 = arith.mulf %180, %180 : vector<32x32xf32>
    %cst_82 = arith.constant dense<0.000000e+00> : vector<32xf32>
    %182 = vector.multi_reduction <add>, %181, %cst_82 [1] : vector<32x32xf32> to vector<32xf32>
    %183 = vector.shape_cast %182 : vector<32xf32> to vector<32x1xf32>
    %cst_83 = arith.constant 3.200000e+01 : f32
    %184 = vector.broadcast %cst_83 : f32 to vector<32x1xf32>
    %185 = arith.divf %183, %184 : vector<32x1xf32>
    %186 = vector.broadcast %178 : vector<32x1xf32> to vector<32x32xf32>
    %187 = arith.subf %172, %186 : vector<32x32xf32>
    %cst_84 = arith.constant 9.99999974E-6 : f32
    %188 = vector.broadcast %cst_84 : f32 to vector<32x1xf32>
    %189 = arith.addf %185, %188 : vector<32x1xf32>
    %190 = math.rsqrt %189 : vector<32x1xf32>
    %191 = vector.broadcast %190 : vector<32x1xf32> to vector<32x32xf32>
    %192 = arith.mulf %187, %191 : vector<32x32xf32>
    %193 = vector.broadcast %173 : vector<1x32xf32> to vector<32x32xf32>
    %194 = arith.mulf %192, %193 : vector<32x32xf32>
    %195 = vector.broadcast %174 : vector<1x32xf32> to vector<32x32xf32>
    %196 = arith.addf %194, %195 : vector<32x32xf32>
    %197 = vector.shape_cast %196 : vector<32x32xf32> to vector<4x8x32xf32>
    %c0_85 = arith.constant 0 : index
    %c0_86 = arith.constant 0 : index
    %c0_87 = arith.constant 0 : index
    %198 = vector.load %arg14[%c0_85, %c0_86, %c0_87] : memref<4x8x32xf32, #tpu.memory_space<vmem>>, vector<4x8x32xf32>
    tpu.vector_store %arg14[%c0_85, %c0_86, %c0_87], %197 {strides = array<i32>} : memref<4x8x32xf32, #tpu.memory_space<vmem>>, vector<4x8x32xf32>,
    return
  }
  func.func @transform_0(%arg0: i32) -> (i32, i32, i32) {
    %c0_i32 = arith.constant 0 : i32
    %c0_i32_0 = arith.constant 0 : i32
    %c0_i32_1 = arith.constant 0 : i32
    return %arg0, %c0_i32, %c0_i32_0 : i32, i32, i32
  }
  func.func @transform_1(%arg0: i32) -> (i32, i32) {
    %c0_i32 = arith.constant 0 : i32
    %c0_i32_0 = arith.constant 0 : i32
    %c0_i32_1 = arith.constant 0 : i32
    return %c0_i32, %c0_i32_0 : i32, i32
  }
  func.func @transform_2(%arg0: i32) -> (i32, i32) {
    %c0_i32 = arith.constant 0 : i32
    %c0_i32_0 = arith.constant 0 : i32
    %c0_i32_1 = arith.constant 0 : i32
    return %c0_i32, %c0_i32_0 : i32, i32
  }
  func.func @transform_3(%arg0: i32) -> (i32, i32) {
    %c0_i32 = arith.constant 0 : i32
    %c0_i32_0 = arith.constant 0 : i32
    %c0_i32_1 = arith.constant 0 : i32
    return %c0_i32, %c0_i32_0 : i32, i32
  }
  func.func @transform_4(%arg0: i32) -> (i32, i32) {
    %c0_i32 = arith.constant 0 : i32
    %c0_i32_0 = arith.constant 0 : i32
    %c0_i32_1 = arith.constant 0 : i32
    return %c0_i32, %c0_i32_0 : i32, i32
  }
  func.func @transform_5(%arg0: i32) -> (i32, i32) {
    %c0_i32 = arith.constant 0 : i32
    %c0_i32_0 = arith.constant 0 : i32
    %c0_i32_1 = arith.constant 0 : i32
    return %c0_i32, %c0_i32_0 : i32, i32
  }
  func.func @transform_6(%arg0: i32) -> (i32, i32) {
    %c0_i32 = arith.constant 0 : i32
    %c0_i32_0 = arith.constant 0 : i32
    %c0_i32_1 = arith.constant 0 : i32
    return %c0_i32, %c0_i32_0 : i32, i32
  }
  func.func @transform_7(%arg0: i32) -> (i32, i32) {
    %c0_i32 = arith.constant 0 : i32
    %c0_i32_0 = arith.constant 0 : i32
    %c0_i32_1 = arith.constant 0 : i32
    return %c0_i32, %c0_i32_0 : i32, i32
  }
  func.func @transform_8(%arg0: i32) -> (i32, i32) {
    %c0_i32 = arith.constant 0 : i32
    %c0_i32_0 = arith.constant 0 : i32
    %c0_i32_1 = arith.constant 0 : i32
    return %c0_i32, %c0_i32_0 : i32, i32
  }
  func.func @transform_9(%arg0: i32) -> (i32, i32) {
    %c0_i32 = arith.constant 0 : i32
    %c0_i32_0 = arith.constant 0 : i32
    %c0_i32_1 = arith.constant 0 : i32
    return %c0_i32, %c0_i32_0 : i32, i32
  }
  func.func @transform_10(%arg0: i32) -> (i32, i32) {
    %c0_i32 = arith.constant 0 : i32
    %c0_i32_0 = arith.constant 0 : i32
    %c0_i32_1 = arith.constant 0 : i32
    return %c0_i32, %c0_i32_0 : i32, i32
  }
  func.func @transform_11(%arg0: i32) -> (i32, i32) {
    %c0_i32 = arith.constant 0 : i32
    %c0_i32_0 = arith.constant 0 : i32
    %c0_i32_1 = arith.constant 0 : i32
    return %c0_i32, %c0_i32_0 : i32, i32
  }
  func.func @transform_12(%arg0: i32) -> (i32, i32) {
    %c0_i32 = arith.constant 0 : i32
    %c0_i32_0 = arith.constant 0 : i32
    %c0_i32_1 = arith.constant 0 : i32
    return %c0_i32, %c0_i32_0 : i32, i32
  }
  func.func @transform_13(%arg0: i32) -> (i32, i32, i32) {
    %c0_i32 = arith.constant 0 : i32
    %c0_i32_0 = arith.constant 0 : i32
    %c0_i32_1 = arith.constant 0 : i32
    return %arg0, %c0_i32, %c0_i32_0 : i32, i32, i32
  }
  func.func @transform_14(%arg0: i32) -> (i32, i32, i32) {
    %c0_i32 = arith.constant 0 : i32
    %c0_i32_0 = arith.constant 0 : i32
    %c0_i32_1 = arith.constant 0 : i32
    return %arg0, %c0_i32, %c0_i32_0 : i32, i32, i32
  }
}

</mosaic_0001>

<llo_original>
// kernel: tpu_custom_call.1
$region0: #{tpu_custom_call.1}
  #allocation0 [shape = 'u32[]', space=smem, size = 0x4, offset = 0x4, fixed_abs, tag = 'smem constant byte address 0x4 - core index']
  #allocation1 [shape = 'u32[144,128]{1,0:T(1,128)}', space=vmem, size = 0x12000, scoped, tag = 'internal scratch']
  %s0 = inlined_call_operand.hbm [shape: f32[8,8,32], index: 0, kind: input, shape index: {}]
  %s1 = inlined_call_operand.vmem [shape: bf16[32,96], index: 1, kind: input, shape index: {}]
  %s2 = inlined_call_operand.vmem [shape: f32[1,96], index: 2, kind: input, shape index: {}]
  %s3 = inlined_call_operand.vmem [shape: bf16[32,32], index: 3, kind: input, shape index: {}]
  %s4 = inlined_call_operand.vmem [shape: f32[1,32], index: 4, kind: input, shape index: {}]
  %s5 = inlined_call_operand.vmem [shape: bf16[32,64], index: 5, kind: input, shape index: {}]
  %s6 = inlined_call_operand.vmem [shape: f32[1,64], index: 6, kind: input, shape index: {}]
  %s7 = inlined_call_operand.vmem [shape: bf16[64,32], index: 7, kind: input, shape index: {}]
  %s8 = inlined_call_operand.vmem [shape: f32[1,32], index: 8, kind: input, shape index: {}]
  %s9 = inlined_call_operand.vmem [shape: f32[1,32], index: 9, kind: input, shape index: {}]
  %s10 = inlined_call_operand.vmem [shape: f32[1,32], index: 10, kind: input, shape index: {}]
  %s11 = inlined_call_operand.vmem [shape: f32[1,32], index: 11, kind: input, shape index: {}]
  %s12 = inlined_call_operand.vmem [shape: f32[1,32], index: 12, kind: input, shape index: {}]
  %s13 = inlined_call_operand.hbm [shape: f32[8,8,32], index: 13, kind: output, shape index: {0}]
  %s14 = inlined_call_operand.hbm [shape: f32[8,8,8], index: 14, kind: output, shape index: {1}]
  %15 = xla_tuple %s13, %s14
  %s16 = sld [smem:[#allocation0]]
  $region97: #{tpu_custom_call.1} parent=0
    _
  %s18 = ssub.s32 1, %s16
  %s19 = scalar_select 0, %s18, %s16
  $region1: #{tpu_custom_call.1} parent=0
    #allocation2 [shape = 'u8[32768]{0}', space=vmem, size = 0x8000, scoped, tag = 'input window, operand 0']
    #allocation3 [shape = 's32[2]{0}', space=sflag, size = 0x8, scoped, tag = 'scoped memory for tpu_custom_call.1']
    #allocation4 [shape = 's32[2]{0}', space=sflag, size = 0x8, scoped, tag = 'scoped memory for tpu_custom_call.1']
    #allocation5 [shape = 'u8[32768]{0}', space=vmem, size = 0x8000, scoped, tag = 'output window, operand 0']
    #allocation6 [shape = 'u8[32768]{0}', space=vmem, size = 0x8000, scoped, tag = 'output window, operand 1']
    #allocation7 [shape = 's32[2]{0}', space=sflag, size = 0x8, scoped, tag = 'scoped memory for tpu_custom_call.1']
    %20 = vsyncpa [#allocation3], 0
    %s21 = scalar_lea.sflag [#allocation3], 1
    %22 = vsyncpa %s21, 0
    %23 = vsyncpa [#allocation4], 0
    %s24 = scalar_lea.sflag [#allocation4], 1
    %25 = vsyncpa %s24, 0
    %26 = vsyncpa [#allocation7], 0
    %s27 = scalar_lea.sflag [#allocation7], 1
    %28 = vsyncpa %s27, 0
    loop: start=0, step=1, limit=4
    $region2: #{tpu_custom_call.1} parent=1 // loop_pre_header
      _
    $region3: #{tpu_custom_call.1} parent=1 // loop_header
      %s30 = sphi 0, %s34
      %p31 = scmp.ge.s32.totalorder %s30, 4
      %s40 = sphi 0, %s42
      %s43 = sphi 0, %s40
      %s44 = sphi 0, %s43
      %s60 = sphi 0, %s44
      %s64 = sphi 0, %s64
      %s66 = sphi 0, %s64
      %s67 = sphi 0, %s66
      %s81 = sphi 0, %s67
      %s85 = sphi 0, %s85
      %s87 = sphi 0, %s85
      %s88 = sphi 0, %s87
      %s102 = sphi 0, %s88
      %s106 = sphi 0, %s106
      %s108 = sphi 0, %s106
      %s109 = sphi 0, %s108
      %s123 = sphi 0, %s109
      %s127 = sphi 0, %s127
      %s129 = sphi 0, %s127
      %s130 = sphi 0, %s129
      %s144 = sphi 0, %s130
      %s148 = sphi 0, %s148
      %s150 = sphi 0, %s148
      %s151 = sphi 0, %s150
      %s165 = sphi 0, %s151
      %s169 = sphi 0, %s169
      %s171 = sphi 0, %s169
      %s172 = sphi 0, %s171
      %s186 = sphi 0, %s172
      %s190 = sphi 0, %s190
      %s192 = sphi 0, %s190
      %s193 = sphi 0, %s192
      %s207 = sphi 0, %s193
      %s211 = sphi 0, %s211
      %s213 = sphi 0, %s211
      %s214 = sphi 0, %s213
      %s228 = sphi 0, %s214
      %s232 = sphi 0, %s232
      %s234 = sphi 0, %s232
      %s235 = sphi 0, %s234
      %s249 = sphi 0, %s235
      %s253 = sphi 0, %s253
      %s255 = sphi 0, %s253
      %s256 = sphi 0, %s255
      %s270 = sphi 0, %s256
      %s274 = sphi 0, %s274
      %s276 = sphi 0, %s274
      %s277 = sphi 0, %s276
      %s291 = sphi 0, %s277
      %s295 = sphi 0, %s295
      %s297 = sphi 0, %s295
      %s298 = sphi 0, %s297
      %s312 = sphi 0, %s298
      %s318 = sphi 0, %s320
      %s321 = sphi 0, %s318
      %s322 = sphi 0, %s321
      %s338 = sphi 0, %s322
      %s344 = sphi 0, %s346
      %s347 = sphi 0, %s344
      %s348 = sphi 0, %s347
      %s364 = sphi 0, %s348
    $region4: #{tpu_custom_call.1} parent=1 // loop_header_branch
      %33 = sbr.rel (%p31) target = $region8
    $region5: #{tpu_custom_call.1} parent=1 // loop_body
      %s35 = ssub.s32 %s30, 1
      %s36 = ssub.s32 %s30, 2
      %s37 = sadd.s32 %s30, 1
      %s38 = ssub.s32 %s30, %s37
      %p39 = scmp.eq.s32.totalorder %s38, 0
      %s41 = sadd.s32 %s40, 1
      %s42 = scalar_select %p39, %s40, %s41
      %p45 = pneg %p39
      %p46 = scmp.eq.s32.totalorder %s30, 1
      %p47 = por %p45, %p46
      %p48 = scmp.ne.s32.totalorder %s40, %s43
      %p49 = scmp.eq.s32.totalorder %s30, 0
      %p50 = por %p48, %p49
      %p51 = scmp.ne.s32.totalorder %s40, %s43
      %p52 = scmp.eq.s32.totalorder %s35, 1
      %p53 = por %p51, %p52
      %p54 = scmp.ne.s32.totalorder %s43, %s44
      %p55 = scmp.eq.s32.totalorder %s35, 0
      %p56 = por %p54, %p55
      %p57 = scmp.ne.s32.totalorder %s43, %s44
      %p58 = scmp.eq.s32.totalorder %s36, 1
      %p59 = por %p57, %p58
      %p61 = scmp.ne.s32.totalorder %s44, %s60
      %p62 = scmp.eq.s32.totalorder %s36, 0
      %p63 = por %p61, %p62
      %s65 = sadd.s32 %s64, 1
      %p68 = scmp.eq.s32.totalorder %s30, 1
      %p69 = scmp.ne.s32.totalorder %s64, %s66
      %p70 = scmp.eq.s32.totalorder %s30, 0
      %p71 = por %p69, %p70
      %p72 = scmp.ne.s32.totalorder %s64, %s66
      %p73 = scmp.eq.s32.totalorder %s35, 1
      %p74 = por %p72, %p73
      %p75 = scmp.ne.s32.totalorder %s66, %s67
      %p76 = scmp.eq.s32.totalorder %s35, 0
      %p77 = por %p75, %p76
      %p78 = scmp.ne.s32.totalorder %s66, %s67
      %p79 = scmp.eq.s32.totalorder %s36, 1
      %p80 = por %p78, %p79
      %p82 = scmp.ne.s32.totalorder %s67, %s81
      %p83 = scmp.eq.s32.totalorder %s36, 0
      %p84 = por %p82, %p83
      %s86 = sadd.s32 %s85, 1
      %p89 = scmp.eq.s32.totalorder %s30, 1
      %p90 = scmp.ne.s32.totalorder %s85, %s87
      %p91 = scmp.eq.s32.totalorder %s30, 0
      %p92 = por %p90, %p91
      %p93 = scmp.ne.s32.totalorder %s85, %s87
      %p94 = scmp.eq.s32.totalorder %s35, 1
      %p95 = por %p93, %p94
      %p96 = scmp.ne.s32.totalorder %s87, %s88
      %p97 = scmp.eq.s32.totalorder %s35, 0
      %p98 = por %p96, %p97
      %p99 = scmp.ne.s32.totalorder %s87, %s88
      %p100 = scmp.eq.s32.totalorder %s36, 1
      %p101 = por %p99, %p100
      %p103 = scmp.ne.s32.totalorder %s88, %s102
      %p104 = scmp.eq.s32.totalorder %s36, 0
      %p105 = por %p103, %p104
      %s107 = sadd.s32 %s106, 1
      %p110 = scmp.eq.s32.totalorder %s30, 1
      %p111 = scmp.ne.s32.totalorder %s106, %s108
      %p112 = scmp.eq.s32.totalorder %s30, 0
      %p113 = por %p111, %p112
      %p114 = scmp.ne.s32.totalorder %s106, %s108
      %p115 = scmp.eq.s32.totalorder %s35, 1
      %p116 = por %p114, %p115
      %p117 = scmp.ne.s32.totalorder %s108, %s109
      %p118 = scmp.eq.s32.totalorder %s35, 0
      %p119 = por %p117, %p118
      %p120 = scmp.ne.s32.totalorder %s108, %s109
      %p121 = scmp.eq.s32.totalorder %s36, 1
      %p122 = por %p120, %p121
      %p124 = scmp.ne.s32.totalorder %s109, %s123
      %p125 = scmp.eq.s32.totalorder %s36, 0
      %p126 = por %p124, %p125
      %s128 = sadd.s32 %s127, 1
      %p131 = scmp.eq.s32.totalorder %s30, 1
      %p132 = scmp.ne.s32.totalorder %s127, %s129
      %p133 = scmp.eq.s32.totalorder %s30, 0
      %p134 = por %p132, %p133
      %p135 = scmp.ne.s32.totalorder %s127, %s129
      %p136 = scmp.eq.s32.totalorder %s35, 1
      %p137 = por %p135, %p136
      %p138 = scmp.ne.s32.totalorder %s129, %s130
      %p139 = scmp.eq.s32.totalorder %s35, 0
      %p140 = por %p138, %p139
      %p141 = scmp.ne.s32.totalorder %s129, %s130
      %p142 = scmp.eq.s32.totalorder %s36, 1
      %p143 = por %p141, %p142
      %p145 = scmp.ne.s32.totalorder %s130, %s144
      %p146 = scmp.eq.s32.totalorder %s36, 0
      %p147 = por %p145, %p146
      %s149 = sadd.s32 %s148, 1
      %p152 = scmp.eq.s32.totalorder %s30, 1
      %p153 = scmp.ne.s32.totalorder %s148, %s150
      %p154 = scmp.eq.s32.totalorder %s30, 0
      %p155 = por %p153, %p154
      %p156 = scmp.ne.s32.totalorder %s148, %s150
      %p157 = scmp.eq.s32.totalorder %s35, 1
      %p158 = por %p156, %p157
      %p159 = scmp.ne.s32.totalorder %s150, %s151
      %p160 = scmp.eq.s32.totalorder %s35, 0
      %p161 = por %p159, %p160
      %p162 = scmp.ne.s32.totalorder %s150, %s151
      %p163 = scmp.eq.s32.totalorder %s36, 1
      %p164 = por %p162, %p163
      %p166 = scmp.ne.s32.totalorder %s151, %s165
      %p167 = scmp.eq.s32.totalorder %s36, 0
      %p168 = por %p166, %p167
      %s170 = sadd.s32 %s169, 1
      %p173 = scmp.eq.s32.totalorder %s30, 1
      %p174 = scmp.ne.s32.totalorder %s169, %s171
      %p175 = scmp.eq.s32.totalorder %s30, 0
      %p176 = por %p174, %p175
      %p177 = scmp.ne.s32.totalorder %s169, %s171
      %p178 = scmp.eq.s32.totalorder %s35, 1
      %p179 = por %p177, %p178
      %p180 = scmp.ne.s32.totalorder %s171, %s172
      %p181 = scmp.eq.s32.totalorder %s35, 0
      %p182 = por %p180, %p181
      %p183 = scmp.ne.s32.totalorder %s171, %s172
      %p184 = scmp.eq.s32.totalorder %s36, 1
      %p185 = por %p183, %p184
      %p187 = scmp.ne.s32.totalorder %s172, %s186
      %p188 = scmp.eq.s32.totalorder %s36, 0
      %p189 = por %p187, %p188
      %s191 = sadd.s32 %s190, 1
      %p194 = scmp.eq.s32.totalorder %s30, 1
      %p195 = scmp.ne.s32.totalorder %s190, %s192
      %p196 = scmp.eq.s32.totalorder %s30, 0
      %p197 = por %p195, %p196
      %p198 = scmp.ne.s32.totalorder %s190, %s192
      %p199 = scmp.eq.s32.totalorder %s35, 1
      %p200 = por %p198, %p199
      %p201 = scmp.ne.s32.totalorder %s192, %s193
      %p202 = scmp.eq.s32.totalorder %s35, 0
      %p203 = por %p201, %p202
      %p204 = scmp.ne.s32.totalorder %s192, %s193
      %p205 = scmp.eq.s32.totalorder %s36, 1
      %p206 = por %p204, %p205
      %p208 = scmp.ne.s32.totalorder %s193, %s207
      %p209 = scmp.eq.s32.totalorder %s36, 0
      %p210 = por %p208, %p209
      %s212 = sadd.s32 %s211, 1
      %p215 = scmp.eq.s32.totalorder %s30, 1
      %p216 = scmp.ne.s32.totalorder %s211, %s213
      %p217 = scmp.eq.s32.totalorder %s30, 0
      %p218 = por %p216, %p217
      %p219 = scmp.ne.s32.totalorder %s211, %s213
      %p220 = scmp.eq.s32.totalorder %s35, 1
      %p221 = por %p219, %p220
      %p222 = scmp.ne.s32.totalorder %s213, %s214
      %p223 = scmp.eq.s32.totalorder %s35, 0
      %p224 = por %p222, %p223
      %p225 = scmp.ne.s32.totalorder %s213, %s214
      %p226 = scmp.eq.s32.totalorder %s36, 1
      %p227 = por %p225, %p226
      %p229 = scmp.ne.s32.totalorder %s214, %s228
      %p230 = scmp.eq.s32.totalorder %s36, 0
      %p231 = por %p229, %p230
      %s233 = sadd.s32 %s232, 1
      %p236 = scmp.eq.s32.totalorder %s30, 1
      %p237 = scmp.ne.s32.totalorder %s232, %s234
      %p238 = scmp.eq.s32.totalorder %s30, 0
      %p239 = por %p237, %p238
      %p240 = scmp.ne.s32.totalorder %s232, %s234
      %p241 = scmp.eq.s32.totalorder %s35, 1
      %p242 = por %p240, %p241
      %p243 = scmp.ne.s32.totalorder %s234, %s235
      %p244 = scmp.eq.s32.totalorder %s35, 0
      %p245 = por %p243, %p244
      %p246 = scmp.ne.s32.totalorder %s234, %s235
      %p247 = scmp.eq.s32.totalorder %s36, 1
      %p248 = por %p246, %p247
      %p250 = scmp.ne.s32.totalorder %s235, %s249
      %p251 = scmp.eq.s32.totalorder %s36, 0
      %p252 = por %p250, %p251
      %s254 = sadd.s32 %s253, 1
      %p257 = scmp.eq.s32.totalorder %s30, 1
      %p258 = scmp.ne.s32.totalorder %s253, %s255
      %p259 = scmp.eq.s32.totalorder %s30, 0
      %p260 = por %p258, %p259
      %p261 = scmp.ne.s32.totalorder %s253, %s255
      %p262 = scmp.eq.s32.totalorder %s35, 1
      %p263 = por %p261, %p262
      %p264 = scmp.ne.s32.totalorder %s255, %s256
      %p265 = scmp.eq.s32.totalorder %s35, 0
      %p266 = por %p264, %p265
      %p267 = scmp.ne.s32.totalorder %s255, %s256
      %p268 = scmp.eq.s32.totalorder %s36, 1
      %p269 = por %p267, %p268
      %p271 = scmp.ne.s32.totalorder %s256, %s270
      %p272 = scmp.eq.s32.totalorder %s36, 0
      %p273 = por %p271, %p272
      %s275 = sadd.s32 %s274, 1
      %p278 = scmp.eq.s32.totalorder %s30, 1
      %p279 = scmp.ne.s32.totalorder %s274, %s276
      %p280 = scmp.eq.s32.totalorder %s30, 0
      %p281 = por %p279, %p280
      %p282 = scmp.ne.s32.totalorder %s274, %s276
      %p283 = scmp.eq.s32.totalorder %s35, 1
      %p284 = por %p282, %p283
      %p285 = scmp.ne.s32.totalorder %s276, %s277
      %p286 = scmp.eq.s32.totalorder %s35, 0
      %p287 = por %p285, %p286
      %p288 = scmp.ne.s32.totalorder %s276, %s277
      %p289 = scmp.eq.s32.totalorder %s36, 1
      %p290 = por %p288, %p289
      %p292 = scmp.ne.s32.totalorder %s277, %s291
      %p293 = scmp.eq.s32.totalorder %s36, 0
      %p294 = por %p292, %p293
      %s296 = sadd.s32 %s295, 1
      %p299 = scmp.eq.s32.totalorder %s30, 1
      %p300 = scmp.ne.s32.totalorder %s295, %s297
      %p301 = scmp.eq.s32.totalorder %s30, 0
      %p302 = por %p300, %p301
      %p303 = scmp.ne.s32.totalorder %s295, %s297
      %p304 = scmp.eq.s32.totalorder %s35, 1
      %p305 = por %p303, %p304
      %p306 = scmp.ne.s32.totalorder %s297, %s298
      %p307 = scmp.eq.s32.totalorder %s35, 0
      %p308 = por %p306, %p307
      %p309 = scmp.ne.s32.totalorder %s297, %s298
      %p310 = scmp.eq.s32.totalorder %s36, 1
      %p311 = por %p309, %p310
      %p313 = scmp.ne.s32.totalorder %s298, %s312
      %p314 = scmp.eq.s32.totalorder %s36, 0
      %p315 = por %p313, %p314
      %s316 = ssub.s32 %s30, %s37
      %p317 = scmp.eq.s32.totalorder %s316, 0
      %s319 = sadd.s32 %s318, 1
      %s320 = scalar_select %p317, %s318, %s319
      %p323 = pneg %p317
      %p324 = scmp.eq.s32.totalorder %s30, 1
      %p325 = por %p323, %p324
      %p326 = scmp.ne.s32.totalorder %s318, %s321
      %p327 = scmp.eq.s32.totalorder %s30, 0
      %p328 = por %p326, %p327
      %p329 = scmp.ne.s32.totalorder %s318, %s321
      %p330 = scmp.eq.s32.totalorder %s35, 1
      %p331 = por %p329, %p330
      %p332 = scmp.ne.s32.totalorder %s321, %s322
      %p333 = scmp.eq.s32.totalorder %s35, 0
      %p334 = por %p332, %p333
      %p335 = scmp.ne.s32.totalorder %s321, %s322
      %p336 = scmp.eq.s32.totalorder %s36, 1
      %p337 = por %p335, %p336
      %p339 = scmp.ne.s32.totalorder %s322, %s338
      %p340 = scmp.eq.s32.totalorder %s36, 0
      %p341 = por %p339, %p340
      %s342 = ssub.s32 %s30, %s37
      %p343 = scmp.eq.s32.totalorder %s342, 0
      %s345 = sadd.s32 %s344, 1
      %s346 = scalar_select %p343, %s344, %s345
      %p349 = pneg %p343
      %p350 = scmp.eq.s32.totalorder %s30, 1
      %p351 = por %p349, %p350
      %p352 = scmp.ne.s32.totalorder %s344, %s347
      %p353 = scmp.eq.s32.totalorder %s30, 0
      %p354 = por %p352, %p353
      %p355 = scmp.ne.s32.totalorder %s344, %s347
      %p356 = scmp.eq.s32.totalorder %s35, 1
      %p357 = por %p355, %p356
      %p358 = scmp.ne.s32.totalorder %s347, %s348
      %p359 = scmp.eq.s32.totalorder %s35, 0
      %p360 = por %p358, %p359
      %p361 = scmp.ne.s32.totalorder %s347, %s348
      %p362 = scmp.eq.s32.totalorder %s36, 1
      %p363 = por %p361, %p362
      %p365 = scmp.ne.s32.totalorder %s348, %s364
      %p366 = scmp.eq.s32.totalorder %s36, 0
      %p367 = por %p365, %p366
      %p368 = scmp.le.s32.totalorder 1, %s30
      %p369 = scmp.lt.s32.totalorder %s30, 3
      %p370 = pnand %p368, %p369
      %p371 = pneg %p370
      // Predicated region
      $region9: #{tpu_custom_call.1} parent=5 // pred_check
        _
      $region10: #{tpu_custom_call.1} parent=5 // pred_check_branch
        %373 = sbr.rel (%p370) target = $region12
      $region11: #{tpu_custom_call.1} parent=5 // pred_region
        %s374 = ssub.s32 %s30, 1
        // Predicated region
        $region13: #{tpu_custom_call.1} parent=11 // pred_check
          %p375 = pneg %p77
        $region14: #{tpu_custom_call.1} parent=11 // pred_check_branch
          %377 = sbr.rel (%p375) target = $region16
        $region15: #{tpu_custom_call.1} parent=11 // pred_region
          _
        $region16: #{tpu_custom_call.1} parent=11 // pred_fallthru
          _
        // Predicated region
        $region17: #{tpu_custom_call.1} parent=11 // pred_check
          %p378 = pneg %p98
        $region18: #{tpu_custom_call.1} parent=11 // pred_check_branch
          %380 = sbr.rel (%p378) target = $region20
        $region19: #{tpu_custom_call.1} parent=11 // pred_region
          _
        $region20: #{tpu_custom_call.1} parent=11 // pred_fallthru
          _
        // Predicated region
        $region21: #{tpu_custom_call.1} parent=11 // pred_check
          %p381 = pneg %p119
        $region22: #{tpu_custom_call.1} parent=11 // pred_check_branch
          %383 = sbr.rel (%p381) target = $region24
        $region23: #{tpu_custom_call.1} parent=11 // pred_region
          _
        $region24: #{tpu_custom_call.1} parent=11 // pred_fallthru
          _
        // Predicated region
        $region25: #{tpu_custom_call.1} parent=11 // pred_check
          %p384 = pneg %p140
        $region26: #{tpu_custom_call.1} parent=11 // pred_check_branch
          %386 = sbr.rel (%p384) target = $region28
        $region27: #{tpu_custom_call.1} parent=11 // pred_region
          _
        $region28: #{tpu_custom_call.1} parent=11 // pred_fallthru
          _
        // Predicated region
        $region29: #{tpu_custom_call.1} parent=11 // pred_check
          %p387 = pneg %p161
        $region30: #{tpu_custom_call.1} parent=11 // pred_check_branch
          %389 = sbr.rel (%p387) target = $region32
        $region31: #{tpu_custom_call.1} parent=11 // pred_region
          _
        $region32: #{tpu_custom_call.1} parent=11 // pred_fallthru
          _
        // Predicated region
        $region33: #{tpu_custom_call.1} parent=11 // pred_check
          %p390 = pneg %p182
        $region34: #{tpu_custom_call.1} parent=11 // pred_check_branch
          %392 = sbr.rel (%p390) target = $region36
        $region35: #{tpu_custom_call.1} parent=11 // pred_region
          _
        $region36: #{tpu_custom_call.1} parent=11 // pred_fallthru
          _
        // Predicated region
        $region37: #{tpu_custom_call.1} parent=11 // pred_check
          %p393 = pneg %p203
        $region38: #{tpu_custom_call.1} parent=11 // pred_check_branch
          %395 = sbr.rel (%p393) target = $region40
        $region39: #{tpu_custom_call.1} parent=11 // pred_region
          _
        $region40: #{tpu_custom_call.1} parent=11 // pred_fallthru
          _
        // Predicated region
        $region41: #{tpu_custom_call.1} parent=11 // pred_check
          %p396 = pneg %p224
        $region42: #{tpu_custom_call.1} parent=11 // pred_check_branch
          %398 = sbr.rel (%p396) target = $region44
        $region43: #{tpu_custom_call.1} parent=11 // pred_region
          _
        $region44: #{tpu_custom_call.1} parent=11 // pred_fallthru
          _
        // Predicated region
        $region45: #{tpu_custom_call.1} parent=11 // pred_check
          %p399 = pneg %p245
        $region46: #{tpu_custom_call.1} parent=11 // pred_check_branch
          %401 = sbr.rel (%p399) target = $region48
        $region47: #{tpu_custom_call.1} parent=11 // pred_region
          _
        $region48: #{tpu_custom_call.1} parent=11 // pred_fallthru
          _
        // Predicated region
        $region49: #{tpu_custom_call.1} parent=11 // pred_check
          %p402 = pneg %p266
        $region50: #{tpu_custom_call.1} parent=11 // pred_check_branch
          %404 = sbr.rel (%p402) target = $region52
        $region51: #{tpu_custom_call.1} parent=11 // pred_region
          _
        $region52: #{tpu_custom_call.1} parent=11 // pred_fallthru
          _
        // Predicated region
        $region53: #{tpu_custom_call.1} parent=11 // pred_check
          %p405 = pneg %p287
        $region54: #{tpu_custom_call.1} parent=11 // pred_check_branch
          %407 = sbr.rel (%p405) target = $region56
        $region55: #{tpu_custom_call.1} parent=11 // pred_region
          _
        $region56: #{tpu_custom_call.1} parent=11 // pred_fallthru
          _
        // Predicated region
        $region57: #{tpu_custom_call.1} parent=11 // pred_check
          %p408 = pneg %p308
        $region58: #{tpu_custom_call.1} parent=11 // pred_check_branch
          %410 = sbr.rel (%p408) target = $region60
        $region59: #{tpu_custom_call.1} parent=11 // pred_region
          _
        $region60: #{tpu_custom_call.1} parent=11 // pred_fallthru
          _
      $region12: #{tpu_custom_call.1} parent=5 // pred_fallthru
        _
      %p411 = scmp.lt.s32.totalorder %s30, 2
      // Predicated region
      $region61: #{tpu_custom_call.1} parent=5 // pred_check
        %p412 = pneg %p411
      $region62: #{tpu_custom_call.1} parent=5 // pred_check_branch
        %414 = sbr.rel (%p412) target = $region64
      $region63: #{tpu_custom_call.1} parent=5 // pred_region
        // Predicated region
        $region65: #{tpu_custom_call.1} parent=63 // pred_check
          %p415 = pneg %p50
        $region66: #{tpu_custom_call.1} parent=63 // pred_check_branch
          %417 = sbr.rel (%p415) target = $region68
        $region67: #{tpu_custom_call.1} parent=63 // pred_region
          %s418 = sand.u32 %s40, 1
          %s419 = scalar_lea.sflag [#allocation3], %s418
          %s420 = sand.u32 %s40, 1
          %s421 = smul.addr %s420, 32
          %s422 = scalar_lea.vmem [#allocation2], %s421
          %s423 = smul.u32 4, %s30
          %s425 = ssub.s32 512, 512
          %426 = vsyncadd %s419, %s425
          %s427 = smul.addr %s423, 128
          %s428 = scalar_lea.hbm %s0, %s427
          %s429 = sshll.u32 %s422, 4
          %s430 = int_to_ptr.vmem [resolvable:$true] %s429
          %435 = dma.hbm_to_vmem [thread:$0]  %s428, 512, %s430, %s419, 128, 128, 8
        $region68: #{tpu_custom_call.1} parent=63 // pred_fallthru
          _
      $region64: #{tpu_custom_call.1} parent=5 // pred_fallthru
        _
      %p436 = scmp.le.s32.totalorder 1, %s30
      %p437 = scmp.lt.s32.totalorder %s30, 3
      %p438 = pnand %p436, %p437
      %p439 = pneg %p438
      // Predicated region
      $region69: #{tpu_custom_call.1} parent=5 // pred_check
        _
      $region70: #{tpu_custom_call.1} parent=5 // pred_check_branch
        %441 = sbr.rel (%p438) target = $region72
      $region71: #{tpu_custom_call.1} parent=5 // pred_region
        %s442 = ssub.s32 %s30, 1
        %s443 = sand.u32 %s43, 1
        %s444 = scalar_lea.sflag [#allocation3], %s443
        %s445 = sand.u32 %s43, 1
        %s446 = smul.addr %s445, 32
        %s447 = scalar_lea.vmem [#allocation2], %s446
        // Predicated region
        $region73: #{tpu_custom_call.1} parent=71 // pred_check
          %p448 = pneg %p56
        $region74: #{tpu_custom_call.1} parent=71 // pred_check_branch
          %450 = sbr.rel (%p448) target = $region76
        $region75: #{tpu_custom_call.1} parent=71 // pred_region
          %451 = dma.done %s444, 512
        $region76: #{tpu_custom_call.1} parent=71 // pred_fallthru
          _
        %s452 = sand.u32 %s43, 1
        %s453 = scalar_lea.sflag [#allocation3], %s452
        %s454 = sand.u32 %s43, 1
        %s455 = smul.addr %s454, 32
        %s456 = scalar_lea.vmem [#allocation2], %s455
        %p457 = pneg %p56
        %p458 = pneg %p53
        %p459 = pneg %p77
        %p460 = pneg %p74
        %p461 = pneg %p98
        %p462 = pneg %p95
        %p463 = pneg %p119
        %p464 = pneg %p116
        %p465 = pneg %p140
        %p466 = pneg %p137
        %p467 = pneg %p161
        %p468 = pneg %p158
        %p469 = pneg %p182
        %p470 = pneg %p179
        %p471 = pneg %p203
        %p472 = pneg %p200
        %p473 = pneg %p224
        %p474 = pneg %p221
        %p475 = pneg %p245
        %p476 = pneg %p242
        %p477 = pneg %p266
        %p478 = pneg %p263
        %p479 = pneg %p287
        %p480 = pneg %p284
        %p481 = pneg %p308
        %p482 = pneg %p305
        %p483 = pneg %p334
        %p484 = pneg %p331
        %s485 = sand.u32 %s321, 1
        %s486 = scalar_lea.sflag [#allocation4], %s485
        %s487 = sand.u32 %s321, 1
        %s488 = smul.addr %s487, 32
        %s489 = scalar_lea.vmem [#allocation5], %s488
        %p490 = pneg %p360
        %p491 = pneg %p357
        %s492 = sand.u32 %s347, 1
        %s493 = scalar_lea.sflag [#allocation7], %s492
        %s494 = sand.u32 %s347, 1
        %s495 = smul.addr %s494, 32
        %s496 = scalar_lea.vmem [#allocation6], %s495
        %s497 = smul.u32 4, %s35
        %s498 = smul.u32 4, %s35
        %s499 = smul.u32 4, %s35
        %v501 = vld [vmem:[%s447] sm:$0xff]
        %v502 = vld [vmem:[%s447 + $0x8] sm:$0xff]
        %v503 = vld [vmem:[%s447 + $0x10] sm:$0xff]
        %v504 = vld [vmem:[%s447 + $0x18] sm:$0xff]
        %v505 = vpack.c.bf16 %v502, %v501
        %v506 = vpack.c.bf16 %v504, %v503
        %v507 = vld [vmem:[%s1] sm:$0xf]
        %v508 = vld [vmem:[%s1 + $0x4] sm:$0xf]
        %v509 = vld [vmem:[%s1 + $0x8] sm:$0xf]
        %v510 = vld [vmem:[%s1 + $0xc] sm:$0xf]
        %v511 = vld [vmem:[%s2] sm:$0x1]
        %v513 = vlaneseq
        %v514 = vshrl.u32 %v513, 7
        %v515 = vsub.s32 0, %v514
        %v516 = vrot.slane %v511, %v515
        %v522 = vunpack.c.l.b16 %v507
        %v523 = vunpack.c.l.b16 %v508
        %v524 = vunpack.c.l.b16 %v509
        %v525 = vunpack.c.l.b16 %v510
        %v526 = vpack.c.b16 %v523, %v522
        %v527 = vpack.c.b16 %v525, %v524
        %vm530 = vcmask 261120
        %v532 = vsel %vm530, %v505, 0
        %v535 = vsel %vm530, %v506, 0
        %537 = vmatprep.subr.bf16.mxu0 0
        %538 = vmatpush1.bf16.msra.mxu0 0
        %539 = vmatprep.subr.bf16.mxu0 0
        %540 = vmatpush1.bf16.msra.mxu0 0
        %541 = vmatprep.subr.bf16.mxu0 0
        %542 = vmatpush1.bf16.msra.mxu0 0
        %543 = vmatprep.subr.bf16.mxu0 0
        %544 = vmatpush1.bf16.msra.mxu0 0
        %545 = vmatprep.subr.bf16.mxu0 0
        %546 = vmatpush1.bf16.msra.mxu0 0
        %547 = vmatprep.subr.bf16.mxu0 0
        %548 = vmatpush1.bf16.msra.mxu0 0
        %549 = vmatprep.subr.bf16.mxu0 0
        %550 = vmatpush1.bf16.msra.mxu0 %v527
        %551 = vmatprep.subr.bf16.mxu0 0
        %552 = vmatpush1.bf16.msra.mxu0 %v526
        %553 = vmatprep.subr.bf16.mxu0 0
        %554 = vmatpush2.bf16.msra.mxu0 0
        %555 = vmatprep.subr.bf16.mxu0 0
        %556 = vmatpush2.bf16.msra.mxu0 0
        %557 = vmatprep.subr.bf16.mxu0 0
        %558 = vmatpush2.bf16.msra.mxu0 0
        %559 = vmatprep.subr.bf16.mxu0 0
        %560 = vmatpush2.bf16.msra.mxu0 0
        %561 = vmatprep.subr.bf16.mxu0 0
        %562 = vmatpush2.bf16.msra.mxu0 0
        %563 = vmatprep.subr.bf16.mxu0 0
        %564 = vmatpush2.bf16.msra.mxu0 0
        %565 = vmatprep.subr.bf16.mxu0 0
        %566 = vmatpush2.bf16.msra.mxu0 0
        %567 = vmatprep.subr.bf16.mxu0 0
        %568 = vmatpush2.bf16.msra.mxu0 0
        %569 = vmatprep.mubr.bf16.mxu0 0
        %570 = vmatmul.mubr.bf16.gmra.mxu0 %v532
        %v571 = vpop.f32.mrf.mxu0
        %v572 = vadd.f32 %v516, %v571
        %v573 = vpop.f32.mrf.mxu0
        %v574 = vpop.f32.mrf.mxu0
        %v575 = vadd.f32 %v516, %v574
        %v576 = vpop.f32.mrf.mxu0
        %577 = vmatprep.mubr.bf16.mxu0 0
        %578 = vmatmul.mubr.bf16.gmra.mxu0 %v535
        %v579 = vpop.f32.mrf.mxu0
        %v580 = vadd.f32 %v516, %v579
        %v581 = vpop.f32.mrf.mxu0
        %v582 = vpop.f32.mrf.mxu0
        %v583 = vadd.f32 %v516, %v582
        %v584 = vpop.f32.mrf.mxu0
        %585 = vdwg.mxu0
        %v586 = vld [vmem:[%s3] sm:$0xf]
        %v587 = vld [vmem:[%s3 + $0x4] sm:$0xf]
        %v588 = vld [vmem:[%s3 + $0x8] sm:$0xf]
        %v589 = vld [vmem:[%s3 + $0xc] sm:$0xf]
        %v590 = vpack.c.bf16 %v572, %v572
        %v591 = vpack.c.bf16 %v575, %v575
        %v592 = vpack.c.bf16 %v580, %v580
        %v593 = vpack.c.bf16 %v583, %v583
        %595 = vrot.lane.b32.xlu0 %v590, 96
        %v596 = vpop.permute.xlu0 %595
        %vm597 = vcmask 64512
        %v599 = vsel %vm597, %v590, 0
        %v602 = vsel %vm597, %v596, 0
        %604 = vmatprep.subr.bf16.mxu0 0
        %605 = vmatpush1.bf16.xpose.msra.mxu0 0
        %606 = vmatprep.subr.bf16.mxu0 0
        %607 = vmatpush1.bf16.xpose.msra.mxu0 0
        %608 = vmatprep.subr.bf16.mxu0 0
        %609 = vmatpush1.bf16.xpose.msra.mxu0 0
        %610 = vmatprep.subr.bf16.mxu0 0
        %611 = vmatpush1.bf16.xpose.msra.mxu0 0
        %612 = vmatprep.subr.bf16.mxu0 0
        %613 = vmatpush1.bf16.xpose.msra.mxu0 0
        %614 = vmatprep.subr.bf16.mxu0 0
        %615 = vmatpush1.bf16.xpose.msra.mxu0 0
        %616 = vmatprep.subr.bf16.mxu0 0
        %617 = vmatpush1.bf16.xpose.msra.mxu0 0
        %618 = vmatprep.subr.bf16.mxu0 0
        %619 = vmatpush1.bf16.xpose.msra.mxu0 %v602
        %620 = vmatprep.subr.bf16.mxu0 0
        %621 = vmatpush2.bf16.xpose.msra.mxu0 0
        %622 = vmatprep.subr.bf16.mxu0 0
        %623 = vmatpush2.bf16.xpose.msra.mxu0 0
        %624 = vmatprep.subr.bf16.mxu0 0
        %625 = vmatpush2.bf16.xpose.msra.mxu0 0
        %626 = vmatprep.subr.bf16.mxu0 0
        %627 = vmatpush2.bf16.xpose.msra.mxu0 0
        %628 = vmatprep.subr.bf16.mxu0 0
        %629 = vmatpush2.bf16.xpose.msra.mxu0 0
        %630 = vmatprep.subr.bf16.mxu0 0
        %631 = vmatpush2.bf16.xpose.msra.mxu0 0
        %632 = vmatprep.subr.bf16.mxu0 0
        %633 = vmatpush2.bf16.xpose.msra.mxu0 0
        %634 = vmatprep.subr.bf16.mxu0 0
        %635 = vmatpush2.bf16.xpose.msra.mxu0 0
        %636 = vmatprep.mubr.bf16.mxu0 0
        %637 = vmatmul.mubr.bf16.gmra.mxu0 %v599
        %v638 = vpop.f32.mrf.mxu0
        %v639 = vadd.f32 0.0, %v638
        %v640 = vpop.f32.mrf.mxu0
        %v641 = vpop.f32.mrf.mxu0
        %v642 = vpop.f32.mrf.mxu0
        %643 = vdwg.mxu0
        %645 = vrot.lane.b32.xlu0 %v591, 96
        %v646 = vpop.permute.xlu0 %645
        %v648 = vsel %vm597, %v591, 0
        %v651 = vsel %vm597, %v646, 0
        %653 = vmatprep.subr.bf16.mxu0 0
        %654 = vmatpush1.bf16.xpose.msra.mxu0 0
        %655 = vmatprep.subr.bf16.mxu0 0
        %656 = vmatpush1.bf16.xpose.msra.mxu0 0
        %657 = vmatprep.subr.bf16.mxu0 0
        %658 = vmatpush1.bf16.xpose.msra.mxu0 0
        %659 = vmatprep.subr.bf16.mxu0 0
        %660 = vmatpush1.bf16.xpose.msra.mxu0 0
        %661 = vmatprep.subr.bf16.mxu0 0
        %662 = vmatpush1.bf16.xpose.msra.mxu0 0
        %663 = vmatprep.subr.bf16.mxu0 0
        %664 = vmatpush1.bf16.xpose.msra.mxu0 0
        %665 = vmatprep.subr.bf16.mxu0 0
        %666 = vmatpush1.bf16.xpose.msra.mxu0 0
        %667 = vmatprep.subr.bf16.mxu0 0
        %668 = vmatpush1.bf16.xpose.msra.mxu0 %v651
        %669 = vmatprep.subr.bf16.mxu0 0
        %670 = vmatpush2.bf16.xpose.msra.mxu0 0
        %671 = vmatprep.subr.bf16.mxu0 0
        %672 = vmatpush2.bf16.xpose.msra.mxu0 0
        %673 = vmatprep.subr.bf16.mxu0 0
        %674 = vmatpush2.bf16.xpose.msra.mxu0 0
        %675 = vmatprep.subr.bf16.mxu0 0
        %676 = vmatpush2.bf16.xpose.msra.mxu0 0
        %677 = vmatprep.subr.bf16.mxu0 0
        %678 = vmatpush2.bf16.xpose.msra.mxu0 0
        %679 = vmatprep.subr.bf16.mxu0 0
        %680 = vmatpush2.bf16.xpose.msra.mxu0 0
        %681 = vmatprep.subr.bf16.mxu0 0
        %682 = vmatpush2.bf16.xpose.msra.mxu0 0
        %683 = vmatprep.subr.bf16.mxu0 0
        %684 = vmatpush2.bf16.xpose.msra.mxu0 0
        %685 = vmatprep.mubr.bf16.mxu0 0
        %686 = vmatmul.mubr.bf16.gmra.mxu0 %v648
        %v687 = vpop.f32.mrf.mxu0
        %v688 = vadd.f32 0.0, %v687
        %v689 = vpop.f32.mrf.mxu0
        %v690 = vpop.f32.mrf.mxu0
        %v691 = vpop.f32.mrf.mxu0
        %692 = vdwg.mxu0
        %694 = vrot.lane.b32.xlu0 %v592, 96
        %v695 = vpop.permute.xlu0 %694
        %v697 = vsel %vm597, %v592, 0
        %v700 = vsel %vm597, %v695, 0
        %702 = vmatprep.subr.bf16.mxu0 0
        %703 = vmatpush1.bf16.xpose.msra.mxu0 0
        %704 = vmatprep.subr.bf16.mxu0 0
        %705 = vmatpush1.bf16.xpose.msra.mxu0 0
        %706 = vmatprep.subr.bf16.mxu0 0
        %707 = vmatpush1.bf16.xpose.msra.mxu0 0
        %708 = vmatprep.subr.bf16.mxu0 0
        %709 = vmatpush1.bf16.xpose.msra.mxu0 0
        %710 = vmatprep.subr.bf16.mxu0 0
        %711 = vmatpush1.bf16.xpose.msra.mxu0 0
        %712 = vmatprep.subr.bf16.mxu0 0
        %713 = vmatpush1.bf16.xpose.msra.mxu0 0
        %714 = vmatprep.subr.bf16.mxu0 0
        %715 = vmatpush1.bf16.xpose.msra.mxu0 0
        %716 = vmatprep.subr.bf16.mxu0 0
        %717 = vmatpush1.bf16.xpose.msra.mxu0 %v700
        %718 = vmatprep.subr.bf16.mxu0 0
        %719 = vmatpush2.bf16.xpose.msra.mxu0 0
        %720 = vmatprep.subr.bf16.mxu0 0
        %721 = vmatpush2.bf16.xpose.msra.mxu0 0
        %722 = vmatprep.subr.bf16.mxu0 0
        %723 = vmatpush2.bf16.xpose.msra.mxu0 0
        %724 = vmatprep.subr.bf16.mxu0 0
        %725 = vmatpush2.bf16.xpose.msra.mxu0 0
        %726 = vmatprep.subr.bf16.mxu0 0
        %727 = vmatpush2.bf16.xpose.msra.mxu0 0
        %728 = vmatprep.subr.bf16.mxu0 0
        %729 = vmatpush2.bf16.xpose.msra.mxu0 0
        %730 = vmatprep.subr.bf16.mxu0 0
        %731 = vmatpush2.bf16.xpose.msra.mxu0 0
        %732 = vmatprep.subr.bf16.mxu0 0
        %733 = vmatpush2.bf16.xpose.msra.mxu0 0
        %734 = vmatprep.mubr.bf16.mxu0 0
        %735 = vmatmul.mubr.bf16.gmra.mxu0 %v697
        %v736 = vpop.f32.mrf.mxu0
        %v737 = vadd.f32 0.0, %v736
        %v738 = vpop.f32.mrf.mxu0
        %v739 = vpop.f32.mrf.mxu0
        %v740 = vpop.f32.mrf.mxu0
        %741 = vdwg.mxu0
        %743 = vrot.lane.b32.xlu0 %v593, 96
        %v744 = vpop.permute.xlu0 %743
        %v746 = vsel %vm597, %v593, 0
        %v749 = vsel %vm597, %v744, 0
        %751 = vmatprep.subr.bf16.mxu0 0
        %752 = vmatpush1.bf16.xpose.msra.mxu0 0
        %753 = vmatprep.subr.bf16.mxu0 0
        %754 = vmatpush1.bf16.xpose.msra.mxu0 0
        %755 = vmatprep.subr.bf16.mxu0 0
        %756 = vmatpush1.bf16.xpose.msra.mxu0 0
        %757 = vmatprep.subr.bf16.mxu0 0
        %758 = vmatpush1.bf16.xpose.msra.mxu0 0
        %759 = vmatprep.subr.bf16.mxu0 0
        %760 = vmatpush1.bf16.xpose.msra.mxu0 0
        %761 = vmatprep.subr.bf16.mxu0 0
        %762 = vmatpush1.bf16.xpose.msra.mxu0 0
        %763 = vmatprep.subr.bf16.mxu0 0
        %764 = vmatpush1.bf16.xpose.msra.mxu0 0
        %765 = vmatprep.subr.bf16.mxu0 0
        %766 = vmatpush1.bf16.xpose.msra.mxu0 %v749
        %767 = vmatprep.subr.bf16.mxu0 0
        %768 = vmatpush2.bf16.xpose.msra.mxu0 0
        %769 = vmatprep.subr.bf16.mxu0 0
        %770 = vmatpush2.bf16.xpose.msra.mxu0 0
        %771 = vmatprep.subr.bf16.mxu0 0
        %772 = vmatpush2.bf16.xpose.msra.mxu0 0
        %773 = vmatprep.subr.bf16.mxu0 0
        %774 = vmatpush2.bf16.xpose.msra.mxu0 0
        %775 = vmatprep.subr.bf16.mxu0 0
        %776 = vmatpush2.bf16.xpose.msra.mxu0 0
        %777 = vmatprep.subr.bf16.mxu0 0
        %778 = vmatpush2.bf16.xpose.msra.mxu0 0
        %779 = vmatprep.subr.bf16.mxu0 0
        %780 = vmatpush2.bf16.xpose.msra.mxu0 0
        %781 = vmatprep.subr.bf16.mxu0 0
        %782 = vmatpush2.bf16.xpose.msra.mxu0 0
        %783 = vmatprep.mubr.bf16.mxu0 0
        %784 = vmatmul.mubr.bf16.gmra.mxu0 %v746
        %v785 = vpop.f32.mrf.mxu0
        %v786 = vadd.f32 0.0, %v785
        %v787 = vpop.f32.mrf.mxu0
        %v788 = vpop.f32.mrf.mxu0
        %v789 = vpop.f32.mrf.mxu0
        %790 = vdwg.mxu0
        %v791 = vsel %vm597, %v639, -inf
        %792 = vmax.xlane.f32.xlu0 %v791
        %v793 = vpop.xlane.xlu0 %792
        %v794 = vsel %vm597, %v688, -inf
        %795 = vmax.xlane.f32.xlu0 %v794
        %v796 = vpop.xlane.xlu0 %795
        %v797 = vsel %vm597, %v737, -inf
        %798 = vmax.xlane.f32.xlu0 %v797
        %v799 = vpop.xlane.xlu0 %798
        %v800 = vsel %vm597, %v786, -inf
        %801 = vmax.xlane.f32.xlu0 %v800
        %v802 = vpop.xlane.xlu0 %801
        %v803 = vsub.f32 %v639, %v793
        %v804 = vsub.f32 %v688, %v796
        %v805 = vsub.f32 %v737, %v799
        %v806 = vsub.f32 %v786, %v802
        %v807 = vmul.f32 %v803, 1.442695
        %v808 = vpow.pop %v807
        %v809 = vmul.f32 %v804, 1.442695
        %v810 = vpow.pop %v809
        %v811 = vmul.f32 %v805, 1.442695
        %v812 = vpow.pop %v811
        %v813 = vmul.f32 %v806, 1.442695
        %v814 = vpow.pop %v813
        %v815 = vsel %vm597, %v808, 0.0
        %816 = vadd.xlane.f32.xlu0 %v815
        %v817 = vpop.xlane.xlu0 %816
        %v818 = vsel %vm597, %v810, 0.0
        %819 = vadd.xlane.f32.xlu0 %v818
        %v820 = vpop.xlane.xlu0 %819
        %v821 = vsel %vm597, %v812, 0.0
        %822 = vadd.xlane.f32.xlu0 %v821
        %v823 = vpop.xlane.xlu0 %822
        %v824 = vsel %vm597, %v814, 0.0
        %825 = vadd.xlane.f32.xlu0 %v824
        %v826 = vpop.xlane.xlu0 %825
        %v827 = vrcp.pop %v817
        %v828 = vrcp.pop %v820
        %v829 = vrcp.pop %v823
        %v830 = vrcp.pop %v826
        %v831 = vmul.f32 %v808, %v827
        %v832 = vmul.f32 %v810, %v828
        %v833 = vmul.f32 %v812, %v829
        %v834 = vmul.f32 %v814, %v830
        %v835 = vmul.f32 %v831, 0.25
        %v836 = vmul.f32 %v832, 0.25
        %v837 = vmul.f32 %v833, 0.25
        %v838 = vmul.f32 %v834, 0.25
        %839 = vst.msk [vmem:[%s496] sm:$0xff] %vm597, %v835
        %840 = vst.msk [vmem:[%s496 + $0x8] sm:$0xff] %vm597, %v836
        %841 = vst.msk [vmem:[%s496 + $0x10] sm:$0xff] %vm597, %v837
        %842 = vst.msk [vmem:[%s496 + $0x18] sm:$0xff] %vm597, %v838
        %v843 = vpack.c.bf16 %v831, %v831
        %v844 = vpack.c.bf16 %v832, %v832
        %v845 = vpack.c.bf16 %v833, %v833
        %v846 = vpack.c.bf16 %v834, %v834
        %847 = vrot.lane.b32.xlu0 %v590, 64
        %v848 = vpop.permute.xlu0 %847
        %v850 = vsel %vm597, %v843, 0
        %vm852 = vcmask 1043456
        %v854 = vsel %vm852, %v848, 0
        %856 = vmatprep.subr.bf16.mxu0 0
        %857 = vmatpush1.bf16.msra.mxu0 0
        %858 = vmatprep.subr.bf16.mxu0 0
        %859 = vmatpush1.bf16.msra.mxu0 0
        %860 = vmatprep.subr.bf16.mxu0 0
        %861 = vmatpush1.bf16.msra.mxu0 0
        %862 = vmatprep.subr.bf16.mxu0 0
        %863 = vmatpush1.bf16.msra.mxu0 0
        %864 = vmatprep.subr.bf16.mxu0 0
        %865 = vmatpush1.bf16.msra.mxu0 0
        %866 = vmatprep.subr.bf16.mxu0 0
        %867 = vmatpush1.bf16.msra.mxu0 0
        %868 = vmatprep.subr.bf16.mxu0 0
        %869 = vmatpush1.bf16.msra.mxu0 0
        %870 = vmatprep.subr.bf16.mxu0 0
        %871 = vmatpush1.bf16.msra.mxu0 %v854
        %872 = vmatprep.subr.bf16.mxu0 0
        %873 = vmatpush2.bf16.msra.mxu0 0
        %874 = vmatprep.subr.bf16.mxu0 0
        %875 = vmatpush2.bf16.msra.mxu0 0
        %876 = vmatprep.subr.bf16.mxu0 0
        %877 = vmatpush2.bf16.msra.mxu0 0
        %878 = vmatprep.subr.bf16.mxu0 0
        %879 = vmatpush2.bf16.msra.mxu0 0
        %880 = vmatprep.subr.bf16.mxu0 0
        %881 = vmatpush2.bf16.msra.mxu0 0
        %882 = vmatprep.subr.bf16.mxu0 0
        %883 = vmatpush2.bf16.msra.mxu0 0
        %884 = vmatprep.subr.bf16.mxu0 0
        %885 = vmatpush2.bf16.msra.mxu0 0
        %886 = vmatprep.subr.bf16.mxu0 0
        %887 = vmatpush2.bf16.msra.mxu0 0
        %888 = vmatprep.mubr.bf16.mxu0 0
        %889 = vmatmul.mubr.bf16.gmra.mxu0 %v850
        %v890 = vpop.f32.mrf.mxu0
        %v891 = vadd.f32 0.0, %v890
        %v892 = vpop.f32.mrf.mxu0
        %v893 = vpop.f32.mrf.mxu0
        %v894 = vpop.f32.mrf.mxu0
        %895 = vdwg.mxu0
        %896 = vrot.lane.b32.xlu0 %v591, 64
        %v897 = vpop.permute.xlu0 %896
        %v899 = vsel %vm597, %v844, 0
        %v902 = vsel %vm852, %v897, 0
        %904 = vmatprep.subr.bf16.mxu0 0
        %905 = vmatpush1.bf16.msra.mxu0 0
        %906 = vmatprep.subr.bf16.mxu0 0
        %907 = vmatpush1.bf16.msra.mxu0 0
        %908 = vmatprep.subr.bf16.mxu0 0
        %909 = vmatpush1.bf16.msra.mxu0 0
        %910 = vmatprep.subr.bf16.mxu0 0
        %911 = vmatpush1.bf16.msra.mxu0 0
        %912 = vmatprep.subr.bf16.mxu0 0
        %913 = vmatpush1.bf16.msra.mxu0 0
        %914 = vmatprep.subr.bf16.mxu0 0
        %915 = vmatpush1.bf16.msra.mxu0 0
        %916 = vmatprep.subr.bf16.mxu0 0
        %917 = vmatpush1.bf16.msra.mxu0 0
        %918 = vmatprep.subr.bf16.mxu0 0
        %919 = vmatpush1.bf16.msra.mxu0 %v902
        %920 = vmatprep.subr.bf16.mxu0 0
        %921 = vmatpush2.bf16.msra.mxu0 0
        %922 = vmatprep.subr.bf16.mxu0 0
        %923 = vmatpush2.bf16.msra.mxu0 0
        %924 = vmatprep.subr.bf16.mxu0 0
        %925 = vmatpush2.bf16.msra.mxu0 0
        %926 = vmatprep.subr.bf16.mxu0 0
        %927 = vmatpush2.bf16.msra.mxu0 0
        %928 = vmatprep.subr.bf16.mxu0 0
        %929 = vmatpush2.bf16.msra.mxu0 0
        %930 = vmatprep.subr.bf16.mxu0 0
        %931 = vmatpush2.bf16.msra.mxu0 0
        %932 = vmatprep.subr.bf16.mxu0 0
        %933 = vmatpush2.bf16.msra.mxu0 0
        %934 = vmatprep.subr.bf16.mxu0 0
        %935 = vmatpush2.bf16.msra.mxu0 0
        %936 = vmatprep.mubr.bf16.mxu0 0
        %937 = vmatmul.mubr.bf16.gmra.mxu0 %v899
        %v938 = vpop.f32.mrf.mxu0
        %v939 = vadd.f32 0.0, %v938
        %v940 = vpop.f32.mrf.mxu0
        %v941 = vpop.f32.mrf.mxu0
        %v942 = vpop.f32.mrf.mxu0
        %943 = vdwg.mxu0
        %944 = vrot.lane.b32.xlu0 %v592, 64
        %v945 = vpop.permute.xlu0 %944
        %v947 = vsel %vm597, %v845, 0
        %v950 = vsel %vm852, %v945, 0
        %952 = vmatprep.subr.bf16.mxu0 0
        %953 = vmatpush1.bf16.msra.mxu0 0
        %954 = vmatprep.subr.bf16.mxu0 0
        %955 = vmatpush1.bf16.msra.mxu0 0
        %956 = vmatprep.subr.bf16.mxu0 0
        %957 = vmatpush1.bf16.msra.mxu0 0
        %958 = vmatprep.subr.bf16.mxu0 0
        %959 = vmatpush1.bf16.msra.mxu0 0
        %960 = vmatprep.subr.bf16.mxu0 0
        %961 = vmatpush1.bf16.msra.mxu0 0
        %962 = vmatprep.subr.bf16.mxu0 0
        %963 = vmatpush1.bf16.msra.mxu0 0
        %964 = vmatprep.subr.bf16.mxu0 0
        %965 = vmatpush1.bf16.msra.mxu0 0
        %966 = vmatprep.subr.bf16.mxu0 0
        %967 = vmatpush1.bf16.msra.mxu0 %v950
        %968 = vmatprep.subr.bf16.mxu0 0
        %969 = vmatpush2.bf16.msra.mxu0 0
        %970 = vmatprep.subr.bf16.mxu0 0
        %971 = vmatpush2.bf16.msra.mxu0 0
        %972 = vmatprep.subr.bf16.mxu0 0
        %973 = vmatpush2.bf16.msra.mxu0 0
        %974 = vmatprep.subr.bf16.mxu0 0
        %975 = vmatpush2.bf16.msra.mxu0 0
        %976 = vmatprep.subr.bf16.mxu0 0
        %977 = vmatpush2.bf16.msra.mxu0 0
        %978 = vmatprep.subr.bf16.mxu0 0
        %979 = vmatpush2.bf16.msra.mxu0 0
        %980 = vmatprep.subr.bf16.mxu0 0
        %981 = vmatpush2.bf16.msra.mxu0 0
        %982 = vmatprep.subr.bf16.mxu0 0
        %983 = vmatpush2.bf16.msra.mxu0 0
        %984 = vmatprep.mubr.bf16.mxu0 0
        %985 = vmatmul.mubr.bf16.gmra.mxu0 %v947
        %v986 = vpop.f32.mrf.mxu0
        %v987 = vadd.f32 0.0, %v986
        %v988 = vpop.f32.mrf.mxu0
        %v989 = vpop.f32.mrf.mxu0
        %v990 = vpop.f32.mrf.mxu0
        %991 = vdwg.mxu0
        %992 = vrot.lane.b32.xlu0 %v593, 64
        %v993 = vpop.permute.xlu0 %992
        %v995 = vsel %vm597, %v846, 0
        %v998 = vsel %vm852, %v993, 0
        %1000 = vmatprep.subr.bf16.mxu0 0
        %1001 = vmatpush1.bf16.msra.mxu0 0
        %1002 = vmatprep.subr.bf16.mxu0 0
        %1003 = vmatpush1.bf16.msra.mxu0 0
        %1004 = vmatprep.subr.bf16.mxu0 0
        %1005 = vmatpush1.bf16.msra.mxu0 0
        %1006 = vmatprep.subr.bf16.mxu0 0
        %1007 = vmatpush1.bf16.msra.mxu0 0
        %1008 = vmatprep.subr.bf16.mxu0 0
        %1009 = vmatpush1.bf16.msra.mxu0 0
        %1010 = vmatprep.subr.bf16.mxu0 0
        %1011 = vmatpush1.bf16.msra.mxu0 0
        %1012 = vmatprep.subr.bf16.mxu0 0
        %1013 = vmatpush1.bf16.msra.mxu0 0
        %1014 = vmatprep.subr.bf16.mxu0 0
        %1015 = vmatpush1.bf16.msra.mxu0 %v998
        %1016 = vmatprep.subr.bf16.mxu0 0
        %1017 = vmatpush2.bf16.msra.mxu0 0
        %1018 = vmatprep.subr.bf16.mxu0 0
        %1019 = vmatpush2.bf16.msra.mxu0 0
        %1020 = vmatprep.subr.bf16.mxu0 0
        %1021 = vmatpush2.bf16.msra.mxu0 0
        %1022 = vmatprep.subr.bf16.mxu0 0
        %1023 = vmatpush2.bf16.msra.mxu0 0
        %1024 = vmatprep.subr.bf16.mxu0 0
        %1025 = vmatpush2.bf16.msra.mxu0 0
        %1026 = vmatprep.subr.bf16.mxu0 0
        %1027 = vmatpush2.bf16.msra.mxu0 0
        %1028 = vmatprep.subr.bf16.mxu0 0
        %1029 = vmatpush2.bf16.msra.mxu0 0
        %1030 = vmatprep.subr.bf16.mxu0 0
        %1031 = vmatpush2.bf16.msra.mxu0 0
        %1032 = vmatprep.mubr.bf16.mxu0 0
        %1033 = vmatmul.mubr.bf16.gmra.mxu0 %v995
        %v1034 = vpop.f32.mrf.mxu0
        %v1035 = vadd.f32 0.0, %v1034
        %v1036 = vpop.f32.mrf.mxu0
        %v1037 = vpop.f32.mrf.mxu0
        %v1038 = vpop.f32.mrf.mxu0
        %1039 = vdwg.mxu0
        %v1040 = vpack.c.bf16 %v939, %v891
        %v1041 = vpack.c.bf16 %v1035, %v987
        %1042 = vrot.lane.b32.xlu0 %v590, 120
        %v1043 = vpop.permute.xlu0 %1042
        %1044 = vrot.lane.b32.xlu0 %v590, 88
        %v1045 = vpop.permute.xlu0 %1044
        %v1047 = vsel %vm597, %v1043, 0
        %v1050 = vsel %vm597, %v1045, 0
        %1052 = vmatprep.subr.bf16.mxu0 0
        %1053 = vmatpush1.bf16.xpose.msra.mxu0 0
        %1054 = vmatprep.subr.bf16.mxu0 0
        %1055 = vmatpush1.bf16.xpose.msra.mxu0 0
        %1056 = vmatprep.subr.bf16.mxu0 0
        %1057 = vmatpush1.bf16.xpose.msra.mxu0 0
        %1058 = vmatprep.subr.bf16.mxu0 0
        %1059 = vmatpush1.bf16.xpose.msra.mxu0 0
        %1060 = vmatprep.subr.bf16.mxu0 0
        %1061 = vmatpush1.bf16.xpose.msra.mxu0 0
        %1062 = vmatprep.subr.bf16.mxu0 0
        %1063 = vmatpush1.bf16.xpose.msra.mxu0 0
        %1064 = vmatprep.subr.bf16.mxu0 0
        %1065 = vmatpush1.bf16.xpose.msra.mxu0 0
        %1066 = vmatprep.subr.bf16.mxu0 0
        %1067 = vmatpush1.bf16.xpose.msra.mxu0 %v1050
        %1068 = vmatprep.subr.bf16.mxu0 0
        %1069 = vmatpush2.bf16.xpose.msra.mxu0 0
        %1070 = vmatprep.subr.bf16.mxu0 0
        %1071 = vmatpush2.bf16.xpose.msra.mxu0 0
        %1072 = vmatprep.subr.bf16.mxu0 0
        %1073 = vmatpush2.bf16.xpose.msra.mxu0 0
        %1074 = vmatprep.subr.bf16.mxu0 0
        %1075 = vmatpush2.bf16.xpose.msra.mxu0 0
        %1076 = vmatprep.subr.bf16.mxu0 0
        %1077 = vmatpush2.bf16.xpose.msra.mxu0 0
        %1078 = vmatprep.subr.bf16.mxu0 0
        %1079 = vmatpush2.bf16.xpose.msra.mxu0 0
        %1080 = vmatprep.subr.bf16.mxu0 0
        %1081 = vmatpush2.bf16.xpose.msra.mxu0 0
        %1082 = vmatprep.subr.bf16.mxu0 0
        %1083 = vmatpush2.bf16.xpose.msra.mxu0 0
        %1084 = vmatprep.mubr.bf16.mxu0 0
        %1085 = vmatmul.mubr.bf16.gmra.mxu0 %v1047
        %v1086 = vpop.f32.mrf.mxu0
        %v1087 = vadd.f32 0.0, %v1086
        %v1088 = vpop.f32.mrf.mxu0
        %v1089 = vpop.f32.mrf.mxu0
        %v1090 = vpop.f32.mrf.mxu0
        %1091 = vdwg.mxu0
        %1092 = vrot.lane.b32.xlu0 %v591, 120
        %v1093 = vpop.permute.xlu0 %1092
        %1094 = vrot.lane.b32.xlu0 %v591, 88
        %v1095 = vpop.permute.xlu0 %1094
        %v1097 = vsel %vm597, %v1093, 0
        %v1100 = vsel %vm597, %v1095, 0
        %1102 = vmatprep.subr.bf16.mxu0 0
        %1103 = vmatpush1.bf16.xpose.msra.mxu0 0
        %1104 = vmatprep.subr.bf16.mxu0 0
        %1105 = vmatpush1.bf16.xpose.msra.mxu0 0
        %1106 = vmatprep.subr.bf16.mxu0 0
        %1107 = vmatpush1.bf16.xpose.msra.mxu0 0
        %1108 = vmatprep.subr.bf16.mxu0 0
        %1109 = vmatpush1.bf16.xpose.msra.mxu0 0
        %1110 = vmatprep.subr.bf16.mxu0 0
        %1111 = vmatpush1.bf16.xpose.msra.mxu0 0
        %1112 = vmatprep.subr.bf16.mxu0 0
        %1113 = vmatpush1.bf16.xpose.msra.mxu0 0
        %1114 = vmatprep.subr.bf16.mxu0 0
        %1115 = vmatpush1.bf16.xpose.msra.mxu0 0
        %1116 = vmatprep.subr.bf16.mxu0 0
        %1117 = vmatpush1.bf16.xpose.msra.mxu0 %v1100
        %1118 = vmatprep.subr.bf16.mxu0 0
        %1119 = vmatpush2.bf16.xpose.msra.mxu0 0
        %1120 = vmatprep.subr.bf16.mxu0 0
        %1121 = vmatpush2.bf16.xpose.msra.mxu0 0
        %1122 = vmatprep.subr.bf16.mxu0 0
        %1123 = vmatpush2.bf16.xpose.msra.mxu0 0
        %1124 = vmatprep.subr.bf16.mxu0 0
        %1125 = vmatpush2.bf16.xpose.msra.mxu0 0
        %1126 = vmatprep.subr.bf16.mxu0 0
        %1127 = vmatpush2.bf16.xpose.msra.mxu0 0
        %1128 = vmatprep.subr.bf16.mxu0 0
        %1129 = vmatpush2.bf16.xpose.msra.mxu0 0
        %1130 = vmatprep.subr.bf16.mxu0 0
        %1131 = vmatpush2.bf16.xpose.msra.mxu0 0
        %1132 = vmatprep.subr.bf16.mxu0 0
        %1133 = vmatpush2.bf16.xpose.msra.mxu0 0
        %1134 = vmatprep.mubr.bf16.mxu0 0
        %1135 = vmatmul.mubr.bf16.gmra.mxu0 %v1097
        %v1136 = vpop.f32.mrf.mxu0
        %v1137 = vadd.f32 0.0, %v1136
        %v1138 = vpop.f32.mrf.mxu0
        %v1139 = vpop.f32.mrf.mxu0
        %v1140 = vpop.f32.mrf.mxu0
        %1141 = vdwg.mxu0
        %1142 = vrot.lane.b32.xlu0 %v592, 120
        %v1143 = vpop.permute.xlu0 %1142
        %1144 = vrot.lane.b32.xlu0 %v592, 88
        %v1145 = vpop.permute.xlu0 %1144
        %v1147 = vsel %vm597, %v1143, 0
        %v1150 = vsel %vm597, %v1145, 0
        %1152 = vmatprep.subr.bf16.mxu0 0
        %1153 = vmatpush1.bf16.xpose.msra.mxu0 0
        %1154 = vmatprep.subr.bf16.mxu0 0
        %1155 = vmatpush1.bf16.xpose.msra.mxu0 0
        %1156 = vmatprep.subr.bf16.mxu0 0
        %1157 = vmatpush1.bf16.xpose.msra.mxu0 0
        %1158 = vmatprep.subr.bf16.mxu0 0
        %1159 = vmatpush1.bf16.xpose.msra.mxu0 0
        %1160 = vmatprep.subr.bf16.mxu0 0
        %1161 = vmatpush1.bf16.xpose.msra.mxu0 0
        %1162 = vmatprep.subr.bf16.mxu0 0
        %1163 = vmatpush1.bf16.xpose.msra.mxu0 0
        %1164 = vmatprep.subr.bf16.mxu0 0
        %1165 = vmatpush1.bf16.xpose.msra.mxu0 0
        %1166 = vmatprep.subr.bf16.mxu0 0
        %1167 = vmatpush1.bf16.xpose.msra.mxu0 %v1150
        %1168 = vmatprep.subr.bf16.mxu0 0
        %1169 = vmatpush2.bf16.xpose.msra.mxu0 0
        %1170 = vmatprep.subr.bf16.mxu0 0
        %1171 = vmatpush2.bf16.xpose.msra.mxu0 0
        %1172 = vmatprep.subr.bf16.mxu0 0
        %1173 = vmatpush2.bf16.xpose.msra.mxu0 0
        %1174 = vmatprep.subr.bf16.mxu0 0
        %1175 = vmatpush2.bf16.xpose.msra.mxu0 0
        %1176 = vmatprep.subr.bf16.mxu0 0
        %1177 = vmatpush2.bf16.xpose.msra.mxu0 0
        %1178 = vmatprep.subr.bf16.mxu0 0
        %1179 = vmatpush2.bf16.xpose.msra.mxu0 0
        %1180 = vmatprep.subr.bf16.mxu0 0
        %1181 = vmatpush2.bf16.xpose.msra.mxu0 0
        %1182 = vmatprep.subr.bf16.mxu0 0
        %1183 = vmatpush2.bf16.xpose.msra.mxu0 0
        %1184 = vmatprep.mubr.bf16.mxu0 0
        %1185 = vmatmul.mubr.bf16.gmra.mxu0 %v1147
        %v1186 = vpop.f32.mrf.mxu0
        %v1187 = vadd.f32 0.0, %v1186
        %v1188 = vpop.f32.mrf.mxu0
        %v1189 = vpop.f32.mrf.mxu0
        %v1190 = vpop.f32.mrf.mxu0
        %1191 = vdwg.mxu0
        %1192 = vrot.lane.b32.xlu0 %v593, 120
        %v1193 = vpop.permute.xlu0 %1192
        %1194 = vrot.lane.b32.xlu0 %v593, 88
        %v1195 = vpop.permute.xlu0 %1194
        %v1197 = vsel %vm597, %v1193, 0
        %v1200 = vsel %vm597, %v1195, 0
        %1202 = vmatprep.subr.bf16.mxu0 0
        %1203 = vmatpush1.bf16.xpose.msra.mxu0 0
        %1204 = vmatprep.subr.bf16.mxu0 0
        %1205 = vmatpush1.bf16.xpose.msra.mxu0 0
        %1206 = vmatprep.subr.bf16.mxu0 0
        %1207 = vmatpush1.bf16.xpose.msra.mxu0 0
        %1208 = vmatprep.subr.bf16.mxu0 0
        %1209 = vmatpush1.bf16.xpose.msra.mxu0 0
        %1210 = vmatprep.subr.bf16.mxu0 0
        %1211 = vmatpush1.bf16.xpose.msra.mxu0 0
        %1212 = vmatprep.subr.bf16.mxu0 0
        %1213 = vmatpush1.bf16.xpose.msra.mxu0 0
        %1214 = vmatprep.subr.bf16.mxu0 0
        %1215 = vmatpush1.bf16.xpose.msra.mxu0 0
        %1216 = vmatprep.subr.bf16.mxu0 0
        %1217 = vmatpush1.bf16.xpose.msra.mxu0 %v1200
        %1218 = vmatprep.subr.bf16.mxu0 0
        %1219 = vmatpush2.bf16.xpose.msra.mxu0 0
        %1220 = vmatprep.subr.bf16.mxu0 0
        %1221 = vmatpush2.bf16.xpose.msra.mxu0 0
        %1222 = vmatprep.subr.bf16.mxu0 0
        %1223 = vmatpush2.bf16.xpose.msra.mxu0 0
        %1224 = vmatprep.subr.bf16.mxu0 0
        %1225 = vmatpush2.bf16.xpose.msra.mxu0 0
        %1226 = vmatprep.subr.bf16.mxu0 0
        %1227 = vmatpush2.bf16.xpose.msra.mxu0 0
        %1228 = vmatprep.subr.bf16.mxu0 0
        %1229 = vmatpush2.bf16.xpose.msra.mxu0 0
        %1230 = vmatprep.subr.bf16.mxu0 0
        %1231 = vmatpush2.bf16.xpose.msra.mxu0 0
        %1232 = vmatprep.subr.bf16.mxu0 0
        %1233 = vmatpush2.bf16.xpose.msra.mxu0 0
        %1234 = vmatprep.mubr.bf16.mxu0 0
        %1235 = vmatmul.mubr.bf16.gmra.mxu0 %v1197
        %v1236 = vpop.f32.mrf.mxu0
        %v1237 = vadd.f32 0.0, %v1236
        %v1238 = vpop.f32.mrf.mxu0
        %v1239 = vpop.f32.mrf.mxu0
        %v1240 = vpop.f32.mrf.mxu0
        %1241 = vdwg.mxu0
        %v1242 = vsel %vm597, %v1087, -inf
        %1243 = vmax.xlane.f32.xlu0 %v1242
        %v1244 = vpop.xlane.xlu0 %1243
        %v1245 = vsel %vm597, %v1137, -inf
        %1246 = vmax.xlane.f32.xlu0 %v1245
        %v1247 = vpop.xlane.xlu0 %1246
        %v1248 = vsel %vm597, %v1187, -inf
        %1249 = vmax.xlane.f32.xlu0 %v1248
        %v1250 = vpop.xlane.xlu0 %1249
        %v1251 = vsel %vm597, %v1237, -inf
        %1252 = vmax.xlane.f32.xlu0 %v1251
        %v1253 = vpop.xlane.xlu0 %1252
        %v1254 = vsub.f32 %v1087, %v1244
        %v1255 = vsub.f32 %v1137, %v1247
        %v1256 = vsub.f32 %v1187, %v1250
        %v1257 = vsub.f32 %v1237, %v1253
        %v1258 = vmul.f32 %v1254, 1.442695
        %v1259 = vpow.pop %v1258
        %v1260 = vmul.f32 %v1255, 1.442695
        %v1261 = vpow.pop %v1260
        %v1262 = vmul.f32 %v1256, 1.442695
        %v1263 = vpow.pop %v1262
        %v1264 = vmul.f32 %v1257, 1.442695
        %v1265 = vpow.pop %v1264
        %v1266 = vsel %vm597, %v1259, 0.0
        %1267 = vadd.xlane.f32.xlu0 %v1266
        %v1268 = vpop.xlane.xlu0 %1267
        %v1269 = vsel %vm597, %v1261, 0.0
        %1270 = vadd.xlane.f32.xlu0 %v1269
        %v1271 = vpop.xlane.xlu0 %1270
        %v1272 = vsel %vm597, %v1263, 0.0
        %1273 = vadd.xlane.f32.xlu0 %v1272
        %v1274 = vpop.xlane.xlu0 %1273
        %v1275 = vsel %vm597, %v1265, 0.0
        %1276 = vadd.xlane.f32.xlu0 %v1275
        %v1277 = vpop.xlane.xlu0 %1276
        %v1278 = vrcp.pop %v1268
        %v1279 = vrcp.pop %v1271
        %v1280 = vrcp.pop %v1274
        %v1281 = vrcp.pop %v1277
        %v1282 = vmul.f32 %v1259, %v1278
        %v1283 = vmul.f32 %v1261, %v1279
        %v1284 = vmul.f32 %v1263, %v1280
        %v1285 = vmul.f32 %v1265, %v1281
        %v1286 = vld [vmem:[%s496] sm:$0xff]
        %v1287 = vld [vmem:[%s496 + $0x8] sm:$0xff]
        %v1288 = vld [vmem:[%s496 + $0x10] sm:$0xff]
        %v1289 = vld [vmem:[%s496 + $0x18] sm:$0xff]
        %v1290 = vmul.f32 %v1282, 0.25
        %v1291 = vmul.f32 %v1283, 0.25
        %v1292 = vmul.f32 %v1284, 0.25
        %v1293 = vmul.f32 %v1285, 0.25
        %v1294 = vadd.f32 %v1286, %v1290
        %v1295 = vadd.f32 %v1287, %v1291
        %v1296 = vadd.f32 %v1288, %v1292
        %v1297 = vadd.f32 %v1289, %v1293
        %1298 = vst.msk [vmem:[%s496] sm:$0xff] %vm597, %v1294
        %1299 = vst.msk [vmem:[%s496 + $0x8] sm:$0xff] %vm597, %v1295
        %1300 = vst.msk [vmem:[%s496 + $0x10] sm:$0xff] %vm597, %v1296
        %1301 = vst.msk [vmem:[%s496 + $0x18] sm:$0xff] %vm597, %v1297
        %v1302 = vpack.c.bf16 %v1282, %v1282
        %v1303 = vpack.c.bf16 %v1283, %v1283
        %v1304 = vpack.c.bf16 %v1284, %v1284
        %v1305 = vpack.c.bf16 %v1285, %v1285
        %1306 = vrot.lane.b32.xlu0 %v590, 56
        %v1307 = vpop.permute.xlu0 %1306
        %v1309 = vsel %vm597, %v1302, 0
        %v1312 = vsel %vm852, %v1307, 0
        %1314 = vmatprep.subr.bf16.mxu0 0
        %1315 = vmatpush1.bf16.msra.mxu0 0
        %1316 = vmatprep.subr.bf16.mxu0 0
        %1317 = vmatpush1.bf16.msra.mxu0 0
        %1318 = vmatprep.subr.bf16.mxu0 0
        %1319 = vmatpush1.bf16.msra.mxu0 0
        %1320 = vmatprep.subr.bf16.mxu0 0
        %1321 = vmatpush1.bf16.msra.mxu0 0
        %1322 = vmatprep.subr.bf16.mxu0 0
        %1323 = vmatpush1.bf16.msra.mxu0 0
        %1324 = vmatprep.subr.bf16.mxu0 0
        %1325 = vmatpush1.bf16.msra.mxu0 0
        %1326 = vmatprep.subr.bf16.mxu0 0
        %1327 = vmatpush1.bf16.msra.mxu0 0
        %1328 = vmatprep.subr.bf16.mxu0 0
        %1329 = vmatpush1.bf16.msra.mxu0 %v1312
        %1330 = vmatprep.subr.bf16.mxu0 0
        %1331 = vmatpush2.bf16.msra.mxu0 0
        %1332 = vmatprep.subr.bf16.mxu0 0
        %1333 = vmatpush2.bf16.msra.mxu0 0
        %1334 = vmatprep.subr.bf16.mxu0 0
        %1335 = vmatpush2.bf16.msra.mxu0 0
        %1336 = vmatprep.subr.bf16.mxu0 0
        %1337 = vmatpush2.bf16.msra.mxu0 0
        %1338 = vmatprep.subr.bf16.mxu0 0
        %1339 = vmatpush2.bf16.msra.mxu0 0
        %1340 = vmatprep.subr.bf16.mxu0 0
        %1341 = vmatpush2.bf16.msra.mxu0 0
        %1342 = vmatprep.subr.bf16.mxu0 0
        %1343 = vmatpush2.bf16.msra.mxu0 0
        %1344 = vmatprep.subr.bf16.mxu0 0
        %1345 = vmatpush2.bf16.msra.mxu0 0
        %1346 = vmatprep.mubr.bf16.mxu0 0
        %1347 = vmatmul.mubr.bf16.gmra.mxu0 %v1309
        %v1348 = vpop.f32.mrf.mxu0
        %v1349 = vadd.f32 0.0, %v1348
        %v1350 = vpop.f32.mrf.mxu0
        %v1351 = vpop.f32.mrf.mxu0
        %v1352 = vpop.f32.mrf.mxu0
        %1353 = vdwg.mxu0
        %1354 = vrot.lane.b32.xlu0 %v591, 56
        %v1355 = vpop.permute.xlu0 %1354
        %v1357 = vsel %vm597, %v1303, 0
        %v1360 = vsel %vm852, %v1355, 0
        %1362 = vmatprep.subr.bf16.mxu0 0
        %1363 = vmatpush1.bf16.msra.mxu0 0
        %1364 = vmatprep.subr.bf16.mxu0 0
        %1365 = vmatpush1.bf16.msra.mxu0 0
        %1366 = vmatprep.subr.bf16.mxu0 0
        %1367 = vmatpush1.bf16.msra.mxu0 0
        %1368 = vmatprep.subr.bf16.mxu0 0
        %1369 = vmatpush1.bf16.msra.mxu0 0
        %1370 = vmatprep.subr.bf16.mxu0 0
        %1371 = vmatpush1.bf16.msra.mxu0 0
        %1372 = vmatprep.subr.bf16.mxu0 0
        %1373 = vmatpush1.bf16.msra.mxu0 0
        %1374 = vmatprep.subr.bf16.mxu0 0
        %1375 = vmatpush1.bf16.msra.mxu0 0
        %1376 = vmatprep.subr.bf16.mxu0 0
        %1377 = vmatpush1.bf16.msra.mxu0 %v1360
        %1378 = vmatprep.subr.bf16.mxu0 0
        %1379 = vmatpush2.bf16.msra.mxu0 0
        %1380 = vmatprep.subr.bf16.mxu0 0
        %1381 = vmatpush2.bf16.msra.mxu0 0
        %1382 = vmatprep.subr.bf16.mxu0 0
        %1383 = vmatpush2.bf16.msra.mxu0 0
        %1384 = vmatprep.subr.bf16.mxu0 0
        %1385 = vmatpush2.bf16.msra.mxu0 0
        %1386 = vmatprep.subr.bf16.mxu0 0
        %1387 = vmatpush2.bf16.msra.mxu0 0
        %1388 = vmatprep.subr.bf16.mxu0 0
        %1389 = vmatpush2.bf16.msra.mxu0 0
        %1390 = vmatprep.subr.bf16.mxu0 0
        %1391 = vmatpush2.bf16.msra.mxu0 0
        %1392 = vmatprep.subr.bf16.mxu0 0
        %1393 = vmatpush2.bf16.msra.mxu0 0
        %1394 = vmatprep.mubr.bf16.mxu0 0
        %1395 = vmatmul.mubr.bf16.gmra.mxu0 %v1357
        %v1396 = vpop.f32.mrf.mxu0
        %v1397 = vadd.f32 0.0, %v1396
        %v1398 = vpop.f32.mrf.mxu0
        %v1399 = vpop.f32.mrf.mxu0
        %v1400 = vpop.f32.mrf.mxu0
        %1401 = vdwg.mxu0
        %1402 = vrot.lane.b32.xlu0 %v592, 56
        %v1403 = vpop.permute.xlu0 %1402
        %v1405 = vsel %vm597, %v1304, 0
        %v1408 = vsel %vm852, %v1403, 0
        %1410 = vmatprep.subr.bf16.mxu0 0
        %1411 = vmatpush1.bf16.msra.mxu0 0
        %1412 = vmatprep.subr.bf16.mxu0 0
        %1413 = vmatpush1.bf16.msra.mxu0 0
        %1414 = vmatprep.subr.bf16.mxu0 0
        %1415 = vmatpush1.bf16.msra.mxu0 0
        %1416 = vmatprep.subr.bf16.mxu0 0
        %1417 = vmatpush1.bf16.msra.mxu0 0
        %1418 = vmatprep.subr.bf16.mxu0 0
        %1419 = vmatpush1.bf16.msra.mxu0 0
        %1420 = vmatprep.subr.bf16.mxu0 0
        %1421 = vmatpush1.bf16.msra.mxu0 0
        %1422 = vmatprep.subr.bf16.mxu0 0
        %1423 = vmatpush1.bf16.msra.mxu0 0
        %1424 = vmatprep.subr.bf16.mxu0 0
        %1425 = vmatpush1.bf16.msra.mxu0 %v1408
        %1426 = vmatprep.subr.bf16.mxu0 0
        %1427 = vmatpush2.bf16.msra.mxu0 0
        %1428 = vmatprep.subr.bf16.mxu0 0
        %1429 = vmatpush2.bf16.msra.mxu0 0
        %1430 = vmatprep.subr.bf16.mxu0 0
        %1431 = vmatpush2.bf16.msra.mxu0 0
        %1432 = vmatprep.subr.bf16.mxu0 0
        %1433 = vmatpush2.bf16.msra.mxu0 0
        %1434 = vmatprep.subr.bf16.mxu0 0
        %1435 = vmatpush2.bf16.msra.mxu0 0
        %1436 = vmatprep.subr.bf16.mxu0 0
        %1437 = vmatpush2.bf16.msra.mxu0 0
        %1438 = vmatprep.subr.bf16.mxu0 0
        %1439 = vmatpush2.bf16.msra.mxu0 0
        %1440 = vmatprep.subr.bf16.mxu0 0
        %1441 = vmatpush2.bf16.msra.mxu0 0
        %1442 = vmatprep.mubr.bf16.mxu0 0
        %1443 = vmatmul.mubr.bf16.gmra.mxu0 %v1405
        %v1444 = vpop.f32.mrf.mxu0
        %v1445 = vadd.f32 0.0, %v1444
        %v1446 = vpop.f32.mrf.mxu0
        %v1447 = vpop.f32.mrf.mxu0
        %v1448 = vpop.f32.mrf.mxu0
        %1449 = vdwg.mxu0
        %1450 = vrot.lane.b32.xlu0 %v593, 56
        %v1451 = vpop.permute.xlu0 %1450
        %v1453 = vsel %vm597, %v1305, 0
        %v1456 = vsel %vm852, %v1451, 0
        %1458 = vmatprep.subr.bf16.mxu0 0
        %1459 = vmatpush1.bf16.msra.mxu0 0
        %1460 = vmatprep.subr.bf16.mxu0 0
        %1461 = vmatpush1.bf16.msra.mxu0 0
        %1462 = vmatprep.subr.bf16.mxu0 0
        %1463 = vmatpush1.bf16.msra.mxu0 0
        %1464 = vmatprep.subr.bf16.mxu0 0
        %1465 = vmatpush1.bf16.msra.mxu0 0
        %1466 = vmatprep.subr.bf16.mxu0 0
        %1467 = vmatpush1.bf16.msra.mxu0 0
        %1468 = vmatprep.subr.bf16.mxu0 0
        %1469 = vmatpush1.bf16.msra.mxu0 0
        %1470 = vmatprep.subr.bf16.mxu0 0
        %1471 = vmatpush1.bf16.msra.mxu0 0
        %1472 = vmatprep.subr.bf16.mxu0 0
        %1473 = vmatpush1.bf16.msra.mxu0 %v1456
        %1474 = vmatprep.subr.bf16.mxu0 0
        %1475 = vmatpush2.bf16.msra.mxu0 0
        %1476 = vmatprep.subr.bf16.mxu0 0
        %1477 = vmatpush2.bf16.msra.mxu0 0
        %1478 = vmatprep.subr.bf16.mxu0 0
        %1479 = vmatpush2.bf16.msra.mxu0 0
        %1480 = vmatprep.subr.bf16.mxu0 0
        %1481 = vmatpush2.bf16.msra.mxu0 0
        %1482 = vmatprep.subr.bf16.mxu0 0
        %1483 = vmatpush2.bf16.msra.mxu0 0
        %1484 = vmatprep.subr.bf16.mxu0 0
        %1485 = vmatpush2.bf16.msra.mxu0 0
        %1486 = vmatprep.subr.bf16.mxu0 0
        %1487 = vmatpush2.bf16.msra.mxu0 0
        %1488 = vmatprep.subr.bf16.mxu0 0
        %1489 = vmatpush2.bf16.msra.mxu0 0
        %1490 = vmatprep.mubr.bf16.mxu0 0
        %1491 = vmatmul.mubr.bf16.gmra.mxu0 %v1453
        %v1492 = vpop.f32.mrf.mxu0
        %v1493 = vadd.f32 0.0, %v1492
        %v1494 = vpop.f32.mrf.mxu0
        %v1495 = vpop.f32.mrf.mxu0
        %v1496 = vpop.f32.mrf.mxu0
        %1497 = vdwg.mxu0
        %v1498 = vpack.c.bf16 %v1397, %v1349
        %v1499 = vpack.c.bf16 %v1493, %v1445
        %v1501 = vsel %vm597, %v1498, 0
        %v1504 = vsel %vm597, %v1499, 0
        %v1507 = vsel %vm852, %v587, 0
        %1509 = vmatprep.subr.bf16.mxu0 0
        %1510 = vmatpush1.bf16.msra.mxu0 0
        %1511 = vmatprep.subr.bf16.mxu0 0
        %1512 = vmatpush1.bf16.msra.mxu0 0
        %1513 = vmatprep.subr.bf16.mxu0 0
        %1514 = vmatpush1.bf16.msra.mxu0 0
        %1515 = vmatprep.subr.bf16.mxu0 0
        %1516 = vmatpush1.bf16.msra.mxu0 0
        %1517 = vmatprep.subr.bf16.mxu0 0
        %1518 = vmatpush1.bf16.msra.mxu0 0
        %1519 = vmatprep.subr.bf16.mxu0 0
        %1520 = vmatpush1.bf16.msra.mxu0 0
        %1521 = vmatprep.subr.bf16.mxu0 0
        %1522 = vmatpush1.bf16.msra.mxu0 0
        %1523 = vmatprep.subr.bf16.mxu0 0
        %1524 = vmatpush1.bf16.msra.mxu0 %v1507
        %1525 = vmatprep.subr.bf16.mxu0 0
        %1526 = vmatpush2.bf16.msra.mxu0 0
        %1527 = vmatprep.subr.bf16.mxu0 0
        %1528 = vmatpush2.bf16.msra.mxu0 0
        %1529 = vmatprep.subr.bf16.mxu0 0
        %1530 = vmatpush2.bf16.msra.mxu0 0
        %1531 = vmatprep.subr.bf16.mxu0 0
        %1532 = vmatpush2.bf16.msra.mxu0 0
        %1533 = vmatprep.subr.bf16.mxu0 0
        %1534 = vmatpush2.bf16.msra.mxu0 0
        %1535 = vmatprep.subr.bf16.mxu0 0
        %1536 = vmatpush2.bf16.msra.mxu0 0
        %1537 = vmatprep.subr.bf16.mxu0 0
        %1538 = vmatpush2.bf16.msra.mxu0 0
        %1539 = vmatprep.subr.bf16.mxu0 0
        %1540 = vmatpush2.bf16.msra.mxu0 0
        %1541 = vmatprep.mubr.bf16.mxu0 0
        %1542 = vmatmul.mubr.bf16.gmra.mxu0 %v1501
        %v1543 = vpop.f32.mrf.mxu0
        %v1544 = vadd.f32 0.0, %v1543
        %v1545 = vpop.f32.mrf.mxu0
        %v1546 = vpop.f32.mrf.mxu0
        %v1547 = vadd.f32 0.0, %v1546
        %v1548 = vpop.f32.mrf.mxu0
        %1549 = vmatprep.mubr.bf16.mxu0 0
        %1550 = vmatmul.mubr.bf16.gmra.mxu0 %v1504
        %v1551 = vpop.f32.mrf.mxu0
        %v1552 = vadd.f32 0.0, %v1551
        %v1553 = vpop.f32.mrf.mxu0
        %v1554 = vpop.f32.mrf.mxu0
        %v1555 = vadd.f32 0.0, %v1554
        %v1556 = vpop.f32.mrf.mxu0
        %1557 = vdwg.mxu0
        %v1559 = vsel %vm597, %v1040, 0
        %v1562 = vsel %vm597, %v1041, 0
        %v1565 = vsel %vm852, %v586, 0
        %1567 = vmatprep.subr.bf16.mxu0 0
        %1568 = vmatpush1.bf16.msra.mxu0 0
        %1569 = vmatprep.subr.bf16.mxu0 0
        %1570 = vmatpush1.bf16.msra.mxu0 0
        %1571 = vmatprep.subr.bf16.mxu0 0
        %1572 = vmatpush1.bf16.msra.mxu0 0
        %1573 = vmatprep.subr.bf16.mxu0 0
        %1574 = vmatpush1.bf16.msra.mxu0 0
        %1575 = vmatprep.subr.bf16.mxu0 0
        %1576 = vmatpush1.bf16.msra.mxu0 0
        %1577 = vmatprep.subr.bf16.mxu0 0
        %1578 = vmatpush1.bf16.msra.mxu0 0
        %1579 = vmatprep.subr.bf16.mxu0 0
        %1580 = vmatpush1.bf16.msra.mxu0 0
        %1581 = vmatprep.subr.bf16.mxu0 0
        %1582 = vmatpush1.bf16.msra.mxu0 %v1565
        %1583 = vmatprep.subr.bf16.mxu0 0
        %1584 = vmatpush2.bf16.msra.mxu0 0
        %1585 = vmatprep.subr.bf16.mxu0 0
        %1586 = vmatpush2.bf16.msra.mxu0 0
        %1587 = vmatprep.subr.bf16.mxu0 0
        %1588 = vmatpush2.bf16.msra.mxu0 0
        %1589 = vmatprep.subr.bf16.mxu0 0
        %1590 = vmatpush2.bf16.msra.mxu0 0
        %1591 = vmatprep.subr.bf16.mxu0 0
        %1592 = vmatpush2.bf16.msra.mxu0 0
        %1593 = vmatprep.subr.bf16.mxu0 0
        %1594 = vmatpush2.bf16.msra.mxu0 0
        %1595 = vmatprep.subr.bf16.mxu0 0
        %1596 = vmatpush2.bf16.msra.mxu0 0
        %1597 = vmatprep.subr.bf16.mxu0 0
        %1598 = vmatpush2.bf16.msra.mxu0 0
        %1599 = vmatprep.mubr.bf16.mxu0 0
        %1600 = vmatmul.mubr.bf16.gmra.mxu0 %v1559
        %v1601 = vpop.f32.mrf.mxu0
        %v1602 = vadd.f32 %v1544, %v1601
        %v1603 = vpop.f32.mrf.mxu0
        %v1604 = vpop.f32.mrf.mxu0
        %v1605 = vadd.f32 %v1547, %v1604
        %v1606 = vpop.f32.mrf.mxu0
        %1607 = vmatprep.mubr.bf16.mxu0 0
        %1608 = vmatmul.mubr.bf16.gmra.mxu0 %v1562
        %v1609 = vpop.f32.mrf.mxu0
        %v1610 = vadd.f32 %v1552, %v1609
        %v1611 = vpop.f32.mrf.mxu0
        %v1612 = vpop.f32.mrf.mxu0
        %v1613 = vadd.f32 %v1555, %v1612
        %v1614 = vpop.f32.mrf.mxu0
        %1615 = vdwg.mxu0
        %1616 = vrot.lane.b32.xlu0 %v590, 112
        %v1617 = vpop.permute.xlu0 %1616
        %1618 = vrot.lane.b32.xlu0 %v590, 80
        %v1619 = vpop.permute.xlu0 %1618
        %v1621 = vsel %vm597, %v1617, 0
        %v1624 = vsel %vm597, %v1619, 0
        %1626 = vmatprep.subr.bf16.mxu0 0
        %1627 = vmatpush1.bf16.xpose.msra.mxu0 0
        %1628 = vmatprep.subr.bf16.mxu0 0
        %1629 = vmatpush1.bf16.xpose.msra.mxu0 0
        %1630 = vmatprep.subr.bf16.mxu0 0
        %1631 = vmatpush1.bf16.xpose.msra.mxu0 0
        %1632 = vmatprep.subr.bf16.mxu0 0
        %1633 = vmatpush1.bf16.xpose.msra.mxu0 0
        %1634 = vmatprep.subr.bf16.mxu0 0
        %1635 = vmatpush1.bf16.xpose.msra.mxu0 0
        %1636 = vmatprep.subr.bf16.mxu0 0
        %1637 = vmatpush1.bf16.xpose.msra.mxu0 0
        %1638 = vmatprep.subr.bf16.mxu0 0
        %1639 = vmatpush1.bf16.xpose.msra.mxu0 0
        %1640 = vmatprep.subr.bf16.mxu0 0
        %1641 = vmatpush1.bf16.xpose.msra.mxu0 %v1624
        %1642 = vmatprep.subr.bf16.mxu0 0
        %1643 = vmatpush2.bf16.xpose.msra.mxu0 0
        %1644 = vmatprep.subr.bf16.mxu0 0
        %1645 = vmatpush2.bf16.xpose.msra.mxu0 0
        %1646 = vmatprep.subr.bf16.mxu0 0
        %1647 = vmatpush2.bf16.xpose.msra.mxu0 0
        %1648 = vmatprep.subr.bf16.mxu0 0
        %1649 = vmatpush2.bf16.xpose.msra.mxu0 0
        %1650 = vmatprep.subr.bf16.mxu0 0
        %1651 = vmatpush2.bf16.xpose.msra.mxu0 0
        %1652 = vmatprep.subr.bf16.mxu0 0
        %1653 = vmatpush2.bf16.xpose.msra.mxu0 0
        %1654 = vmatprep.subr.bf16.mxu0 0
        %1655 = vmatpush2.bf16.xpose.msra.mxu0 0
        %1656 = vmatprep.subr.bf16.mxu0 0
        %1657 = vmatpush2.bf16.xpose.msra.mxu0 0
        %1658 = vmatprep.mubr.bf16.mxu0 0
        %1659 = vmatmul.mubr.bf16.gmra.mxu0 %v1621
        %v1660 = vpop.f32.mrf.mxu0
        %v1661 = vadd.f32 0.0, %v1660
        %v1662 = vpop.f32.mrf.mxu0
        %v1663 = vpop.f32.mrf.mxu0
        %v1664 = vpop.f32.mrf.mxu0
        %1665 = vdwg.mxu0
        %1666 = vrot.lane.b32.xlu0 %v591, 112
        %v1667 = vpop.permute.xlu0 %1666
        %1668 = vrot.lane.b32.xlu0 %v591, 80
        %v1669 = vpop.permute.xlu0 %1668
        %v1671 = vsel %vm597, %v1667, 0
        %v1674 = vsel %vm597, %v1669, 0
        %1676 = vmatprep.subr.bf16.mxu0 0
        %1677 = vmatpush1.bf16.xpose.msra.mxu0 0
        %1678 = vmatprep.subr.bf16.mxu0 0
        %1679 = vmatpush1.bf16.xpose.msra.mxu0 0
        %1680 = vmatprep.subr.bf16.mxu0 0
        %1681 = vmatpush1.bf16.xpose.msra.mxu0 0
        %1682 = vmatprep.subr.bf16.mxu0 0
        %1683 = vmatpush1.bf16.xpose.msra.mxu0 0
        %1684 = vmatprep.subr.bf16.mxu0 0
        %1685 = vmatpush1.bf16.xpose.msra.mxu0 0
        %1686 = vmatprep.subr.bf16.mxu0 0
        %1687 = vmatpush1.bf16.xpose.msra.mxu0 0
        %1688 = vmatprep.subr.bf16.mxu0 0
        %1689 = vmatpush1.bf16.xpose.msra.mxu0 0
        %1690 = vmatprep.subr.bf16.mxu0 0
        %1691 = vmatpush1.bf16.xpose.msra.mxu0 %v1674
        %1692 = vmatprep.subr.bf16.mxu0 0
        %1693 = vmatpush2.bf16.xpose.msra.mxu0 0
        %1694 = vmatprep.subr.bf16.mxu0 0
        %1695 = vmatpush2.bf16.xpose.msra.mxu0 0
        %1696 = vmatprep.subr.bf16.mxu0 0
        %1697 = vmatpush2.bf16.xpose.msra.mxu0 0
        %1698 = vmatprep.subr.bf16.mxu0 0
        %1699 = vmatpush2.bf16.xpose.msra.mxu0 0
        %1700 = vmatprep.subr.bf16.mxu0 0
        %1701 = vmatpush2.bf16.xpose.msra.mxu0 0
        %1702 = vmatprep.subr.bf16.mxu0 0
        %1703 = vmatpush2.bf16.xpose.msra.mxu0 0
        %1704 = vmatprep.subr.bf16.mxu0 0
        %1705 = vmatpush2.bf16.xpose.msra.mxu0 0
        %1706 = vmatprep.subr.bf16.mxu0 0
        %1707 = vmatpush2.bf16.xpose.msra.mxu0 0
        %1708 = vmatprep.mubr.bf16.mxu0 0
        %1709 = vmatmul.mubr.bf16.gmra.mxu0 %v1671
        %v1710 = vpop.f32.mrf.mxu0
        %v1711 = vadd.f32 0.0, %v1710
        %v1712 = vpop.f32.mrf.mxu0
        %v1713 = vpop.f32.mrf.mxu0
        %v1714 = vpop.f32.mrf.mxu0
        %1715 = vdwg.mxu0
        %1716 = vrot.lane.b32.xlu0 %v592, 112
        %v1717 = vpop.permute.xlu0 %1716
        %1718 = vrot.lane.b32.xlu0 %v592, 80
        %v1719 = vpop.permute.xlu0 %1718
        %v1721 = vsel %vm597, %v1717, 0
        %v1724 = vsel %vm597, %v1719, 0
        %1726 = vmatprep.subr.bf16.mxu0 0
        %1727 = vmatpush1.bf16.xpose.msra.mxu0 0
        %1728 = vmatprep.subr.bf16.mxu0 0
        %1729 = vmatpush1.bf16.xpose.msra.mxu0 0
        %1730 = vmatprep.subr.bf16.mxu0 0
        %1731 = vmatpush1.bf16.xpose.msra.mxu0 0
        %1732 = vmatprep.subr.bf16.mxu0 0
        %1733 = vmatpush1.bf16.xpose.msra.mxu0 0
        %1734 = vmatprep.subr.bf16.mxu0 0
        %1735 = vmatpush1.bf16.xpose.msra.mxu0 0
        %1736 = vmatprep.subr.bf16.mxu0 0
        %1737 = vmatpush1.bf16.xpose.msra.mxu0 0
        %1738 = vmatprep.subr.bf16.mxu0 0
        %1739 = vmatpush1.bf16.xpose.msra.mxu0 0
        %1740 = vmatprep.subr.bf16.mxu0 0
        %1741 = vmatpush1.bf16.xpose.msra.mxu0 %v1724
        %1742 = vmatprep.subr.bf16.mxu0 0
        %1743 = vmatpush2.bf16.xpose.msra.mxu0 0
        %1744 = vmatprep.subr.bf16.mxu0 0
        %1745 = vmatpush2.bf16.xpose.msra.mxu0 0
        %1746 = vmatprep.subr.bf16.mxu0 0
        %1747 = vmatpush2.bf16.xpose.msra.mxu0 0
        %1748 = vmatprep.subr.bf16.mxu0 0
        %1749 = vmatpush2.bf16.xpose.msra.mxu0 0
        %1750 = vmatprep.subr.bf16.mxu0 0
        %1751 = vmatpush2.bf16.xpose.msra.mxu0 0
        %1752 = vmatprep.subr.bf16.mxu0 0
        %1753 = vmatpush2.bf16.xpose.msra.mxu0 0
        %1754 = vmatprep.subr.bf16.mxu0 0
        %1755 = vmatpush2.bf16.xpose.msra.mxu0 0
        %1756 = vmatprep.subr.bf16.mxu0 0
        %1757 = vmatpush2.bf16.xpose.msra.mxu0 0
        %1758 = vmatprep.mubr.bf16.mxu0 0
        %1759 = vmatmul.mubr.bf16.gmra.mxu0 %v1721
        %v1760 = vpop.f32.mrf.mxu0
        %v1761 = vadd.f32 0.0, %v1760
        %v1762 = vpop.f32.mrf.mxu0
        %v1763 = vpop.f32.mrf.mxu0
        %v1764 = vpop.f32.mrf.mxu0
        %1765 = vdwg.mxu0
        %1766 = vrot.lane.b32.xlu0 %v593, 112
        %v1767 = vpop.permute.xlu0 %1766
        %1768 = vrot.lane.b32.xlu0 %v593, 80
        %v1769 = vpop.permute.xlu0 %1768
        %v1771 = vsel %vm597, %v1767, 0
        %v1774 = vsel %vm597, %v1769, 0
        %1776 = vmatprep.subr.bf16.mxu0 0
        %1777 = vmatpush1.bf16.xpose.msra.mxu0 0
        %1778 = vmatprep.subr.bf16.mxu0 0
        %1779 = vmatpush1.bf16.xpose.msra.mxu0 0
        %1780 = vmatprep.subr.bf16.mxu0 0
        %1781 = vmatpush1.bf16.xpose.msra.mxu0 0
        %1782 = vmatprep.subr.bf16.mxu0 0
        %1783 = vmatpush1.bf16.xpose.msra.mxu0 0
        %1784 = vmatprep.subr.bf16.mxu0 0
        %1785 = vmatpush1.bf16.xpose.msra.mxu0 0
        %1786 = vmatprep.subr.bf16.mxu0 0
        %1787 = vmatpush1.bf16.xpose.msra.mxu0 0
        %1788 = vmatprep.subr.bf16.mxu0 0
        %1789 = vmatpush1.bf16.xpose.msra.mxu0 0
        %1790 = vmatprep.subr.bf16.mxu0 0
        %1791 = vmatpush1.bf16.xpose.msra.mxu0 %v1774
        %1792 = vmatprep.subr.bf16.mxu0 0
        %1793 = vmatpush2.bf16.xpose.msra.mxu0 0
        %1794 = vmatprep.subr.bf16.mxu0 0
        %1795 = vmatpush2.bf16.xpose.msra.mxu0 0
        %1796 = vmatprep.subr.bf16.mxu0 0
        %1797 = vmatpush2.bf16.xpose.msra.mxu0 0
        %1798 = vmatprep.subr.bf16.mxu0 0
        %1799 = vmatpush2.bf16.xpose.msra.mxu0 0
        %1800 = vmatprep.subr.bf16.mxu0 0
        %1801 = vmatpush2.bf16.xpose.msra.mxu0 0
        %1802 = vmatprep.subr.bf16.mxu0 0
        %1803 = vmatpush2.bf16.xpose.msra.mxu0 0
        %1804 = vmatprep.subr.bf16.mxu0 0
        %1805 = vmatpush2.bf16.xpose.msra.mxu0 0
        %1806 = vmatprep.subr.bf16.mxu0 0
        %1807 = vmatpush2.bf16.xpose.msra.mxu0 0
        %1808 = vmatprep.mubr.bf16.mxu0 0
        %1809 = vmatmul.mubr.bf16.gmra.mxu0 %v1771
        %v1810 = vpop.f32.mrf.mxu0
        %v1811 = vadd.f32 0.0, %v1810
        %v1812 = vpop.f32.mrf.mxu0
        %v1813 = vpop.f32.mrf.mxu0
        %v1814 = vpop.f32.mrf.mxu0
        %1815 = vdwg.mxu0
        %v1816 = vsel %vm597, %v1661, -inf
        %1817 = vmax.xlane.f32.xlu0 %v1816
        %v1818 = vpop.xlane.xlu0 %1817
        %v1819 = vsel %vm597, %v1711, -inf
        %1820 = vmax.xlane.f32.xlu0 %v1819
        %v1821 = vpop.xlane.xlu0 %1820
        %v1822 = vsel %vm597, %v1761, -inf
        %1823 = vmax.xlane.f32.xlu0 %v1822
        %v1824 = vpop.xlane.xlu0 %1823
        %v1825 = vsel %vm597, %v1811, -inf
        %1826 = vmax.xlane.f32.xlu0 %v1825
        %v1827 = vpop.xlane.xlu0 %1826
        %v1828 = vsub.f32 %v1661, %v1818
        %v1829 = vsub.f32 %v1711, %v1821
        %v1830 = vsub.f32 %v1761, %v1824
        %v1831 = vsub.f32 %v1811, %v1827
        %v1832 = vmul.f32 %v1828, 1.442695
        %v1833 = vpow.pop %v1832
        %v1834 = vmul.f32 %v1829, 1.442695
        %v1835 = vpow.pop %v1834
        %v1836 = vmul.f32 %v1830, 1.442695
        %v1837 = vpow.pop %v1836
        %v1838 = vmul.f32 %v1831, 1.442695
        %v1839 = vpow.pop %v1838
        %v1840 = vsel %vm597, %v1833, 0.0
        %1841 = vadd.xlane.f32.xlu0 %v1840
        %v1842 = vpop.xlane.xlu0 %1841
        %v1843 = vsel %vm597, %v1835, 0.0
        %1844 = vadd.xlane.f32.xlu0 %v1843
        %v1845 = vpop.xlane.xlu0 %1844
        %v1846 = vsel %vm597, %v1837, 0.0
        %1847 = vadd.xlane.f32.xlu0 %v1846
        %v1848 = vpop.xlane.xlu0 %1847
        %v1849 = vsel %vm597, %v1839, 0.0
        %1850 = vadd.xlane.f32.xlu0 %v1849
        %v1851 = vpop.xlane.xlu0 %1850
        %v1852 = vrcp.pop %v1842
        %v1853 = vrcp.pop %v1845
        %v1854 = vrcp.pop %v1848
        %v1855 = vrcp.pop %v1851
        %v1856 = vmul.f32 %v1833, %v1852
        %v1857 = vmul.f32 %v1835, %v1853
        %v1858 = vmul.f32 %v1837, %v1854
        %v1859 = vmul.f32 %v1839, %v1855
        %v1860 = vld [vmem:[%s496] sm:$0xff]
        %v1861 = vld [vmem:[%s496 + $0x8] sm:$0xff]
        %v1862 = vld [vmem:[%s496 + $0x10] sm:$0xff]
        %v1863 = vld [vmem:[%s496 + $0x18] sm:$0xff]
        %v1864 = vmul.f32 %v1856, 0.25
        %v1865 = vmul.f32 %v1857, 0.25
        %v1866 = vmul.f32 %v1858, 0.25
        %v1867 = vmul.f32 %v1859, 0.25
        %v1868 = vadd.f32 %v1860, %v1864
        %v1869 = vadd.f32 %v1861, %v1865
        %v1870 = vadd.f32 %v1862, %v1866
        %v1871 = vadd.f32 %v1863, %v1867
        %1872 = vst.msk [vmem:[%s496] sm:$0xff] %vm597, %v1868
        %1873 = vst.msk [vmem:[%s496 + $0x8] sm:$0xff] %vm597, %v1869
        %1874 = vst.msk [vmem:[%s496 + $0x10] sm:$0xff] %vm597, %v1870
        %1875 = vst.msk [vmem:[%s496 + $0x18] sm:$0xff] %vm597, %v1871
        %v1876 = vpack.c.bf16 %v1856, %v1856
        %v1877 = vpack.c.bf16 %v1857, %v1857
        %v1878 = vpack.c.bf16 %v1858, %v1858
        %v1879 = vpack.c.bf16 %v1859, %v1859
        %1880 = vrot.lane.b32.xlu0 %v590, 48
        %v1881 = vpop.permute.xlu0 %1880
        %v1883 = vsel %vm597, %v1876, 0
        %v1886 = vsel %vm852, %v1881, 0
        %1888 = vmatprep.subr.bf16.mxu0 0
        %1889 = vmatpush1.bf16.msra.mxu0 0
        %1890 = vmatprep.subr.bf16.mxu0 0
        %1891 = vmatpush1.bf16.msra.mxu0 0
        %1892 = vmatprep.subr.bf16.mxu0 0
        %1893 = vmatpush1.bf16.msra.mxu0 0
        %1894 = vmatprep.subr.bf16.mxu0 0
        %1895 = vmatpush1.bf16.msra.mxu0 0
        %1896 = vmatprep.subr.bf16.mxu0 0
        %1897 = vmatpush1.bf16.msra.mxu0 0
        %1898 = vmatprep.subr.bf16.mxu0 0
        %1899 = vmatpush1.bf16.msra.mxu0 0
        %1900 = vmatprep.subr.bf16.mxu0 0
        %1901 = vmatpush1.bf16.msra.mxu0 0
        %1902 = vmatprep.subr.bf16.mxu0 0
        %1903 = vmatpush1.bf16.msra.mxu0 %v1886
        %1904 = vmatprep.subr.bf16.mxu0 0
        %1905 = vmatpush2.bf16.msra.mxu0 0
        %1906 = vmatprep.subr.bf16.mxu0 0
        %1907 = vmatpush2.bf16.msra.mxu0 0
        %1908 = vmatprep.subr.bf16.mxu0 0
        %1909 = vmatpush2.bf16.msra.mxu0 0
        %1910 = vmatprep.subr.bf16.mxu0 0
        %1911 = vmatpush2.bf16.msra.mxu0 0
        %1912 = vmatprep.subr.bf16.mxu0 0
        %1913 = vmatpush2.bf16.msra.mxu0 0
        %1914 = vmatprep.subr.bf16.mxu0 0
        %1915 = vmatpush2.bf16.msra.mxu0 0
        %1916 = vmatprep.subr.bf16.mxu0 0
        %1917 = vmatpush2.bf16.msra.mxu0 0
        %1918 = vmatprep.subr.bf16.mxu0 0
        %1919 = vmatpush2.bf16.msra.mxu0 0
        %1920 = vmatprep.mubr.bf16.mxu0 0
        %1921 = vmatmul.mubr.bf16.gmra.mxu0 %v1883
        %v1922 = vpop.f32.mrf.mxu0
        %v1923 = vadd.f32 0.0, %v1922
        %v1924 = vpop.f32.mrf.mxu0
        %v1925 = vpop.f32.mrf.mxu0
        %v1926 = vpop.f32.mrf.mxu0
        %1927 = vdwg.mxu0
        %1928 = vrot.lane.b32.xlu0 %v591, 48
        %v1929 = vpop.permute.xlu0 %1928
        %v1931 = vsel %vm597, %v1877, 0
        %v1934 = vsel %vm852, %v1929, 0
        %1936 = vmatprep.subr.bf16.mxu0 0
        %1937 = vmatpush1.bf16.msra.mxu0 0
        %1938 = vmatprep.subr.bf16.mxu0 0
        %1939 = vmatpush1.bf16.msra.mxu0 0
        %1940 = vmatprep.subr.bf16.mxu0 0
        %1941 = vmatpush1.bf16.msra.mxu0 0
        %1942 = vmatprep.subr.bf16.mxu0 0
        %1943 = vmatpush1.bf16.msra.mxu0 0
        %1944 = vmatprep.subr.bf16.mxu0 0
        %1945 = vmatpush1.bf16.msra.mxu0 0
        %1946 = vmatprep.subr.bf16.mxu0 0
        %1947 = vmatpush1.bf16.msra.mxu0 0
        %1948 = vmatprep.subr.bf16.mxu0 0
        %1949 = vmatpush1.bf16.msra.mxu0 0
        %1950 = vmatprep.subr.bf16.mxu0 0
        %1951 = vmatpush1.bf16.msra.mxu0 %v1934
        %1952 = vmatprep.subr.bf16.mxu0 0
        %1953 = vmatpush2.bf16.msra.mxu0 0
        %1954 = vmatprep.subr.bf16.mxu0 0
        %1955 = vmatpush2.bf16.msra.mxu0 0
        %1956 = vmatprep.subr.bf16.mxu0 0
        %1957 = vmatpush2.bf16.msra.mxu0 0
        %1958 = vmatprep.subr.bf16.mxu0 0
        %1959 = vmatpush2.bf16.msra.mxu0 0
        %1960 = vmatprep.subr.bf16.mxu0 0
        %1961 = vmatpush2.bf16.msra.mxu0 0
        %1962 = vmatprep.subr.bf16.mxu0 0
        %1963 = vmatpush2.bf16.msra.mxu0 0
        %1964 = vmatprep.subr.bf16.mxu0 0
        %1965 = vmatpush2.bf16.msra.mxu0 0
        %1966 = vmatprep.subr.bf16.mxu0 0
        %1967 = vmatpush2.bf16.msra.mxu0 0
        %1968 = vmatprep.mubr.bf16.mxu0 0
        %1969 = vmatmul.mubr.bf16.gmra.mxu0 %v1931
        %v1970 = vpop.f32.mrf.mxu0
        %v1971 = vadd.f32 0.0, %v1970
        %v1972 = vpop.f32.mrf.mxu0
        %v1973 = vpop.f32.mrf.mxu0
        %v1974 = vpop.f32.mrf.mxu0
        %1975 = vdwg.mxu0
        %1976 = vrot.lane.b32.xlu0 %v592, 48
        %v1977 = vpop.permute.xlu0 %1976
        %v1979 = vsel %vm597, %v1878, 0
        %v1982 = vsel %vm852, %v1977, 0
        %1984 = vmatprep.subr.bf16.mxu0 0
        %1985 = vmatpush1.bf16.msra.mxu0 0
        %1986 = vmatprep.subr.bf16.mxu0 0
        %1987 = vmatpush1.bf16.msra.mxu0 0
        %1988 = vmatprep.subr.bf16.mxu0 0
        %1989 = vmatpush1.bf16.msra.mxu0 0
        %1990 = vmatprep.subr.bf16.mxu0 0
        %1991 = vmatpush1.bf16.msra.mxu0 0
        %1992 = vmatprep.subr.bf16.mxu0 0
        %1993 = vmatpush1.bf16.msra.mxu0 0
        %1994 = vmatprep.subr.bf16.mxu0 0
        %1995 = vmatpush1.bf16.msra.mxu0 0
        %1996 = vmatprep.subr.bf16.mxu0 0
        %1997 = vmatpush1.bf16.msra.mxu0 0
        %1998 = vmatprep.subr.bf16.mxu0 0
        %1999 = vmatpush1.bf16.msra.mxu0 %v1982
        %2000 = vmatprep.subr.bf16.mxu0 0
        %2001 = vmatpush2.bf16.msra.mxu0 0
        %2002 = vmatprep.subr.bf16.mxu0 0
        %2003 = vmatpush2.bf16.msra.mxu0 0
        %2004 = vmatprep.subr.bf16.mxu0 0
        %2005 = vmatpush2.bf16.msra.mxu0 0
        %2006 = vmatprep.subr.bf16.mxu0 0
        %2007 = vmatpush2.bf16.msra.mxu0 0
        %2008 = vmatprep.subr.bf16.mxu0 0
        %2009 = vmatpush2.bf16.msra.mxu0 0
        %2010 = vmatprep.subr.bf16.mxu0 0
        %2011 = vmatpush2.bf16.msra.mxu0 0
        %2012 = vmatprep.subr.bf16.mxu0 0
        %2013 = vmatpush2.bf16.msra.mxu0 0
        %2014 = vmatprep.subr.bf16.mxu0 0
        %2015 = vmatpush2.bf16.msra.mxu0 0
        %2016 = vmatprep.mubr.bf16.mxu0 0
        %2017 = vmatmul.mubr.bf16.gmra.mxu0 %v1979
        %v2018 = vpop.f32.mrf.mxu0
        %v2019 = vadd.f32 0.0, %v2018
        %v2020 = vpop.f32.mrf.mxu0
        %v2021 = vpop.f32.mrf.mxu0
        %v2022 = vpop.f32.mrf.mxu0
        %2023 = vdwg.mxu0
        %2024 = vrot.lane.b32.xlu0 %v593, 48
        %v2025 = vpop.permute.xlu0 %2024
        %v2027 = vsel %vm597, %v1879, 0
        %v2030 = vsel %vm852, %v2025, 0
        %2032 = vmatprep.subr.bf16.mxu0 0
        %2033 = vmatpush1.bf16.msra.mxu0 0
        %2034 = vmatprep.subr.bf16.mxu0 0
        %2035 = vmatpush1.bf16.msra.mxu0 0
        %2036 = vmatprep.subr.bf16.mxu0 0
        %2037 = vmatpush1.bf16.msra.mxu0 0
        %2038 = vmatprep.subr.bf16.mxu0 0
        %2039 = vmatpush1.bf16.msra.mxu0 0
        %2040 = vmatprep.subr.bf16.mxu0 0
        %2041 = vmatpush1.bf16.msra.mxu0 0
        %2042 = vmatprep.subr.bf16.mxu0 0
        %2043 = vmatpush1.bf16.msra.mxu0 0
        %2044 = vmatprep.subr.bf16.mxu0 0
        %2045 = vmatpush1.bf16.msra.mxu0 0
        %2046 = vmatprep.subr.bf16.mxu0 0
        %2047 = vmatpush1.bf16.msra.mxu0 %v2030
        %2048 = vmatprep.subr.bf16.mxu0 0
        %2049 = vmatpush2.bf16.msra.mxu0 0
        %2050 = vmatprep.subr.bf16.mxu0 0
        %2051 = vmatpush2.bf16.msra.mxu0 0
        %2052 = vmatprep.subr.bf16.mxu0 0
        %2053 = vmatpush2.bf16.msra.mxu0 0
        %2054 = vmatprep.subr.bf16.mxu0 0
        %2055 = vmatpush2.bf16.msra.mxu0 0
        %2056 = vmatprep.subr.bf16.mxu0 0
        %2057 = vmatpush2.bf16.msra.mxu0 0
        %2058 = vmatprep.subr.bf16.mxu0 0
        %2059 = vmatpush2.bf16.msra.mxu0 0
        %2060 = vmatprep.subr.bf16.mxu0 0
        %2061 = vmatpush2.bf16.msra.mxu0 0
        %2062 = vmatprep.subr.bf16.mxu0 0
        %2063 = vmatpush2.bf16.msra.mxu0 0
        %2064 = vmatprep.mubr.bf16.mxu0 0
        %2065 = vmatmul.mubr.bf16.gmra.mxu0 %v2027
        %v2066 = vpop.f32.mrf.mxu0
        %v2067 = vadd.f32 0.0, %v2066
        %v2068 = vpop.f32.mrf.mxu0
        %v2069 = vpop.f32.mrf.mxu0
        %v2070 = vpop.f32.mrf.mxu0
        %2071 = vdwg.mxu0
        %v2072 = vpack.c.bf16 %v1971, %v1923
        %v2073 = vpack.c.bf16 %v2067, %v2019
        %v2075 = vsel %vm597, %v2072, 0
        %v2078 = vsel %vm597, %v2073, 0
        %v2081 = vsel %vm852, %v588, 0
        %2083 = vmatprep.subr.bf16.mxu0 0
        %2084 = vmatpush1.bf16.msra.mxu0 0
        %2085 = vmatprep.subr.bf16.mxu0 0
        %2086 = vmatpush1.bf16.msra.mxu0 0
        %2087 = vmatprep.subr.bf16.mxu0 0
        %2088 = vmatpush1.bf16.msra.mxu0 0
        %2089 = vmatprep.subr.bf16.mxu0 0
        %2090 = vmatpush1.bf16.msra.mxu0 0
        %2091 = vmatprep.subr.bf16.mxu0 0
        %2092 = vmatpush1.bf16.msra.mxu0 0
        %2093 = vmatprep.subr.bf16.mxu0 0
        %2094 = vmatpush1.bf16.msra.mxu0 0
        %2095 = vmatprep.subr.bf16.mxu0 0
        %2096 = vmatpush1.bf16.msra.mxu0 0
        %2097 = vmatprep.subr.bf16.mxu0 0
        %2098 = vmatpush1.bf16.msra.mxu0 %v2081
        %2099 = vmatprep.subr.bf16.mxu0 0
        %2100 = vmatpush2.bf16.msra.mxu0 0
        %2101 = vmatprep.subr.bf16.mxu0 0
        %2102 = vmatpush2.bf16.msra.mxu0 0
        %2103 = vmatprep.subr.bf16.mxu0 0
        %2104 = vmatpush2.bf16.msra.mxu0 0
        %2105 = vmatprep.subr.bf16.mxu0 0
        %2106 = vmatpush2.bf16.msra.mxu0 0
        %2107 = vmatprep.subr.bf16.mxu0 0
        %2108 = vmatpush2.bf16.msra.mxu0 0
        %2109 = vmatprep.subr.bf16.mxu0 0
        %2110 = vmatpush2.bf16.msra.mxu0 0
        %2111 = vmatprep.subr.bf16.mxu0 0
        %2112 = vmatpush2.bf16.msra.mxu0 0
        %2113 = vmatprep.subr.bf16.mxu0 0
        %2114 = vmatpush2.bf16.msra.mxu0 0
        %2115 = vmatprep.mubr.bf16.mxu0 0
        %2116 = vmatmul.mubr.bf16.gmra.mxu0 %v2075
        %v2117 = vpop.f32.mrf.mxu0
        %v2118 = vadd.f32 0.0, %v2117
        %v2119 = vpop.f32.mrf.mxu0
        %v2120 = vpop.f32.mrf.mxu0
        %v2121 = vadd.f32 0.0, %v2120
        %v2122 = vpop.f32.mrf.mxu0
        %2123 = vmatprep.mubr.bf16.mxu0 0
        %2124 = vmatmul.mubr.bf16.gmra.mxu0 %v2078
        %v2125 = vpop.f32.mrf.mxu0
        %v2126 = vadd.f32 0.0, %v2125
        %v2127 = vpop.f32.mrf.mxu0
        %v2128 = vpop.f32.mrf.mxu0
        %v2129 = vadd.f32 0.0, %v2128
        %v2130 = vpop.f32.mrf.mxu0
        %2131 = vdwg.mxu0
        %v2132 = vadd.f32 %v1602, %v2118
        %v2133 = vadd.f32 %v1605, %v2121
        %v2134 = vadd.f32 %v1610, %v2126
        %v2135 = vadd.f32 %v1613, %v2129
        %2136 = vrot.lane.b32.xlu0 %v590, 104
        %v2137 = vpop.permute.xlu0 %2136
        %2138 = vrot.lane.b32.xlu0 %v590, 72
        %v2139 = vpop.permute.xlu0 %2138
        %v2141 = vsel %vm597, %v2137, 0
        %v2144 = vsel %vm597, %v2139, 0
        %2146 = vmatprep.subr.bf16.mxu0 0
        %2147 = vmatpush1.bf16.xpose.msra.mxu0 0
        %2148 = vmatprep.subr.bf16.mxu0 0
        %2149 = vmatpush1.bf16.xpose.msra.mxu0 0
        %2150 = vmatprep.subr.bf16.mxu0 0
        %2151 = vmatpush1.bf16.xpose.msra.mxu0 0
        %2152 = vmatprep.subr.bf16.mxu0 0
        %2153 = vmatpush1.bf16.xpose.msra.mxu0 0
        %2154 = vmatprep.subr.bf16.mxu0 0
        %2155 = vmatpush1.bf16.xpose.msra.mxu0 0
        %2156 = vmatprep.subr.bf16.mxu0 0
        %2157 = vmatpush1.bf16.xpose.msra.mxu0 0
        %2158 = vmatprep.subr.bf16.mxu0 0
        %2159 = vmatpush1.bf16.xpose.msra.mxu0 0
        %2160 = vmatprep.subr.bf16.mxu0 0
        %2161 = vmatpush1.bf16.xpose.msra.mxu0 %v2144
        %2162 = vmatprep.subr.bf16.mxu0 0
        %2163 = vmatpush2.bf16.xpose.msra.mxu0 0
        %2164 = vmatprep.subr.bf16.mxu0 0
        %2165 = vmatpush2.bf16.xpose.msra.mxu0 0
        %2166 = vmatprep.subr.bf16.mxu0 0
        %2167 = vmatpush2.bf16.xpose.msra.mxu0 0
        %2168 = vmatprep.subr.bf16.mxu0 0
        %2169 = vmatpush2.bf16.xpose.msra.mxu0 0
        %2170 = vmatprep.subr.bf16.mxu0 0
        %2171 = vmatpush2.bf16.xpose.msra.mxu0 0
        %2172 = vmatprep.subr.bf16.mxu0 0
        %2173 = vmatpush2.bf16.xpose.msra.mxu0 0
        %2174 = vmatprep.subr.bf16.mxu0 0
        %2175 = vmatpush2.bf16.xpose.msra.mxu0 0
        %2176 = vmatprep.subr.bf16.mxu0 0
        %2177 = vmatpush2.bf16.xpose.msra.mxu0 0
        %2178 = vmatprep.mubr.bf16.mxu0 0
        %2179 = vmatmul.mubr.bf16.gmra.mxu0 %v2141
        %v2180 = vpop.f32.mrf.mxu0
        %v2181 = vadd.f32 0.0, %v2180
        %v2182 = vpop.f32.mrf.mxu0
        %v2183 = vpop.f32.mrf.mxu0
        %v2184 = vpop.f32.mrf.mxu0
        %2185 = vdwg.mxu0
        %2186 = vrot.lane.b32.xlu0 %v591, 104
        %v2187 = vpop.permute.xlu0 %2186
        %2188 = vrot.lane.b32.xlu0 %v591, 72
        %v2189 = vpop.permute.xlu0 %2188
        %v2191 = vsel %vm597, %v2187, 0
        %v2194 = vsel %vm597, %v2189, 0
        %2196 = vmatprep.subr.bf16.mxu0 0
        %2197 = vmatpush1.bf16.xpose.msra.mxu0 0
        %2198 = vmatprep.subr.bf16.mxu0 0
        %2199 = vmatpush1.bf16.xpose.msra.mxu0 0
        %2200 = vmatprep.subr.bf16.mxu0 0
        %2201 = vmatpush1.bf16.xpose.msra.mxu0 0
        %2202 = vmatprep.subr.bf16.mxu0 0
        %2203 = vmatpush1.bf16.xpose.msra.mxu0 0
        %2204 = vmatprep.subr.bf16.mxu0 0
        %2205 = vmatpush1.bf16.xpose.msra.mxu0 0
        %2206 = vmatprep.subr.bf16.mxu0 0
        %2207 = vmatpush1.bf16.xpose.msra.mxu0 0
        %2208 = vmatprep.subr.bf16.mxu0 0
        %2209 = vmatpush1.bf16.xpose.msra.mxu0 0
        %2210 = vmatprep.subr.bf16.mxu0 0
        %2211 = vmatpush1.bf16.xpose.msra.mxu0 %v2194
        %2212 = vmatprep.subr.bf16.mxu0 0
        %2213 = vmatpush2.bf16.xpose.msra.mxu0 0
        %2214 = vmatprep.subr.bf16.mxu0 0
        %2215 = vmatpush2.bf16.xpose.msra.mxu0 0
        %2216 = vmatprep.subr.bf16.mxu0 0
        %2217 = vmatpush2.bf16.xpose.msra.mxu0 0
        %2218 = vmatprep.subr.bf16.mxu0 0
        %2219 = vmatpush2.bf16.xpose.msra.mxu0 0
        %2220 = vmatprep.subr.bf16.mxu0 0
        %2221 = vmatpush2.bf16.xpose.msra.mxu0 0
        %2222 = vmatprep.subr.bf16.mxu0 0
        %2223 = vmatpush2.bf16.xpose.msra.mxu0 0
        %2224 = vmatprep.subr.bf16.mxu0 0
        %2225 = vmatpush2.bf16.xpose.msra.mxu0 0
        %2226 = vmatprep.subr.bf16.mxu0 0
        %2227 = vmatpush2.bf16.xpose.msra.mxu0 0
        %2228 = vmatprep.mubr.bf16.mxu0 0
        %2229 = vmatmul.mubr.bf16.gmra.mxu0 %v2191
        %v2230 = vpop.f32.mrf.mxu0
        %v2231 = vadd.f32 0.0, %v2230
        %v2232 = vpop.f32.mrf.mxu0
        %v2233 = vpop.f32.mrf.mxu0
        %v2234 = vpop.f32.mrf.mxu0
        %2235 = vdwg.mxu0
        %2236 = vrot.lane.b32.xlu0 %v592, 104
        %v2237 = vpop.permute.xlu0 %2236
        %2238 = vrot.lane.b32.xlu0 %v592, 72
        %v2239 = vpop.permute.xlu0 %2238
        %v2241 = vsel %vm597, %v2237, 0
        %v2244 = vsel %vm597, %v2239, 0
        %2246 = vmatprep.subr.bf16.mxu0 0
        %2247 = vmatpush1.bf16.xpose.msra.mxu0 0
        %2248 = vmatprep.subr.bf16.mxu0 0
        %2249 = vmatpush1.bf16.xpose.msra.mxu0 0
        %2250 = vmatprep.subr.bf16.mxu0 0
        %2251 = vmatpush1.bf16.xpose.msra.mxu0 0
        %2252 = vmatprep.subr.bf16.mxu0 0
        %2253 = vmatpush1.bf16.xpose.msra.mxu0 0
        %2254 = vmatprep.subr.bf16.mxu0 0
        %2255 = vmatpush1.bf16.xpose.msra.mxu0 0
        %2256 = vmatprep.subr.bf16.mxu0 0
        %2257 = vmatpush1.bf16.xpose.msra.mxu0 0
        %2258 = vmatprep.subr.bf16.mxu0 0
        %2259 = vmatpush1.bf16.xpose.msra.mxu0 0
        %2260 = vmatprep.subr.bf16.mxu0 0
        %2261 = vmatpush1.bf16.xpose.msra.mxu0 %v2244
        %2262 = vmatprep.subr.bf16.mxu0 0
        %2263 = vmatpush2.bf16.xpose.msra.mxu0 0
        %2264 = vmatprep.subr.bf16.mxu0 0
        %2265 = vmatpush2.bf16.xpose.msra.mxu0 0
        %2266 = vmatprep.subr.bf16.mxu0 0
        %2267 = vmatpush2.bf16.xpose.msra.mxu0 0
        %2268 = vmatprep.subr.bf16.mxu0 0
        %2269 = vmatpush2.bf16.xpose.msra.mxu0 0
        %2270 = vmatprep.subr.bf16.mxu0 0
        %2271 = vmatpush2.bf16.xpose.msra.mxu0 0
        %2272 = vmatprep.subr.bf16.mxu0 0
        %2273 = vmatpush2.bf16.xpose.msra.mxu0 0
        %2274 = vmatprep.subr.bf16.mxu0 0
        %2275 = vmatpush2.bf16.xpose.msra.mxu0 0
        %2276 = vmatprep.subr.bf16.mxu0 0
        %2277 = vmatpush2.bf16.xpose.msra.mxu0 0
        %2278 = vmatprep.mubr.bf16.mxu0 0
        %2279 = vmatmul.mubr.bf16.gmra.mxu0 %v2241
        %v2280 = vpop.f32.mrf.mxu0
        %v2281 = vadd.f32 0.0, %v2280
        %v2282 = vpop.f32.mrf.mxu0
        %v2283 = vpop.f32.mrf.mxu0
        %v2284 = vpop.f32.mrf.mxu0
        %2285 = vdwg.mxu0
        %2286 = vrot.lane.b32.xlu0 %v593, 104
        %v2287 = vpop.permute.xlu0 %2286
        %2288 = vrot.lane.b32.xlu0 %v593, 72
        %v2289 = vpop.permute.xlu0 %2288
        %v2291 = vsel %vm597, %v2287, 0
        %v2294 = vsel %vm597, %v2289, 0
        %2296 = vmatprep.subr.bf16.mxu0 0
        %2297 = vmatpush1.bf16.xpose.msra.mxu0 0
        %2298 = vmatprep.subr.bf16.mxu0 0
        %2299 = vmatpush1.bf16.xpose.msra.mxu0 0
        %2300 = vmatprep.subr.bf16.mxu0 0
        %2301 = vmatpush1.bf16.xpose.msra.mxu0 0
        %2302 = vmatprep.subr.bf16.mxu0 0
        %2303 = vmatpush1.bf16.xpose.msra.mxu0 0
        %2304 = vmatprep.subr.bf16.mxu0 0
        %2305 = vmatpush1.bf16.xpose.msra.mxu0 0
        %2306 = vmatprep.subr.bf16.mxu0 0
        %2307 = vmatpush1.bf16.xpose.msra.mxu0 0
        %2308 = vmatprep.subr.bf16.mxu0 0
        %2309 = vmatpush1.bf16.xpose.msra.mxu0 0
        %2310 = vmatprep.subr.bf16.mxu0 0
        %2311 = vmatpush1.bf16.xpose.msra.mxu0 %v2294
        %2312 = vmatprep.subr.bf16.mxu0 0
        %2313 = vmatpush2.bf16.xpose.msra.mxu0 0
        %2314 = vmatprep.subr.bf16.mxu0 0
        %2315 = vmatpush2.bf16.xpose.msra.mxu0 0
        %2316 = vmatprep.subr.bf16.mxu0 0
        %2317 = vmatpush2.bf16.xpose.msra.mxu0 0
        %2318 = vmatprep.subr.bf16.mxu0 0
        %2319 = vmatpush2.bf16.xpose.msra.mxu0 0
        %2320 = vmatprep.subr.bf16.mxu0 0
        %2321 = vmatpush2.bf16.xpose.msra.mxu0 0
        %2322 = vmatprep.subr.bf16.mxu0 0
        %2323 = vmatpush2.bf16.xpose.msra.mxu0 0
        %2324 = vmatprep.subr.bf16.mxu0 0
        %2325 = vmatpush2.bf16.xpose.msra.mxu0 0
        %2326 = vmatprep.subr.bf16.mxu0 0
        %2327 = vmatpush2.bf16.xpose.msra.mxu0 0
        %2328 = vmatprep.mubr.bf16.mxu0 0
        %2329 = vmatmul.mubr.bf16.gmra.mxu0 %v2291
        %v2330 = vpop.f32.mrf.mxu0
        %v2331 = vadd.f32 0.0, %v2330
        %v2332 = vpop.f32.mrf.mxu0
        %v2333 = vpop.f32.mrf.mxu0
        %v2334 = vpop.f32.mrf.mxu0
        %2335 = vdwg.mxu0
        %v2336 = vsel %vm597, %v2181, -inf
        %2337 = vmax.xlane.f32.xlu0 %v2336
        %v2338 = vpop.xlane.xlu0 %2337
        %v2339 = vsel %vm597, %v2231, -inf
        %2340 = vmax.xlane.f32.xlu0 %v2339
        %v2341 = vpop.xlane.xlu0 %2340
        %v2342 = vsel %vm597, %v2281, -inf
        %2343 = vmax.xlane.f32.xlu0 %v2342
        %v2344 = vpop.xlane.xlu0 %2343
        %v2345 = vsel %vm597, %v2331, -inf
        %2346 = vmax.xlane.f32.xlu0 %v2345
        %v2347 = vpop.xlane.xlu0 %2346
        %v2348 = vsub.f32 %v2181, %v2338
        %v2349 = vsub.f32 %v2231, %v2341
        %v2350 = vsub.f32 %v2281, %v2344
        %v2351 = vsub.f32 %v2331, %v2347
        %v2352 = vmul.f32 %v2348, 1.442695
        %v2353 = vpow.pop %v2352
        %v2354 = vmul.f32 %v2349, 1.442695
        %v2355 = vpow.pop %v2354
        %v2356 = vmul.f32 %v2350, 1.442695
        %v2357 = vpow.pop %v2356
        %v2358 = vmul.f32 %v2351, 1.442695
        %v2359 = vpow.pop %v2358
        %v2360 = vsel %vm597, %v2353, 0.0
        %2361 = vadd.xlane.f32.xlu0 %v2360
        %v2362 = vpop.xlane.xlu0 %2361
        %v2363 = vsel %vm597, %v2355, 0.0
        %2364 = vadd.xlane.f32.xlu0 %v2363
        %v2365 = vpop.xlane.xlu0 %2364
        %v2366 = vsel %vm597, %v2357, 0.0
        %2367 = vadd.xlane.f32.xlu0 %v2366
        %v2368 = vpop.xlane.xlu0 %2367
        %v2369 = vsel %vm597, %v2359, 0.0
        %2370 = vadd.xlane.f32.xlu0 %v2369
        %v2371 = vpop.xlane.xlu0 %2370
        %v2372 = vrcp.pop %v2362
        %v2373 = vrcp.pop %v2365
        %v2374 = vrcp.pop %v2368
        %v2375 = vrcp.pop %v2371
        %v2376 = vmul.f32 %v2353, %v2372
        %v2377 = vmul.f32 %v2355, %v2373
        %v2378 = vmul.f32 %v2357, %v2374
        %v2379 = vmul.f32 %v2359, %v2375
        %v2380 = vld [vmem:[%s496] sm:$0xff]
        %v2381 = vld [vmem:[%s496 + $0x8] sm:$0xff]
        %v2382 = vld [vmem:[%s496 + $0x10] sm:$0xff]
        %v2383 = vld [vmem:[%s496 + $0x18] sm:$0xff]
        %v2384 = vmul.f32 %v2376, 0.25
        %v2385 = vmul.f32 %v2377, 0.25
        %v2386 = vmul.f32 %v2378, 0.25
        %v2387 = vmul.f32 %v2379, 0.25
        %v2388 = vadd.f32 %v2380, %v2384
        %v2389 = vadd.f32 %v2381, %v2385
        %v2390 = vadd.f32 %v2382, %v2386
        %v2391 = vadd.f32 %v2383, %v2387
        %2392 = vst.msk [vmem:[%s496] sm:$0xff] %vm597, %v2388
        %2393 = vst.msk [vmem:[%s496 + $0x8] sm:$0xff] %vm597, %v2389
        %2394 = vst.msk [vmem:[%s496 + $0x10] sm:$0xff] %vm597, %v2390
        %2395 = vst.msk [vmem:[%s496 + $0x18] sm:$0xff] %vm597, %v2391
        %v2396 = vpack.c.bf16 %v2376, %v2376
        %v2397 = vpack.c.bf16 %v2377, %v2377
        %v2398 = vpack.c.bf16 %v2378, %v2378
        %v2399 = vpack.c.bf16 %v2379, %v2379
        %2400 = vrot.lane.b32.xlu0 %v590, 40
        %v2401 = vpop.permute.xlu0 %2400
        %v2403 = vsel %vm597, %v2396, 0
        %v2406 = vsel %vm852, %v2401, 0
        %2408 = vmatprep.subr.bf16.mxu0 0
        %2409 = vmatpush1.bf16.msra.mxu0 0
        %2410 = vmatprep.subr.bf16.mxu0 0
        %2411 = vmatpush1.bf16.msra.mxu0 0
        %2412 = vmatprep.subr.bf16.mxu0 0
        %2413 = vmatpush1.bf16.msra.mxu0 0
        %2414 = vmatprep.subr.bf16.mxu0 0
        %2415 = vmatpush1.bf16.msra.mxu0 0
        %2416 = vmatprep.subr.bf16.mxu0 0
        %2417 = vmatpush1.bf16.msra.mxu0 0
        %2418 = vmatprep.subr.bf16.mxu0 0
        %2419 = vmatpush1.bf16.msra.mxu0 0
        %2420 = vmatprep.subr.bf16.mxu0 0
        %2421 = vmatpush1.bf16.msra.mxu0 0
        %2422 = vmatprep.subr.bf16.mxu0 0
        %2423 = vmatpush1.bf16.msra.mxu0 %v2406
        %2424 = vmatprep.subr.bf16.mxu0 0
        %2425 = vmatpush2.bf16.msra.mxu0 0
        %2426 = vmatprep.subr.bf16.mxu0 0
        %2427 = vmatpush2.bf16.msra.mxu0 0
        %2428 = vmatprep.subr.bf16.mxu0 0
        %2429 = vmatpush2.bf16.msra.mxu0 0
        %2430 = vmatprep.subr.bf16.mxu0 0
        %2431 = vmatpush2.bf16.msra.mxu0 0
        %2432 = vmatprep.subr.bf16.mxu0 0
        %2433 = vmatpush2.bf16.msra.mxu0 0
        %2434 = vmatprep.subr.bf16.mxu0 0
        %2435 = vmatpush2.bf16.msra.mxu0 0
        %2436 = vmatprep.subr.bf16.mxu0 0
        %2437 = vmatpush2.bf16.msra.mxu0 0
        %2438 = vmatprep.subr.bf16.mxu0 0
        %2439 = vmatpush2.bf16.msra.mxu0 0
        %2440 = vmatprep.mubr.bf16.mxu0 0
        %2441 = vmatmul.mubr.bf16.gmra.mxu0 %v2403
        %v2442 = vpop.f32.mrf.mxu0
        %v2443 = vadd.f32 0.0, %v2442
        %v2444 = vpop.f32.mrf.mxu0
        %v2445 = vpop.f32.mrf.mxu0
        %v2446 = vpop.f32.mrf.mxu0
        %2447 = vdwg.mxu0
        %2448 = vrot.lane.b32.xlu0 %v591, 40
        %v2449 = vpop.permute.xlu0 %2448
        %v2451 = vsel %vm597, %v2397, 0
        %v2454 = vsel %vm852, %v2449, 0
        %2456 = vmatprep.subr.bf16.mxu0 0
        %2457 = vmatpush1.bf16.msra.mxu0 0
        %2458 = vmatprep.subr.bf16.mxu0 0
        %2459 = vmatpush1.bf16.msra.mxu0 0
        %2460 = vmatprep.subr.bf16.mxu0 0
        %2461 = vmatpush1.bf16.msra.mxu0 0
        %2462 = vmatprep.subr.bf16.mxu0 0
        %2463 = vmatpush1.bf16.msra.mxu0 0
        %2464 = vmatprep.subr.bf16.mxu0 0
        %2465 = vmatpush1.bf16.msra.mxu0 0
        %2466 = vmatprep.subr.bf16.mxu0 0
        %2467 = vmatpush1.bf16.msra.mxu0 0
        %2468 = vmatprep.subr.bf16.mxu0 0
        %2469 = vmatpush1.bf16.msra.mxu0 0
        %2470 = vmatprep.subr.bf16.mxu0 0
        %2471 = vmatpush1.bf16.msra.mxu0 %v2454
        %2472 = vmatprep.subr.bf16.mxu0 0
        %2473 = vmatpush2.bf16.msra.mxu0 0
        %2474 = vmatprep.subr.bf16.mxu0 0
        %2475 = vmatpush2.bf16.msra.mxu0 0
        %2476 = vmatprep.subr.bf16.mxu0 0
        %2477 = vmatpush2.bf16.msra.mxu0 0
        %2478 = vmatprep.subr.bf16.mxu0 0
        %2479 = vmatpush2.bf16.msra.mxu0 0
        %2480 = vmatprep.subr.bf16.mxu0 0
        %2481 = vmatpush2.bf16.msra.mxu0 0
        %2482 = vmatprep.subr.bf16.mxu0 0
        %2483 = vmatpush2.bf16.msra.mxu0 0
        %2484 = vmatprep.subr.bf16.mxu0 0
        %2485 = vmatpush2.bf16.msra.mxu0 0
        %2486 = vmatprep.subr.bf16.mxu0 0
        %2487 = vmatpush2.bf16.msra.mxu0 0
        %2488 = vmatprep.mubr.bf16.mxu0 0
        %2489 = vmatmul.mubr.bf16.gmra.mxu0 %v2451
        %v2490 = vpop.f32.mrf.mxu0
        %v2491 = vadd.f32 0.0, %v2490
        %v2492 = vpop.f32.mrf.mxu0
        %v2493 = vpop.f32.mrf.mxu0
        %v2494 = vpop.f32.mrf.mxu0
        %2495 = vdwg.mxu0
        %2496 = vrot.lane.b32.xlu0 %v592, 40
        %v2497 = vpop.permute.xlu0 %2496
        %v2499 = vsel %vm597, %v2398, 0
        %v2502 = vsel %vm852, %v2497, 0
        %2504 = vmatprep.subr.bf16.mxu0 0
        %2505 = vmatpush1.bf16.msra.mxu0 0
        %2506 = vmatprep.subr.bf16.mxu0 0
        %2507 = vmatpush1.bf16.msra.mxu0 0
        %2508 = vmatprep.subr.bf16.mxu0 0
        %2509 = vmatpush1.bf16.msra.mxu0 0
        %2510 = vmatprep.subr.bf16.mxu0 0
        %2511 = vmatpush1.bf16.msra.mxu0 0
        %2512 = vmatprep.subr.bf16.mxu0 0
        %2513 = vmatpush1.bf16.msra.mxu0 0
        %2514 = vmatprep.subr.bf16.mxu0 0
        %2515 = vmatpush1.bf16.msra.mxu0 0
        %2516 = vmatprep.subr.bf16.mxu0 0
        %2517 = vmatpush1.bf16.msra.mxu0 0
        %2518 = vmatprep.subr.bf16.mxu0 0
        %2519 = vmatpush1.bf16.msra.mxu0 %v2502
        %2520 = vmatprep.subr.bf16.mxu0 0
        %2521 = vmatpush2.bf16.msra.mxu0 0
        %2522 = vmatprep.subr.bf16.mxu0 0
        %2523 = vmatpush2.bf16.msra.mxu0 0
        %2524 = vmatprep.subr.bf16.mxu0 0
        %2525 = vmatpush2.bf16.msra.mxu0 0
        %2526 = vmatprep.subr.bf16.mxu0 0
        %2527 = vmatpush2.bf16.msra.mxu0 0
        %2528 = vmatprep.subr.bf16.mxu0 0
        %2529 = vmatpush2.bf16.msra.mxu0 0
        %2530 = vmatprep.subr.bf16.mxu0 0
        %2531 = vmatpush2.bf16.msra.mxu0 0
        %2532 = vmatprep.subr.bf16.mxu0 0
        %2533 = vmatpush2.bf16.msra.mxu0 0
        %2534 = vmatprep.subr.bf16.mxu0 0
        %2535 = vmatpush2.bf16.msra.mxu0 0
        %2536 = vmatprep.mubr.bf16.mxu0 0
        %2537 = vmatmul.mubr.bf16.gmra.mxu0 %v2499
        %v2538 = vpop.f32.mrf.mxu0
        %v2539 = vadd.f32 0.0, %v2538
        %v2540 = vpop.f32.mrf.mxu0
        %v2541 = vpop.f32.mrf.mxu0
        %v2542 = vpop.f32.mrf.mxu0
        %2543 = vdwg.mxu0
        %2544 = vrot.lane.b32.xlu0 %v593, 40
        %v2545 = vpop.permute.xlu0 %2544
        %v2547 = vsel %vm597, %v2399, 0
        %v2550 = vsel %vm852, %v2545, 0
        %2552 = vmatprep.subr.bf16.mxu0 0
        %2553 = vmatpush1.bf16.msra.mxu0 0
        %2554 = vmatprep.subr.bf16.mxu0 0
        %2555 = vmatpush1.bf16.msra.mxu0 0
        %2556 = vmatprep.subr.bf16.mxu0 0
        %2557 = vmatpush1.bf16.msra.mxu0 0
        %2558 = vmatprep.subr.bf16.mxu0 0
        %2559 = vmatpush1.bf16.msra.mxu0 0
        %2560 = vmatprep.subr.bf16.mxu0 0
        %2561 = vmatpush1.bf16.msra.mxu0 0
        %2562 = vmatprep.subr.bf16.mxu0 0
        %2563 = vmatpush1.bf16.msra.mxu0 0
        %2564 = vmatprep.subr.bf16.mxu0 0
        %2565 = vmatpush1.bf16.msra.mxu0 0
        %2566 = vmatprep.subr.bf16.mxu0 0
        %2567 = vmatpush1.bf16.msra.mxu0 %v2550
        %2568 = vmatprep.subr.bf16.mxu0 0
        %2569 = vmatpush2.bf16.msra.mxu0 0
        %2570 = vmatprep.subr.bf16.mxu0 0
        %2571 = vmatpush2.bf16.msra.mxu0 0
        %2572 = vmatprep.subr.bf16.mxu0 0
        %2573 = vmatpush2.bf16.msra.mxu0 0
        %2574 = vmatprep.subr.bf16.mxu0 0
        %2575 = vmatpush2.bf16.msra.mxu0 0
        %2576 = vmatprep.subr.bf16.mxu0 0
        %2577 = vmatpush2.bf16.msra.mxu0 0
        %2578 = vmatprep.subr.bf16.mxu0 0
        %2579 = vmatpush2.bf16.msra.mxu0 0
        %2580 = vmatprep.subr.bf16.mxu0 0
        %2581 = vmatpush2.bf16.msra.mxu0 0
        %2582 = vmatprep.subr.bf16.mxu0 0
        %2583 = vmatpush2.bf16.msra.mxu0 0
        %2584 = vmatprep.mubr.bf16.mxu0 0
        %2585 = vmatmul.mubr.bf16.gmra.mxu0 %v2547
        %v2586 = vpop.f32.mrf.mxu0
        %v2587 = vadd.f32 0.0, %v2586
        %v2588 = vpop.f32.mrf.mxu0
        %v2589 = vpop.f32.mrf.mxu0
        %v2590 = vpop.f32.mrf.mxu0
        %2591 = vdwg.mxu0
        %v2592 = vpack.c.bf16 %v2491, %v2443
        %v2593 = vpack.c.bf16 %v2587, %v2539
        %v2595 = vsel %vm597, %v2592, 0
        %v2598 = vsel %vm597, %v2593, 0
        %v2601 = vsel %vm852, %v589, 0
        %2603 = vmatprep.subr.bf16.mxu0 0
        %2604 = vmatpush1.bf16.msra.mxu0 0
        %2605 = vmatprep.subr.bf16.mxu0 0
        %2606 = vmatpush1.bf16.msra.mxu0 0
        %2607 = vmatprep.subr.bf16.mxu0 0
        %2608 = vmatpush1.bf16.msra.mxu0 0
        %2609 = vmatprep.subr.bf16.mxu0 0
        %2610 = vmatpush1.bf16.msra.mxu0 0
        %2611 = vmatprep.subr.bf16.mxu0 0
        %2612 = vmatpush1.bf16.msra.mxu0 0
        %2613 = vmatprep.subr.bf16.mxu0 0
        %2614 = vmatpush1.bf16.msra.mxu0 0
        %2615 = vmatprep.subr.bf16.mxu0 0
        %2616 = vmatpush1.bf16.msra.mxu0 0
        %2617 = vmatprep.subr.bf16.mxu0 0
        %2618 = vmatpush1.bf16.msra.mxu0 %v2601
        %2619 = vmatprep.subr.bf16.mxu0 0
        %2620 = vmatpush2.bf16.msra.mxu0 0
        %2621 = vmatprep.subr.bf16.mxu0 0
        %2622 = vmatpush2.bf16.msra.mxu0 0
        %2623 = vmatprep.subr.bf16.mxu0 0
        %2624 = vmatpush2.bf16.msra.mxu0 0
        %2625 = vmatprep.subr.bf16.mxu0 0
        %2626 = vmatpush2.bf16.msra.mxu0 0
        %2627 = vmatprep.subr.bf16.mxu0 0
        %2628 = vmatpush2.bf16.msra.mxu0 0
        %2629 = vmatprep.subr.bf16.mxu0 0
        %2630 = vmatpush2.bf16.msra.mxu0 0
        %2631 = vmatprep.subr.bf16.mxu0 0
        %2632 = vmatpush2.bf16.msra.mxu0 0
        %2633 = vmatprep.subr.bf16.mxu0 0
        %2634 = vmatpush2.bf16.msra.mxu0 0
        %2635 = vmatprep.mubr.bf16.mxu0 0
        %2636 = vmatmul.mubr.bf16.gmra.mxu0 %v2595
        %v2637 = vpop.f32.mrf.mxu0
        %v2638 = vadd.f32 0.0, %v2637
        %v2639 = vpop.f32.mrf.mxu0
        %v2640 = vpop.f32.mrf.mxu0
        %v2641 = vadd.f32 0.0, %v2640
        %v2642 = vpop.f32.mrf.mxu0
        %2643 = vmatprep.mubr.bf16.mxu0 0
        %2644 = vmatmul.mubr.bf16.gmra.mxu0 %v2598
        %v2645 = vpop.f32.mrf.mxu0
        %v2646 = vadd.f32 0.0, %v2645
        %v2647 = vpop.f32.mrf.mxu0
        %v2648 = vpop.f32.mrf.mxu0
        %v2649 = vadd.f32 0.0, %v2648
        %v2650 = vpop.f32.mrf.mxu0
        %2651 = vdwg.mxu0
        %v2652 = vadd.f32 %v2132, %v2638
        %v2653 = vadd.f32 %v2133, %v2641
        %v2654 = vadd.f32 %v2134, %v2646
        %v2655 = vadd.f32 %v2135, %v2649
        %v2656 = vld [vmem:[%s4] sm:$0x1]
        %v2658 = vlaneseq
        %v2659 = vshrl.u32 %v2658, 7
        %v2660 = vsub.s32 0, %v2659
        %v2661 = vrot.slane %v2656, %v2660
        %v2663 = vadd.f32 %v2652, %v2661
        %v2664 = vadd.f32 %v2653, %v2661
        %v2665 = vadd.f32 %v2654, %v2661
        %v2666 = vadd.f32 %v2655, %v2661
        %v2667 = vadd.f32 %v501, %v2663
        %v2668 = vadd.f32 %v502, %v2664
        %v2669 = vadd.f32 %v503, %v2665
        %v2670 = vadd.f32 %v504, %v2666
        %v2671 = vld [vmem:[%s9] sm:$0x1]
        %v2672 = vld [vmem:[%s10] sm:$0x1]
        %v2673 = vsel %vm530, %v2667, 0.0
        %2674 = vadd.xlane.f32.xlu0 %v2673
        %v2675 = vpop.xlane.xlu0 %2674
        %v2676 = vsel %vm530, %v2668, 0.0
        %2677 = vadd.xlane.f32.xlu0 %v2676
        %v2678 = vpop.xlane.xlu0 %2677
        %v2679 = vsel %vm530, %v2669, 0.0
        %2680 = vadd.xlane.f32.xlu0 %v2679
        %v2681 = vpop.xlane.xlu0 %2680
        %v2682 = vsel %vm530, %v2670, 0.0
        %2683 = vadd.xlane.f32.xlu0 %v2682
        %v2684 = vpop.xlane.xlu0 %2683
        %v2685 = vrcp.pop 32.0
        %v2686 = vmul.f32 %v2675, %v2685
        %v2687 = vmul.f32 %v2678, %v2685
        %v2688 = vmul.f32 %v2681, %v2685
        %v2689 = vmul.f32 %v2684, %v2685
        %v2690 = vsub.f32 %v2667, %v2686
        %v2691 = vsub.f32 %v2668, %v2687
        %v2692 = vsub.f32 %v2669, %v2688
        %v2693 = vsub.f32 %v2670, %v2689
        %v2694 = vmul.f32 %v2690, %v2690
        %v2695 = vmul.f32 %v2691, %v2691
        %v2696 = vmul.f32 %v2692, %v2692
        %v2697 = vmul.f32 %v2693, %v2693
        %v2698 = vsel %vm530, %v2694, 0.0
        %2699 = vadd.xlane.f32.xlu0 %v2698
        %v2700 = vpop.xlane.xlu0 %2699
        %v2701 = vsel %vm530, %v2695, 0.0
        %2702 = vadd.xlane.f32.xlu0 %v2701
        %v2703 = vpop.xlane.xlu0 %2702
        %v2704 = vsel %vm530, %v2696, 0.0
        %2705 = vadd.xlane.f32.xlu0 %v2704
        %v2706 = vpop.xlane.xlu0 %2705
        %v2707 = vsel %vm530, %v2697, 0.0
        %2708 = vadd.xlane.f32.xlu0 %v2707
        %v2709 = vpop.xlane.xlu0 %2708
        %v2710 = vmul.f32 %v2700, %v2685
        %v2711 = vmul.f32 %v2703, %v2685
        %v2712 = vmul.f32 %v2706, %v2685
        %v2713 = vmul.f32 %v2709, %v2685
        %v2714 = vadd.f32 %v2710, 1e-05
        %v2715 = vadd.f32 %v2711, 1e-05
        %v2716 = vadd.f32 %v2712, 1e-05
        %v2717 = vadd.f32 %v2713, 1e-05
        %v2718 = vrsqrt.pop %v2714
        %v2719 = vrsqrt.pop %v2715
        %v2720 = vrsqrt.pop %v2716
        %v2721 = vrsqrt.pop %v2717
        %v2722 = vmul.f32 %v2690, %v2718
        %v2723 = vmul.f32 %v2691, %v2719
        %v2724 = vmul.f32 %v2692, %v2720
        %v2725 = vmul.f32 %v2693, %v2721
        %v2727 = vlaneseq
        %v2728 = vshrl.u32 %v2727, 7
        %v2729 = vsub.s32 0, %v2728
        %v2730 = vrot.slane %v2671, %v2729
        %v2732 = vmul.f32 %v2722, %v2730
        %v2733 = vmul.f32 %v2723, %v2730
        %v2734 = vmul.f32 %v2724, %v2730
        %v2735 = vmul.f32 %v2725, %v2730
        %v2737 = vlaneseq
        %v2738 = vshrl.u32 %v2737, 7
        %v2739 = vsub.s32 0, %v2738
        %v2740 = vrot.slane %v2672, %v2739
        %v2742 = vadd.f32 %v2732, %v2740
        %v2743 = vadd.f32 %v2733, %v2740
        %v2744 = vadd.f32 %v2734, %v2740
        %v2745 = vadd.f32 %v2735, %v2740
        %v2746 = vpack.c.bf16 %v2743, %v2742
        %v2747 = vpack.c.bf16 %v2745, %v2744
        %v2748 = vld [vmem:[%s5] sm:$0xf]
        %v2749 = vld [vmem:[%s5 + $0x4] sm:$0xf]
        %v2750 = vld [vmem:[%s5 + $0x8] sm:$0xf]
        %v2751 = vld [vmem:[%s5 + $0xc] sm:$0xf]
        %v2752 = vld [vmem:[%s6] sm:$0x1]
        %v2754 = vlaneseq
        %v2755 = vshrl.u32 %v2754, 7
        %v2756 = vsub.s32 0, %v2755
        %v2757 = vrot.slane %v2752, %v2756
        %v2763 = vunpack.c.l.b16 %v2748
        %v2764 = vunpack.c.l.b16 %v2749
        %v2765 = vunpack.c.l.b16 %v2750
        %v2766 = vunpack.c.l.b16 %v2751
        %v2767 = vpack.c.b16 %v2764, %v2763
        %v2768 = vpack.c.b16 %v2766, %v2765
        %v2772 = vsel %vm530, %v2746, 0
        %v2775 = vsel %vm530, %v2747, 0
        %2777 = vmatprep.subr.bf16.mxu0 0
        %2778 = vmatpush1.bf16.msra.mxu0 0
        %2779 = vmatprep.subr.bf16.mxu0 0
        %2780 = vmatpush1.bf16.msra.mxu0 0
        %2781 = vmatprep.subr.bf16.mxu0 0
        %2782 = vmatpush1.bf16.msra.mxu0 0
        %2783 = vmatprep.subr.bf16.mxu0 0
        %2784 = vmatpush1.bf16.msra.mxu0 0
        %2785 = vmatprep.subr.bf16.mxu0 0
        %2786 = vmatpush1.bf16.msra.mxu0 0
        %2787 = vmatprep.subr.bf16.mxu0 0
        %2788 = vmatpush1.bf16.msra.mxu0 0
        %2789 = vmatprep.subr.bf16.mxu0 0
        %2790 = vmatpush1.bf16.msra.mxu0 %v2768
        %2791 = vmatprep.subr.bf16.mxu0 0
        %2792 = vmatpush1.bf16.msra.mxu0 %v2767
        %2793 = vmatprep.subr.bf16.mxu0 0
        %2794 = vmatpush2.bf16.msra.mxu0 0
        %2795 = vmatprep.subr.bf16.mxu0 0
        %2796 = vmatpush2.bf16.msra.mxu0 0
        %2797 = vmatprep.subr.bf16.mxu0 0
        %2798 = vmatpush2.bf16.msra.mxu0 0
        %2799 = vmatprep.subr.bf16.mxu0 0
        %2800 = vmatpush2.bf16.msra.mxu0 0
        %2801 = vmatprep.subr.bf16.mxu0 0
        %2802 = vmatpush2.bf16.msra.mxu0 0
        %2803 = vmatprep.subr.bf16.mxu0 0
        %2804 = vmatpush2.bf16.msra.mxu0 0
        %2805 = vmatprep.subr.bf16.mxu0 0
        %2806 = vmatpush2.bf16.msra.mxu0 0
        %2807 = vmatprep.subr.bf16.mxu0 0
        %2808 = vmatpush2.bf16.msra.mxu0 0
        %2809 = vmatprep.mubr.bf16.mxu0 0
        %2810 = vmatmul.mubr.bf16.gmra.mxu0 %v2772
        %v2811 = vpop.f32.mrf.mxu0
        %v2812 = vadd.f32 %v2757, %v2811
        %v2813 = vpop.f32.mrf.mxu0
        %v2814 = vpop.f32.mrf.mxu0
        %v2815 = vadd.f32 %v2757, %v2814
        %v2816 = vpop.f32.mrf.mxu0
        %2817 = vmatprep.mubr.bf16.mxu0 0
        %2818 = vmatmul.mubr.bf16.gmra.mxu0 %v2775
        %v2819 = vpop.f32.mrf.mxu0
        %v2820 = vadd.f32 %v2757, %v2819
        %v2821 = vpop.f32.mrf.mxu0
        %v2822 = vpop.f32.mrf.mxu0
        %v2823 = vadd.f32 %v2757, %v2822
        %v2824 = vpop.f32.mrf.mxu0
        %2825 = vdwg.mxu0
        %v2826 = vmax.f32 %v2812, 0.0
        %v2827 = vmax.f32 %v2815, 0.0
        %v2828 = vmax.f32 %v2820, 0.0
        %v2829 = vmax.f32 %v2823, 0.0
        %v2830 = vpack.c.bf16 %v2827, %v2826
        %v2831 = vpack.c.bf16 %v2829, %v2828
        %v2832 = vld [vmem:[%s7] sm:$0xf]
        %v2833 = vld [vmem:[%s7 + $0x4] sm:$0xf]
        %v2834 = vld [vmem:[%s7 + $0x8] sm:$0xf]
        %v2835 = vld [vmem:[%s7 + $0xc] sm:$0xf]
        %v2836 = vld [vmem:[%s7 + $0x10] sm:$0xf]
        %v2837 = vld [vmem:[%s7 + $0x14] sm:$0xf]
        %v2838 = vld [vmem:[%s7 + $0x18] sm:$0xf]
        %v2839 = vld [vmem:[%s7 + $0x1c] sm:$0xf]
        %v2840 = vld [vmem:[%s8] sm:$0x1]
        %v2842 = vlaneseq
        %v2843 = vshrl.u32 %v2842, 7
        %v2844 = vsub.s32 0, %v2843
        %v2845 = vrot.slane %v2840, %v2844
        %v2855 = vunpack.c.l.b16 %v2832
        %v2856 = vunpack.c.l.b16 %v2833
        %v2857 = vunpack.c.l.b16 %v2834
        %v2858 = vunpack.c.l.b16 %v2835
        %v2859 = vunpack.c.l.b16 %v2836
        %v2860 = vunpack.c.l.b16 %v2837
        %v2861 = vunpack.c.l.b16 %v2838
        %v2862 = vunpack.c.l.b16 %v2839
        %v2863 = vpack.c.b16 %v2856, %v2855
        %v2864 = vpack.c.b16 %v2858, %v2857
        %v2865 = vpack.c.b16 %v2860, %v2859
        %v2866 = vpack.c.b16 %v2862, %v2861
        %vm2871 = vcmask 523264
        %v2873 = vsel %vm2871, %v2830, 0
        %v2876 = vsel %vm2871, %v2831, 0
        %2878 = vmatprep.subr.bf16.mxu0 0
        %2879 = vmatpush1.bf16.msra.mxu0 0
        %2880 = vmatprep.subr.bf16.mxu0 0
        %2881 = vmatpush1.bf16.msra.mxu0 0
        %2882 = vmatprep.subr.bf16.mxu0 0
        %2883 = vmatpush1.bf16.msra.mxu0 0
        %2884 = vmatprep.subr.bf16.mxu0 0
        %2885 = vmatpush1.bf16.msra.mxu0 0
        %2886 = vmatprep.subr.bf16.mxu0 0
        %2887 = vmatpush1.bf16.msra.mxu0 %v2866
        %2888 = vmatprep.subr.bf16.mxu0 0
        %2889 = vmatpush1.bf16.msra.mxu0 %v2865
        %2890 = vmatprep.subr.bf16.mxu0 0
        %2891 = vmatpush1.bf16.msra.mxu0 %v2864
        %2892 = vmatprep.subr.bf16.mxu0 0
        %2893 = vmatpush1.bf16.msra.mxu0 %v2863
        %2894 = vmatprep.subr.bf16.mxu0 0
        %2895 = vmatpush2.bf16.msra.mxu0 0
        %2896 = vmatprep.subr.bf16.mxu0 0
        %2897 = vmatpush2.bf16.msra.mxu0 0
        %2898 = vmatprep.subr.bf16.mxu0 0
        %2899 = vmatpush2.bf16.msra.mxu0 0
        %2900 = vmatprep.subr.bf16.mxu0 0
        %2901 = vmatpush2.bf16.msra.mxu0 0
        %2902 = vmatprep.subr.bf16.mxu0 0
        %2903 = vmatpush2.bf16.msra.mxu0 0
        %2904 = vmatprep.subr.bf16.mxu0 0
        %2905 = vmatpush2.bf16.msra.mxu0 0
        %2906 = vmatprep.subr.bf16.mxu0 0
        %2907 = vmatpush2.bf16.msra.mxu0 0
        %2908 = vmatprep.subr.bf16.mxu0 0
        %2909 = vmatpush2.bf16.msra.mxu0 0
        %2910 = vmatprep.mubr.bf16.mxu0 0
        %2911 = vmatmul.mubr.bf16.gmra.mxu0 %v2873
        %v2912 = vpop.f32.mrf.mxu0
        %v2913 = vadd.f32 %v2845, %v2912
        %v2914 = vpop.f32.mrf.mxu0
        %v2915 = vpop.f32.mrf.mxu0
        %v2916 = vadd.f32 %v2845, %v2915
        %v2917 = vpop.f32.mrf.mxu0
        %2918 = vmatprep.mubr.bf16.mxu0 0
        %2919 = vmatmul.mubr.bf16.gmra.mxu0 %v2876
        %v2920 = vpop.f32.mrf.mxu0
        %v2921 = vadd.f32 %v2845, %v2920
        %v2922 = vpop.f32.mrf.mxu0
        %v2923 = vpop.f32.mrf.mxu0
        %v2924 = vadd.f32 %v2845, %v2923
        %v2925 = vpop.f32.mrf.mxu0
        %2926 = vdwg.mxu0
        %v2927 = vadd.f32 %v2742, %v2913
        %v2928 = vadd.f32 %v2743, %v2916
        %v2929 = vadd.f32 %v2744, %v2921
        %v2930 = vadd.f32 %v2745, %v2924
        %v2931 = vld [vmem:[%s11] sm:$0x1]
        %v2932 = vld [vmem:[%s12] sm:$0x1]
        %v2933 = vsel %vm530, %v2927, 0.0
        %2934 = vadd.xlane.f32.xlu0 %v2933
        %v2935 = vpop.xlane.xlu0 %2934
        %v2936 = vsel %vm530, %v2928, 0.0
        %2937 = vadd.xlane.f32.xlu0 %v2936
        %v2938 = vpop.xlane.xlu0 %2937
        %v2939 = vsel %vm530, %v2929, 0.0
        %2940 = vadd.xlane.f32.xlu0 %v2939
        %v2941 = vpop.xlane.xlu0 %2940
        %v2942 = vsel %vm530, %v2930, 0.0
        %2943 = vadd.xlane.f32.xlu0 %v2942
        %v2944 = vpop.xlane.xlu0 %2943
        %v2945 = vmul.f32 %v2935, %v2685
        %v2946 = vmul.f32 %v2938, %v2685
        %v2947 = vmul.f32 %v2941, %v2685
        %v2948 = vmul.f32 %v2944, %v2685
        %v2949 = vsub.f32 %v2927, %v2945
        %v2950 = vsub.f32 %v2928, %v2946
        %v2951 = vsub.f32 %v2929, %v2947
        %v2952 = vsub.f32 %v2930, %v2948
        %v2953 = vmul.f32 %v2949, %v2949
        %v2954 = vmul.f32 %v2950, %v2950
        %v2955 = vmul.f32 %v2951, %v2951
        %v2956 = vmul.f32 %v2952, %v2952
        %v2957 = vsel %vm530, %v2953, 0.0
        %2958 = vadd.xlane.f32.xlu0 %v2957
        %v2959 = vpop.xlane.xlu0 %2958
        %v2960 = vsel %vm530, %v2954, 0.0
        %2961 = vadd.xlane.f32.xlu0 %v2960
        %v2962 = vpop.xlane.xlu0 %2961
        %v2963 = vsel %vm530, %v2955, 0.0
        %2964 = vadd.xlane.f32.xlu0 %v2963
        %v2965 = vpop.xlane.xlu0 %2964
        %v2966 = vsel %vm530, %v2956, 0.0
        %2967 = vadd.xlane.f32.xlu0 %v2966
        %v2968 = vpop.xlane.xlu0 %2967
        %v2969 = vmul.f32 %v2959, %v2685
        %v2970 = vmul.f32 %v2962, %v2685
        %v2971 = vmul.f32 %v2965, %v2685
        %v2972 = vmul.f32 %v2968, %v2685
        %v2973 = vadd.f32 %v2969, 1e-05
        %v2974 = vadd.f32 %v2970, 1e-05
        %v2975 = vadd.f32 %v2971, 1e-05
        %v2976 = vadd.f32 %v2972, 1e-05
        %v2977 = vrsqrt.pop %v2973
        %v2978 = vrsqrt.pop %v2974
        %v2979 = vrsqrt.pop %v2975
        %v2980 = vrsqrt.pop %v2976
        %v2981 = vmul.f32 %v2949, %v2977
        %v2982 = vmul.f32 %v2950, %v2978
        %v2983 = vmul.f32 %v2951, %v2979
        %v2984 = vmul.f32 %v2952, %v2980
        %v2986 = vlaneseq
        %v2987 = vshrl.u32 %v2986, 7
        %v2988 = vsub.s32 0, %v2987
        %v2989 = vrot.slane %v2931, %v2988
        %v2991 = vmul.f32 %v2981, %v2989
        %v2992 = vmul.f32 %v2982, %v2989
        %v2993 = vmul.f32 %v2983, %v2989
        %v2994 = vmul.f32 %v2984, %v2989
        %v2996 = vlaneseq
        %v2997 = vshrl.u32 %v2996, 7
        %v2998 = vsub.s32 0, %v2997
        %v2999 = vrot.slane %v2932, %v2998
        %v3001 = vadd.f32 %v2991, %v2999
        %v3002 = vadd.f32 %v2992, %v2999
        %v3003 = vadd.f32 %v2993, %v2999
        %v3004 = vadd.f32 %v2994, %v2999
        %3005 = vst.msk [vmem:[%s489] sm:$0xff] %vm530, %v3001
        %3006 = vst.msk [vmem:[%s489 + $0x8] sm:$0xff] %vm530, %v3002
        %3007 = vst.msk [vmem:[%s489 + $0x10] sm:$0xff] %vm530, %v3003
        %3008 = vst.msk [vmem:[%s489 + $0x18] sm:$0xff] %vm530, %v3004
        %s3009 = sand.u32 %s321, 1
        %s3010 = scalar_lea.sflag [#allocation4], %s3009
        %s3011 = sand.u32 %s321, 1
        %s3012 = smul.addr %s3011, 32
        %s3013 = scalar_lea.vmem [#allocation5], %s3012
        %s3014 = sand.u32 %s347, 1
        %s3015 = scalar_lea.sflag [#allocation7], %s3014
        %s3016 = sand.u32 %s347, 1
        %s3017 = smul.addr %s3016, 32
        %s3018 = scalar_lea.vmem [#allocation6], %s3017
        // Predicated region
        $region77: #{tpu_custom_call.1} parent=71 // pred_check
          %p3019 = pneg %p331
        $region78: #{tpu_custom_call.1} parent=71 // pred_check_branch
          %3021 = sbr.rel (%p3019) target = $region80
        $region79: #{tpu_custom_call.1} parent=71 // pred_region
          %s3022 = smul.u32 4, %s35
          %s3024 = ssub.s32 512, 512
          %3025 = vsyncadd %s3010, %s3024
          %s3026 = smul.addr %s3022, 128
          %s3027 = scalar_lea.hbm %s13, %s3026
          %s3028 = sshll.u32 %s3013, 4
          %s3029 = int_to_ptr.vmem [resolvable:$true] %s3028
          %3034 = dma.vmem_to_hbm [thread:$0]  %s3029, 512, %s3027, %s3010, 128, 128, 8
        $region80: #{tpu_custom_call.1} parent=71 // pred_fallthru
          _
        // Predicated region
        $region81: #{tpu_custom_call.1} parent=71 // pred_check
          %p3035 = pneg %p357
        $region82: #{tpu_custom_call.1} parent=71 // pred_check_branch
          %3037 = sbr.rel (%p3035) target = $region84
        $region83: #{tpu_custom_call.1} parent=71 // pred_region
          %s3038 = smul.u32 4, %s35
          %s3040 = ssub.s32 512, 512
          %3041 = vsyncadd %s3015, %s3040
          %s3042 = smul.addr %s3038, 128
          %s3043 = scalar_lea.hbm %s14, %s3042
          %s3044 = sshll.u32 %s3018, 4
          %s3045 = int_to_ptr.vmem [resolvable:$true] %s3044
          %3050 = dma.vmem_to_hbm [thread:$0]  %s3045, 512, %s3043, %s3015, 128, 128, 8
        $region84: #{tpu_custom_call.1} parent=71 // pred_fallthru
          _
      $region72: #{tpu_custom_call.1} parent=5 // pred_fallthru
        _
      %p3051 = scmp.le.s32.totalorder 2, %s30
      // Predicated region
      $region85: #{tpu_custom_call.1} parent=5 // pred_check
        %p3052 = pneg %p3051
      $region86: #{tpu_custom_call.1} parent=5 // pred_check_branch
        %3054 = sbr.rel (%p3052) target = $region88
      $region87: #{tpu_custom_call.1} parent=5 // pred_region
        %s3055 = ssub.s32 %s30, 2
        // Predicated region
        $region89: #{tpu_custom_call.1} parent=87 // pred_check
          %p3056 = pneg %p337
        $region90: #{tpu_custom_call.1} parent=87 // pred_check_branch
          %3058 = sbr.rel (%p3056) target = $region92
        $region91: #{tpu_custom_call.1} parent=87 // pred_region
          %s3059 = sand.u32 %s322, 1
          %s3060 = scalar_lea.sflag [#allocation4], %s3059
          %s3061 = sand.u32 %s322, 1
          %s3062 = smul.addr %s3061, 32
          %s3063 = scalar_lea.vmem [#allocation5], %s3062
          %3064 = dma.done %s3060, 512
        $region92: #{tpu_custom_call.1} parent=87 // pred_fallthru
          _
        // Predicated region
        $region93: #{tpu_custom_call.1} parent=87 // pred_check
          %p3065 = pneg %p363
        $region94: #{tpu_custom_call.1} parent=87 // pred_check_branch
          %3067 = sbr.rel (%p3065) target = $region96
        $region95: #{tpu_custom_call.1} parent=87 // pred_region
          %s3068 = sand.u32 %s348, 1
          %s3069 = scalar_lea.sflag [#allocation7], %s3068
          %s3070 = sand.u32 %s348, 1
          %s3071 = smul.addr %s3070, 32
          %s3072 = scalar_lea.vmem [#allocation6], %s3071
          %3073 = dma.done %s3069, 512
        $region96: #{tpu_custom_call.1} parent=87 // pred_fallthru
          _
      $region88: #{tpu_custom_call.1} parent=5 // pred_fallthru
        _
    $region6: #{tpu_custom_call.1} parent=1 // loop_footer
      %s34 = sadd.s32 1, %s30
    $region7: #{tpu_custom_call.1} parent=1 // loop_footer_branch
      %29 = sbr.rel target = $region3
    $region8: #{tpu_custom_call.1} parent=1 // loop_exit
      _
    %3074 = vsyncpa [#allocation3], 1
    %s3075 = scalar_lea.sflag [#allocation3], 1
    %3076 = vsyncpa %s3075, 1
    %3077 = vsyncpa [#allocation4], 1
    %s3078 = scalar_lea.sflag [#allocation4], 1
    %3079 = vsyncpa %s3078, 1
    %3080 = vsyncpa [#allocation7], 1
    %s3081 = scalar_lea.sflag [#allocation7], 1
    %3082 = vsyncpa %s3081, 1

</llo_original>
